<compile_context>
chip_gen: v6e
topology: v6e:2x2x1
jax: 0.10.0
libtpu: 0.0.40
codegen_flags: <defaults>
</compile_context>

<pallas_src>
import functools

import numpy as np
import jax
import jax.numpy as jnp
from jax.experimental import pallas as pl
from jax.experimental.pallas import tpu as pltpu


# ----------------------------- Pallas kernel --------------------------------

def _fused_vit_kernel(patches_ref, cls_ref, pe_w_ref, pe_b_ref, pe_ln_ref,
                      colmask_ref, ln_ref, wbig_ref, qkvb_ref, wcls_ref,
                      projw_ref, projb_ref, fc1w_ref, fc1b_ref, fc2w_ref,
                      fc2b_ref, o_ref, *, H, W, num_heads, depth):
    """Whole VisionTransformer forward for ONE batch element (grid over B)."""
    f32, bf16 = jnp.float32, jnp.bfloat16
    HW = H * W
    E = cls_ref.shape[-1]
    d = E // num_heads

    # column-wrap masks for the flat row-major 3x3 depthwise taps
    colmask = colmask_ref[...]                     # (2, HW, 1)
    mask_l = colmask[0]
    mask_r = colmask[1]

    # padded spatial block geometry: spatial tokens start at a multiple of 8
    pad_top = ((W + 1 + 7) // 8) * 8               # >= W + 1 and 8-aligned
    pad_rows = ((pad_top + HW + W + 1 + 7) // 8) * 8
    top_zeros = jnp.zeros((pad_top, E), f32)
    bot_zeros = jnp.zeros((pad_rows - pad_top - HW, E), f32)

    # ---- ConvEmbed: non-overlapping patch conv (im2col matmul) + bias + LN ----
    t = jnp.dot(patches_ref[0].astype(bf16), pe_w_ref[...],
                preferred_element_type=f32) + pe_b_ref[...]          # (HW, E)
    mu = jnp.mean(t, axis=-1, keepdims=True)
    var = jnp.mean((t - mu) ** 2, axis=-1, keepdims=True)
    pe_ln = pe_ln_ref[...]                                            # (2, E)
    tok = (t - mu) * jax.lax.rsqrt(var + 1e-5) * pe_ln[0:1] + pe_ln[1:2]

    # token layout: rows [0, HW) = spatial (row-major), row HW = cls token
    x = jnp.concatenate([tok, cls_ref[...]], axis=0)                  # (T, E)

    for layer in range(depth):
        ln = ln_ref[layer]                                            # (4, E)

        # ---------------- attention branch ----------------
        mu = jnp.mean(x, axis=-1, keepdims=True)
        var = jnp.mean((x - mu) ** 2, axis=-1, keepdims=True)
        xn = (x - mu) * jax.lax.rsqrt(var + 1e-5) * ln[0:1] + ln[1:2]
        cls_n = xn[HW:HW + 1, :]                                      # (1, E)

        # zero-padded flat spatial tokens, built as a value (aligned start)
        padded = jnp.concatenate([top_zeros, xn[:HW, :], bot_zeros], axis=0)

        # 9 depthwise-conv taps (static slices; column wrap masked to zero)
        taps = []
        for kh in range(3):
            for kw in range(3):
                s = pad_top - W - 1 + kh * W + kw
                tap = padded[s:s + HW, :]                             # (HW, E)
                if kw == 0:
                    tap = tap * mask_l
                elif kw == 2:
                    tap = tap * mask_r
                taps.append(tap)
        taps_cat = jnp.concatenate(taps, axis=-1).astype(bf16)        # (HW, 9E)

        # dwconv + BN + q/k/v Linear folded into one wide matmul (scale in W_q)
        qkv_sp = jnp.dot(taps_cat, wbig_ref[layer],
                         preferred_element_type=f32) + qkvb_ref[layer]  # (HW, 3E)
        qkv_cls = jnp.dot(cls_n.astype(bf16), wcls_ref[layer],
                          preferred_element_type=f32)                   # (1, 3E)
        qkv = jnp.concatenate([qkv_sp, qkv_cls], axis=0)                # (T, 3E)

        # per-head attention, single concat-of-heads out-projection matmul
        heads = []
        for h in range(num_heads):
            q_h = qkv[:, h * d:(h + 1) * d].astype(bf16)
            k_h = qkv[:, E + h * d:E + (h + 1) * d].astype(bf16)
            v_h = qkv[:, 2 * E + h * d:2 * E + (h + 1) * d].astype(bf16)
            s_hd = jax.lax.dot_general(q_h, k_h, (((1,), (1,)), ((), ())),
                                       preferred_element_type=f32)      # (T, T)
            m = jnp.max(s_hd, axis=-1, keepdims=True)
            ex = jnp.exp(s_hd - m)
            p = ex * pl.reciprocal(jnp.sum(ex, axis=-1, keepdims=True),
                                   approx=True)
            heads.append(jnp.dot(p.astype(bf16), v_h,
                                 preferred_element_type=f32))            # (T, d)
        heads_cat = jnp.concatenate(heads, axis=-1).astype(bf16)         # (T, E)
        x = x + jnp.dot(heads_cat, projw_ref[layer],
                        preferred_element_type=f32) + projb_ref[layer]

        # ---------------- MLP branch ----------------
        mu = jnp.mean(x, axis=-1, keepdims=True)
        var = jnp.mean((x - mu) ** 2, axis=-1, keepdims=True)
        xn2 = (x - mu) * jax.lax.rsqrt(var + 1e-5) * ln[2:3] + ln[3:4]
        h1 = jnp.dot(xn2.astype(bf16), fc1w_ref[layer],
                     preferred_element_type=f32) + fc1b_ref[layer]       # (T, hid)
        # TODO(synk): nn.GELU default is the exact erf GELU; tanh approximation
        # is used here (guaranteed Mosaic lowering), max abs diff ~1e-3.
        g = 0.5 * h1 * (1.0 + jnp.tanh(0.7978845608028654 *
                                       (h1 + 0.044715 * h1 * h1 * h1)))
        x = x + jnp.dot(g.astype(bf16), fc2w_ref[layer],
                        preferred_element_type=f32) + fc2b_ref[layer]

    o_ref[0] = x


# ------------------------- parameters & forward ------------------------------

def init_params(key, cfg):
    E = cfg["embed_dim"]
    C = cfg["in_chans"]
    P = cfg["patch_size"]
    hid = int(E * cfg["mlp_ratio"])
    keys = iter(jax.random.split(key, 128))

    def nrm(shape, std=0.1):
        return std * jax.random.normal(next(keys), shape, dtype=jnp.float32)

    params = {
        "patch_w": nrm((E, C, P, P)),          # Conv2d weight (out, in, kh, kw)
        "patch_b": nrm((E,)),
        "patch_ln_g": jnp.ones((E,), jnp.float32),
        "patch_ln_b": jnp.zeros((E,), jnp.float32),
        "cls_token": 0.02 * jax.random.normal(next(keys), (1, 1, E), jnp.float32),
        "blocks": [],
    }
    for _ in range(cfg["depth"]):
        blk = {
            "norm1_g": jnp.ones((E,), jnp.float32), "norm1_b": jnp.zeros((E,), jnp.float32),
            "norm2_g": jnp.ones((E,), jnp.float32), "norm2_b": jnp.zeros((E,), jnp.float32),
            # depthwise 3x3 conv weights for q/k/v stacked as (3, 9, E):
            #   dw_w[n, kh*3+kw, c] == torch Conv2d(groups=C).weight[c, 0, kh, kw]
            "dw_w": nrm((3, 9, E)),
            # BatchNorm2d params / running stats for the three conv projections
            "bn_g": jnp.ones((3, E), jnp.float32), "bn_b": jnp.zeros((3, E), jnp.float32),
            "bn_m": jnp.zeros((3, E), jnp.float32), "bn_v": jnp.ones((3, E), jnp.float32),
            # proj_q/k/v Linear weights (qkv_bias=False), stacked (3, E_in, E_out)
            "qkv_w": nrm((3, E, E)),
            "proj_w": nrm((E, E)), "proj_b": nrm((E,)),
            "fc1_w": nrm((E, hid)), "fc1_b": nrm((hid,)),
            "fc2_w": nrm((hid, E)), "fc2_b": nrm((E,)),
        }
        params["blocks"].append(blk)
    return params


def vision_transformer_forward(params, x, cfg):
    B, C, Hin, Win = x.shape
    E = cfg["embed_dim"]
    nH = cfg["num_heads"]
    P = cfg["patch_size"]
    depth = cfg["depth"]
    hid = int(E * cfg["mlp_ratio"])

    H, W = Hin // P, Win // P
    HW = H * W
    T = HW + 1
    K = C * P * P

    # ---- im2col for the non-overlapping patch conv (stride == kernel, pad 0) ----
    patches = (x.reshape(B, C, H, P, W, P)
                .transpose(0, 2, 4, 1, 3, 5)
                .reshape(B, HW, K))

    pe_w = params["patch_w"].reshape(E, K).T.astype(jnp.bfloat16)   # (K, E)
    pe_b = params["patch_b"].reshape(1, E)
    pe_ln = jnp.stack([params["patch_ln_g"], params["patch_ln_b"]])  # (2, E)
    cls_tok = params["cls_token"].reshape(1, E)

    scale = float(E) ** -0.5                                         # CvT: dim_out ** -0.5
    eps_bn = 1e-5

    # ---- fold dwconv + BN + q/k/v Linear (+ attention scale) at trace time ----
    ln_s, wbig_s, qkvb_s, wcls_s = [], [], [], []
    pw_s, pb_s, f1w_s, f1b_s, f2w_s, f2b_s = [], [], [], [], [], []
    for blk in params["blocks"]:
        qkv_w = blk["qkv_w"].at[0].multiply(scale)                   # scale -> W_q
        gh = blk["bn_g"] * jax.lax.rsqrt(blk["bn_v"] + eps_bn)       # (3, E) eval BN
        bh = blk["bn_b"] - blk["bn_m"] * gh
        dw_eff = blk["dw_w"] * gh[:, None, :]                        # (3, 9, E)
        # w_big[k*E + c, n*E + j] = dw_eff[n, k, c] * qkv_w[n, c, j]
        w_big = jnp.einsum("nkc,ncj->kcnj", dw_eff, qkv_w).reshape(9 * E, 3 * E)
        qkv_b = jnp.einsum("nc,ncj->nj", bh, qkv_w).reshape(1, 3 * E)
        w_cls = jnp.transpose(qkv_w, (1, 0, 2)).reshape(E, 3 * E)    # cls bypasses conv

        ln_s.append(jnp.stack([blk["norm1_g"], blk["norm1_b"],
                               blk["norm2_g"], blk["norm2_b"]]))     # (4, E)
        wbig_s.append(w_big)
        qkvb_s.append(qkv_b)
        wcls_s.append(w_cls)
        pw_s.append(blk["proj_w"])
        pb_s.append(blk["proj_b"].reshape(1, E))
        f1w_s.append(blk["fc1_w"])
        f1b_s.append(blk["fc1_b"].reshape(1, hid))
        f2w_s.append(blk["fc2_w"])
        f2b_s.append(blk["fc2_b"].reshape(1, E))

    ln_all = jnp.stack(ln_s)                                 # (depth, 4, E)
    wbig_all = jnp.stack(wbig_s).astype(jnp.bfloat16)        # (depth, 9E, 3E)
    qkvb_all = jnp.stack(qkvb_s)                             # (depth, 1, 3E)
    wcls_all = jnp.stack(wcls_s).astype(jnp.bfloat16)        # (depth, E, 3E)
    pw_all = jnp.stack(pw_s).astype(jnp.bfloat16)            # (depth, E, E)
    pb_all = jnp.stack(pb_s)                                 # (depth, 1, E)
    f1w_all = jnp.stack(f1w_s).astype(jnp.bfloat16)          # (depth, E, hid)
    f1b_all = jnp.stack(f1b_s)                               # (depth, 1, hid)
    f2w_all = jnp.stack(f2w_s).astype(jnp.bfloat16)          # (depth, hid, E)
    f2b_all = jnp.stack(f2b_s)                               # (depth, 1, E)

    # column-wrap masks for the flat row-major 3x3 taps (trace-time constants)
    col = np.arange(HW, dtype=np.int32) % W
    colmask = jnp.asarray(np.stack([(col > 0), (col < W - 1)])
                          .astype(np.float32).reshape(2, HW, 1))

    kern = functools.partial(_fused_vit_kernel, H=H, W=W, num_heads=nH, depth=depth)
    out = pl.pallas_call(
        kern,
        out_shape=jax.ShapeDtypeStruct((B, T, E), jnp.float32),
        grid=(B,),
        in_specs=[
            pl.BlockSpec((1, HW, K), lambda i: (i, 0, 0)),               # patches
            pl.BlockSpec((1, E), lambda i: (0, 0)),                      # cls token
            pl.BlockSpec((K, E), lambda i: (0, 0)),                      # patch weight
            pl.BlockSpec((1, E), lambda i: (0, 0)),                      # patch bias
            pl.BlockSpec((2, E), lambda i: (0, 0)),                      # patch LN g,b
            pl.BlockSpec((2, HW, 1), lambda i: (0, 0, 0)),               # col-wrap masks
            pl.BlockSpec((depth, 4, E), lambda i: (0, 0, 0)),            # norm1/norm2 g,b
            pl.BlockSpec((depth, 9 * E, 3 * E), lambda i: (0, 0, 0)),    # folded qkv (spatial)
            pl.BlockSpec((depth, 1, 3 * E), lambda i: (0, 0, 0)),        # folded qkv bias
            pl.BlockSpec((depth, E, 3 * E), lambda i: (0, 0, 0)),        # qkv weight (cls row)
            pl.BlockSpec((depth, E, E), lambda i: (0, 0, 0)),            # out-proj weight
            pl.BlockSpec((depth, 1, E), lambda i: (0, 0, 0)),            # out-proj bias
            pl.BlockSpec((depth, E, hid), lambda i: (0, 0, 0)),          # fc1 weight
            pl.BlockSpec((depth, 1, hid), lambda i: (0, 0, 0)),          # fc1 bias
            pl.BlockSpec((depth, hid, E), lambda i: (0, 0, 0)),          # fc2 weight
            pl.BlockSpec((depth, 1, E), lambda i: (0, 0, 0)),            # fc2 bias
        ],
        out_specs=pl.BlockSpec((1, T, E), lambda i: (i, 0, 0)),
        compiler_params=pltpu.CompilerParams(dimension_semantics=("parallel",)),
    )(patches, cls_tok, pe_w, pe_b, pe_ln, colmask,
      ln_all, wbig_all, qkvb_all, wcls_all, pw_all, pb_all,
      f1w_all, f1b_all, f2w_all, f2b_all)

    # internal layout: spatial tokens first, cls token last
    cls_tokens = out[:, HW:HW + 1, :]
    x_out = out[:, :HW, :].reshape(B, H, W, E).transpose(0, 3, 1, 2)
    return x_out, cls_tokens


# --------------------------------- main ---------------------------------------

if __name__ == "__main__":
    cfg = dict(patch_size=4, patch_stride=4, patch_padding=0,
               in_chans=4, embed_dim=32, depth=2, num_heads=4,
               mlp_ratio=4.0, qkv_bias=False, with_cls_token=True)

    key = jax.random.PRNGKey(0)
    kp, kx = jax.random.split(key)
    params = init_params(kp, cfg)

    B, C_in, H_in, W_in = 2, 4, 16, 16
    x = jax.random.normal(kx, (B, C_in, H_in, W_in), dtype=jnp.float32)

    fwd = jax.jit(functools.partial(vision_transformer_forward, cfg=cfg))
    x_out, cls_tokens = fwd(params, x)
    jax.block_until_ready((x_out, cls_tokens))
    assert x_out.shape == (B, cfg["embed_dim"], H_in // cfg["patch_size"],
                           W_in // cfg["patch_size"])
    assert cls_tokens.shape == (B, 1, cfg["embed_dim"])
    print("KERNEL_OK")
</pallas_src>

<mosaic_0001>
module attributes {stable_mosaic.version = 11 : i64} {
  func.func @_fused_vit_kernel(%arg0: i32, %arg1: memref<1x16x64xf32, #tpu.memory_space<vmem>>, %arg2: memref<1x32xf32, #tpu.memory_space<vmem>>, %arg3: memref<64x32xbf16, #tpu.memory_space<vmem>>, %arg4: memref<1x32xf32, #tpu.memory_space<vmem>>, %arg5: memref<2x32xf32, #tpu.memory_space<vmem>>, %arg6: memref<2x16x1xf32, #tpu.memory_space<vmem>>, %arg7: memref<2x4x32xf32, #tpu.memory_space<vmem>>, %arg8: memref<2x288x96xbf16, #tpu.memory_space<vmem>>, %arg9: memref<2x1x96xf32, #tpu.memory_space<vmem>>, %arg10: memref<2x32x96xbf16, #tpu.memory_space<vmem>>, %arg11: memref<2x32x32xbf16, #tpu.memory_space<vmem>>, %arg12: memref<2x1x32xf32, #tpu.memory_space<vmem>>, %arg13: memref<2x32x128xbf16, #tpu.memory_space<vmem>>, %arg14: memref<2x1x128xf32, #tpu.memory_space<vmem>>, %arg15: memref<2x128x32xbf16, #tpu.memory_space<vmem>>, %arg16: memref<2x1x32xf32, #tpu.memory_space<vmem>>, %arg17: memref<1x17x32xf32, #tpu.memory_space<vmem>>) attributes {dimension_semantics = [#tpu.dimension_semantics<parallel>], iteration_bounds = array<i64: 2>, scalar_prefetch = 0 : i64, scratch_operands = 0 : i64, tpu.core_type = #tpu.core_type<tc>, window_params = [{transform_indices = @transform_0, window_bounds = array<i64: 1, 16, 64>}, {pipeline_mode = #tpu.pipeline_mode<synchronous>, transform_indices = @transform_1, window_bounds = array<i64: 1, 32>}, {pipeline_mode = #tpu.pipeline_mode<synchronous>, transform_indices = @transform_2, window_bounds = array<i64: 64, 32>}, {pipeline_mode = #tpu.pipeline_mode<synchronous>, transform_indices = @transform_3, window_bounds = array<i64: 1, 32>}, {pipeline_mode = #tpu.pipeline_mode<synchronous>, transform_indices = @transform_4, window_bounds = array<i64: 2, 32>}, {pipeline_mode = #tpu.pipeline_mode<synchronous>, transform_indices = @transform_5, window_bounds = array<i64: 2, 16, 1>}, {pipeline_mode = #tpu.pipeline_mode<synchronous>, transform_indices = @transform_6, window_bounds = array<i64: 2, 4, 32>}, {pipeline_mode = #tpu.pipeline_mode<synchronous>, transform_indices = @transform_7, window_bounds = array<i64: 2, 288, 96>}, {pipeline_mode = #tpu.pipeline_mode<synchronous>, transform_indices = @transform_8, window_bounds = array<i64: 2, 1, 96>}, {pipeline_mode = #tpu.pipeline_mode<synchronous>, transform_indices = @transform_9, window_bounds = array<i64: 2, 32, 96>}, {pipeline_mode = #tpu.pipeline_mode<synchronous>, transform_indices = @transform_10, window_bounds = array<i64: 2, 32, 32>}, {pipeline_mode = #tpu.pipeline_mode<synchronous>, transform_indices = @transform_11, window_bounds = array<i64: 2, 1, 32>}, {pipeline_mode = #tpu.pipeline_mode<synchronous>, transform_indices = @transform_12, window_bounds = array<i64: 2, 32, 128>}, {pipeline_mode = #tpu.pipeline_mode<synchronous>, transform_indices = @transform_13, window_bounds = array<i64: 2, 1, 128>}, {pipeline_mode = #tpu.pipeline_mode<synchronous>, transform_indices = @transform_14, window_bounds = array<i64: 2, 128, 32>}, {pipeline_mode = #tpu.pipeline_mode<synchronous>, transform_indices = @transform_15, window_bounds = array<i64: 2, 1, 32>}, {transform_indices = @transform_16, window_bounds = array<i64: 1, 17, 32>}]} {
    %c0 = arith.constant 0 : index
    %c0_0 = arith.constant 0 : index
    %c0_1 = arith.constant 0 : index
    %0 = vector.load %arg6[%c0, %c0_0, %c0_1] : memref<2x16x1xf32, #tpu.memory_space<vmem>>, vector<2x16x1xf32>
    %1 = vector.extract_strided_slice %0 {offsets = [0, 0, 0], sizes = [1, 16, 1], strides = [1, 1, 1]} : vector<2x16x1xf32> to vector<1x16x1xf32>
    %2 = vector.shape_cast %1 : vector<1x16x1xf32> to vector<16x1xf32>
    %3 = vector.extract_strided_slice %0 {offsets = [1, 0, 0], sizes = [1, 16, 1], strides = [1, 1, 1]} : vector<2x16x1xf32> to vector<1x16x1xf32>
    %4 = vector.shape_cast %3 : vector<1x16x1xf32> to vector<16x1xf32>
    %cst = arith.constant 0.000000e+00 : f32
    %5 = vector.broadcast %cst : f32 to vector<8x32xf32>
    %cst_2 = arith.constant 0.000000e+00 : f32
    %6 = vector.broadcast %cst_2 : f32 to vector<8x32xf32>
    %c0_3 = arith.constant 0 : index
    %c0_4 = arith.constant 0 : index
    %c0_5 = arith.constant 0 : index
    %7 = vector.load %arg1[%c0_3, %c0_4, %c0_5] : memref<1x16x64xf32, #tpu.memory_space<vmem>>, vector<1x16x64xf32>
    %8 = vector.shape_cast %7 : vector<1x16x64xf32> to vector<16x64xf32>
    %9 = arith.truncf %8 : vector<16x64xf32> to vector<16x64xbf16>
    %c0_6 = arith.constant 0 : index
    %c0_7 = arith.constant 0 : index
    %10 = vector.load %arg3[%c0_6, %c0_7] : memref<64x32xbf16, #tpu.memory_space<vmem>>, vector<64x32xbf16>
    %cst_8 = arith.constant dense<0.000000e+00> : vector<16x32xf32>
    %11 = tpu.matmul %9, %10, %cst_8 {dimension_numbers = #tpu.dot_dimension_numbers<[1], [0], [0], [1], [0, 0, 1, 1], [], []>} : vector<16x64xbf16>, vector<64x32xbf16>, vector<16x32xf32> -> vector<16x32xf32>
    %c0_9 = arith.constant 0 : index
    %c0_10 = arith.constant 0 : index
    %12 = vector.load %arg4[%c0_9, %c0_10] : memref<1x32xf32, #tpu.memory_space<vmem>>, vector<1x32xf32>
    %13 = vector.broadcast %12 : vector<1x32xf32> to vector<16x32xf32>
    %14 = arith.addf %11, %13 : vector<16x32xf32>
    %cst_11 = arith.constant dense<0.000000e+00> : vector<16xf32>
    %15 = vector.multi_reduction <add>, %14, %cst_11 [1] : vector<16x32xf32> to vector<16xf32>
    %16 = vector.shape_cast %15 : vector<16xf32> to vector<16x1xf32>
    %cst_12 = arith.constant 3.200000e+01 : f32
    %17 = vector.broadcast %cst_12 : f32 to vector<16x1xf32>
    %18 = arith.divf %16, %17 : vector<16x1xf32>
    %19 = vector.broadcast %18 : vector<16x1xf32> to vector<16x32xf32>
    %20 = arith.subf %14, %19 : vector<16x32xf32>
    %21 = arith.mulf %20, %20 : vector<16x32xf32>
    %cst_13 = arith.constant dense<0.000000e+00> : vector<16xf32>
    %22 = vector.multi_reduction <add>, %21, %cst_13 [1] : vector<16x32xf32> to vector<16xf32>
    %23 = vector.shape_cast %22 : vector<16xf32> to vector<16x1xf32>
    %cst_14 = arith.constant 3.200000e+01 : f32
    %24 = vector.broadcast %cst_14 : f32 to vector<16x1xf32>
    %25 = arith.divf %23, %24 : vector<16x1xf32>
    %c0_15 = arith.constant 0 : index
    %c0_16 = arith.constant 0 : index
    %26 = vector.load %arg5[%c0_15, %c0_16] : memref<2x32xf32, #tpu.memory_space<vmem>>, vector<2x32xf32>
    %27 = vector.broadcast %18 : vector<16x1xf32> to vector<16x32xf32>
    %28 = arith.subf %14, %27 : vector<16x32xf32>
    %cst_17 = arith.constant 9.99999974E-6 : f32
    %29 = vector.broadcast %cst_17 : f32 to vector<16x1xf32>
    %30 = arith.addf %25, %29 : vector<16x1xf32>
    %31 = math.rsqrt %30 : vector<16x1xf32>
    %32 = vector.broadcast %31 : vector<16x1xf32> to vector<16x32xf32>
    %33 = arith.mulf %28, %32 : vector<16x32xf32>
    %34 = vector.extract_strided_slice %26 {offsets = [0, 0], sizes = [1, 32], strides = [1, 1]} : vector<2x32xf32> to vector<1x32xf32>
    %35 = vector.broadcast %34 : vector<1x32xf32> to vector<16x32xf32>
    %36 = arith.mulf %33, %35 : vector<16x32xf32>
    %37 = vector.extract_strided_slice %26 {offsets = [1, 0], sizes = [1, 32], strides = [1, 1]} : vector<2x32xf32> to vector<1x32xf32>
    %38 = vector.broadcast %37 : vector<1x32xf32> to vector<16x32xf32>
    %39 = arith.addf %36, %38 : vector<16x32xf32>
    %c0_18 = arith.constant 0 : index
    %c0_19 = arith.constant 0 : index
    %40 = vector.load %arg2[%c0_18, %c0_19] : memref<1x32xf32, #tpu.memory_space<vmem>>, vector<1x32xf32>
    %41 = tpu.concatenate %39, %40 in 0 : vector<16x32xf32>, vector<1x32xf32> -> vector<17x32xf32>
    %c0_20 = arith.constant 0 : index
    %c0_21 = arith.constant 0 : index
    %c0_22 = arith.constant 0 : index
    %42 = vector.load %arg7[%c0_20, %c0_21, %c0_22] : memref<2x4x32xf32, #tpu.memory_space<vmem>>, vector<1x4x32xf32>
    %43 = vector.shape_cast %42 : vector<1x4x32xf32> to vector<4x32xf32>
    %cst_23 = arith.constant dense<0.000000e+00> : vector<17xf32>
    %44 = vector.multi_reduction <add>, %41, %cst_23 [1] : vector<17x32xf32> to vector<17xf32>
    %45 = vector.shape_cast %44 : vector<17xf32> to vector<17x1xf32>
    %cst_24 = arith.constant 3.200000e+01 : f32
    %46 = vector.broadcast %cst_24 : f32 to vector<17x1xf32>
    %47 = arith.divf %45, %46 : vector<17x1xf32>
    %48 = vector.broadcast %47 : vector<17x1xf32> to vector<17x32xf32>
    %49 = arith.subf %41, %48 : vector<17x32xf32>
    %50 = arith.mulf %49, %49 : vector<17x32xf32>
    %cst_25 = arith.constant dense<0.000000e+00> : vector<17xf32>
    %51 = vector.multi_reduction <add>, %50, %cst_25 [1] : vector<17x32xf32> to vector<17xf32>
    %52 = vector.shape_cast %51 : vector<17xf32> to vector<17x1xf32>
    %cst_26 = arith.constant 3.200000e+01 : f32
    %53 = vector.broadcast %cst_26 : f32 to vector<17x1xf32>
    %54 = arith.divf %52, %53 : vector<17x1xf32>
    %55 = vector.broadcast %47 : vector<17x1xf32> to vector<17x32xf32>
    %56 = arith.subf %41, %55 : vector<17x32xf32>
    %cst_27 = arith.constant 9.99999974E-6 : f32
    %57 = vector.broadcast %cst_27 : f32 to vector<17x1xf32>
    %58 = arith.addf %54, %57 : vector<17x1xf32>
    %59 = math.rsqrt %58 : vector<17x1xf32>
    %60 = vector.broadcast %59 : vector<17x1xf32> to vector<17x32xf32>
    %61 = arith.mulf %56, %60 : vector<17x32xf32>
    %62 = vector.extract_strided_slice %43 {offsets = [0, 0], sizes = [1, 32], strides = [1, 1]} : vector<4x32xf32> to vector<1x32xf32>
    %63 = vector.broadcast %62 : vector<1x32xf32> to vector<17x32xf32>
    %64 = arith.mulf %61, %63 : vector<17x32xf32>
    %65 = vector.extract_strided_slice %43 {offsets = [1, 0], sizes = [1, 32], strides = [1, 1]} : vector<4x32xf32> to vector<1x32xf32>
    %66 = vector.broadcast %65 : vector<1x32xf32> to vector<17x32xf32>
    %67 = arith.addf %64, %66 : vector<17x32xf32>
    %68 = vector.extract_strided_slice %67 {offsets = [16, 0], sizes = [1, 32], strides = [1, 1]} : vector<17x32xf32> to vector<1x32xf32>
    %69 = vector.extract_strided_slice %67 {offsets = [0, 0], sizes = [16, 32], strides = [1, 1]} : vector<17x32xf32> to vector<16x32xf32>
    %70 = tpu.concatenate %5, %69, %6 in 0 : vector<8x32xf32>, vector<16x32xf32>, vector<8x32xf32> -> vector<32x32xf32>
    %71 = vector.extract_strided_slice %70 {offsets = [3, 0], sizes = [16, 32], strides = [1, 1]} : vector<32x32xf32> to vector<16x32xf32>
    %72 = vector.broadcast %2 : vector<16x1xf32> to vector<16x32xf32>
    %73 = arith.mulf %71, %72 : vector<16x32xf32>
    %74 = vector.extract_strided_slice %70 {offsets = [4, 0], sizes = [16, 32], strides = [1, 1]} : vector<32x32xf32> to vector<16x32xf32>
    %75 = vector.extract_strided_slice %70 {offsets = [5, 0], sizes = [16, 32], strides = [1, 1]} : vector<32x32xf32> to vector<16x32xf32>
    %76 = vector.broadcast %4 : vector<16x1xf32> to vector<16x32xf32>
    %77 = arith.mulf %75, %76 : vector<16x32xf32>
    %78 = vector.extract_strided_slice %70 {offsets = [7, 0], sizes = [16, 32], strides = [1, 1]} : vector<32x32xf32> to vector<16x32xf32>
    %79 = vector.broadcast %2 : vector<16x1xf32> to vector<16x32xf32>
    %80 = arith.mulf %78, %79 : vector<16x32xf32>
    %81 = vector.extract_strided_slice %70 {offsets = [8, 0], sizes = [16, 32], strides = [1, 1]} : vector<32x32xf32> to vector<16x32xf32>
    %82 = vector.extract_strided_slice %70 {offsets = [9, 0], sizes = [16, 32], strides = [1, 1]} : vector<32x32xf32> to vector<16x32xf32>
    %83 = vector.broadcast %4 : vector<16x1xf32> to vector<16x32xf32>
    %84 = arith.mulf %82, %83 : vector<16x32xf32>
    %85 = vector.extract_strided_slice %70 {offsets = [11, 0], sizes = [16, 32], strides = [1, 1]} : vector<32x32xf32> to vector<16x32xf32>
    %86 = vector.broadcast %2 : vector<16x1xf32> to vector<16x32xf32>
    %87 = arith.mulf %85, %86 : vector<16x32xf32>
    %88 = vector.extract_strided_slice %70 {offsets = [12, 0], sizes = [16, 32], strides = [1, 1]} : vector<32x32xf32> to vector<16x32xf32>
    %89 = vector.extract_strided_slice %70 {offsets = [13, 0], sizes = [16, 32], strides = [1, 1]} : vector<32x32xf32> to vector<16x32xf32>
    %90 = vector.broadcast %4 : vector<16x1xf32> to vector<16x32xf32>
    %91 = arith.mulf %89, %90 : vector<16x32xf32>
    %92 = tpu.concatenate %73, %74, %77, %80, %81, %84, %87, %88, %91 in 1 : vector<16x32xf32>, vector<16x32xf32>, vector<16x32xf32>, vector<16x32xf32>, vector<16x32xf32>, vector<16x32xf32>, vector<16x32xf32>, vector<16x32xf32>, vector<16x32xf32> -> vector<16x288xf32>
    %93 = arith.truncf %92 : vector<16x288xf32> to vector<16x288xbf16>
    %c0_28 = arith.constant 0 : index
    %c0_29 = arith.constant 0 : index
    %c0_30 = arith.constant 0 : index
    %94 = vector.load %arg8[%c0_28, %c0_29, %c0_30] : memref<2x288x96xbf16, #tpu.memory_space<vmem>>, vector<1x288x96xbf16>
    %95 = vector.shape_cast %94 : vector<1x288x96xbf16> to vector<288x96xbf16>
    %cst_31 = arith.constant dense<0.000000e+00> : vector<16x96xf32>
    %96 = tpu.matmul %93, %95, %cst_31 {dimension_numbers = #tpu.dot_dimension_numbers<[1], [0], [0], [1], [0, 0, 1, 1], [], []>} : vector<16x288xbf16>, vector<288x96xbf16>, vector<16x96xf32> -> vector<16x96xf32>
    %c0_32 = arith.constant 0 : index
    %c0_33 = arith.constant 0 : index
    %c0_34 = arith.constant 0 : index
    %97 = vector.load %arg9[%c0_32, %c0_33, %c0_34] : memref<2x1x96xf32, #tpu.memory_space<vmem>>, vector<1x1x96xf32>
    %98 = vector.shape_cast %97 : vector<1x1x96xf32> to vector<1x96xf32>
    %99 = vector.broadcast %98 : vector<1x96xf32> to vector<16x96xf32>
    %100 = arith.addf %96, %99 : vector<16x96xf32>
    %101 = arith.truncf %68 : vector<1x32xf32> to vector<1x32xbf16>
    %c0_35 = arith.constant 0 : index
    %c0_36 = arith.constant 0 : index
    %c0_37 = arith.constant 0 : index
    %102 = vector.load %arg10[%c0_35, %c0_36, %c0_37] : memref<2x32x96xbf16, #tpu.memory_space<vmem>>, vector<1x32x96xbf16>
    %103 = vector.shape_cast %102 : vector<1x32x96xbf16> to vector<32x96xbf16>
    %cst_38 = arith.constant dense<0.000000e+00> : vector<1x96xf32>
    %104 = tpu.matmul %101, %103, %cst_38 {dimension_numbers = #tpu.dot_dimension_numbers<[1], [0], [0], [1], [0, 0, 1, 1], [], []>} : vector<1x32xbf16>, vector<32x96xbf16>, vector<1x96xf32> -> vector<1x96xf32>
    %105 = tpu.concatenate %100, %104 in 0 : vector<16x96xf32>, vector<1x96xf32> -> vector<17x96xf32>
    %106 = vector.extract_strided_slice %105 {offsets = [0, 0], sizes = [17, 8], strides = [1, 1]} : vector<17x96xf32> to vector<17x8xf32>
    %107 = arith.truncf %106 : vector<17x8xf32> to vector<17x8xbf16>
    %108 = vector.extract_strided_slice %105 {offsets = [0, 32], sizes = [17, 8], strides = [1, 1]} : vector<17x96xf32> to vector<17x8xf32>
    %109 = arith.truncf %108 : vector<17x8xf32> to vector<17x8xbf16>
    %110 = vector.extract_strided_slice %105 {offsets = [0, 64], sizes = [17, 8], strides = [1, 1]} : vector<17x96xf32> to vector<17x8xf32>
    %111 = arith.truncf %110 : vector<17x8xf32> to vector<17x8xbf16>
    %cst_39 = arith.constant dense<0.000000e+00> : vector<17x17xf32>
    %112 = tpu.matmul %107, %109, %cst_39 {dimension_numbers = #tpu.dot_dimension_numbers<[1], [1], [0], [0], [0, 0, 1, 0], [], []>} : vector<17x8xbf16>, vector<17x8xbf16>, vector<17x17xf32> -> vector<17x17xf32>
    %cst_40 = arith.constant dense<0xFF800000> : vector<17xf32>
    %113 = vector.multi_reduction <maximumf>, %112, %cst_40 [1] : vector<17x17xf32> to vector<17xf32>
    %114 = vector.shape_cast %113 : vector<17xf32> to vector<17x1xf32>
    %115 = vector.broadcast %114 : vector<17x1xf32> to vector<17x17xf32>
    %116 = arith.subf %112, %115 : vector<17x17xf32>
    %117 = math.exp %116 : vector<17x17xf32>
    %cst_41 = arith.constant dense<0.000000e+00> : vector<17xf32>
    %118 = vector.multi_reduction <add>, %117, %cst_41 [1] : vector<17x17xf32> to vector<17xf32>
    %119 = vector.shape_cast %118 : vector<17xf32> to vector<17x1xf32>
    %120 = tpu.reciprocal %119 {approx = true} : vector<17x1xf32> -> vector<17x1xf32>
    %121 = vector.broadcast %120 : vector<17x1xf32> to vector<17x17xf32>
    %122 = arith.mulf %117, %121 : vector<17x17xf32>
    %123 = arith.truncf %122 : vector<17x17xf32> to vector<17x17xbf16>
    %cst_42 = arith.constant dense<0.000000e+00> : vector<17x8xf32>
    %124 = tpu.matmul %123, %111, %cst_42 {dimension_numbers = #tpu.dot_dimension_numbers<[1], [0], [0], [1], [0, 0, 1, 1], [], []>} : vector<17x17xbf16>, vector<17x8xbf16>, vector<17x8xf32> -> vector<17x8xf32>
    %125 = vector.extract_strided_slice %105 {offsets = [0, 8], sizes = [17, 8], strides = [1, 1]} : vector<17x96xf32> to vector<17x8xf32>
    %126 = arith.truncf %125 : vector<17x8xf32> to vector<17x8xbf16>
    %127 = vector.extract_strided_slice %105 {offsets = [0, 40], sizes = [17, 8], strides = [1, 1]} : vector<17x96xf32> to vector<17x8xf32>
    %128 = arith.truncf %127 : vector<17x8xf32> to vector<17x8xbf16>
    %129 = vector.extract_strided_slice %105 {offsets = [0, 72], sizes = [17, 8], strides = [1, 1]} : vector<17x96xf32> to vector<17x8xf32>
    %130 = arith.truncf %129 : vector<17x8xf32> to vector<17x8xbf16>
    %cst_43 = arith.constant dense<0.000000e+00> : vector<17x17xf32>
    %131 = tpu.matmul %126, %128, %cst_43 {dimension_numbers = #tpu.dot_dimension_numbers<[1], [1], [0], [0], [0, 0, 1, 0], [], []>} : vector<17x8xbf16>, vector<17x8xbf16>, vector<17x17xf32> -> vector<17x17xf32>
    %cst_44 = arith.constant dense<0xFF800000> : vector<17xf32>
    %132 = vector.multi_reduction <maximumf>, %131, %cst_44 [1] : vector<17x17xf32> to vector<17xf32>
    %133 = vector.shape_cast %132 : vector<17xf32> to vector<17x1xf32>
    %134 = vector.broadcast %133 : vector<17x1xf32> to vector<17x17xf32>
    %135 = arith.subf %131, %134 : vector<17x17xf32>
    %136 = math.exp %135 : vector<17x17xf32>
    %cst_45 = arith.constant dense<0.000000e+00> : vector<17xf32>
    %137 = vector.multi_reduction <add>, %136, %cst_45 [1] : vector<17x17xf32> to vector<17xf32>
    %138 = vector.shape_cast %137 : vector<17xf32> to vector<17x1xf32>
    %139 = tpu.reciprocal %138 {approx = true} : vector<17x1xf32> -> vector<17x1xf32>
    %140 = vector.broadcast %139 : vector<17x1xf32> to vector<17x17xf32>
    %141 = arith.mulf %136, %140 : vector<17x17xf32>
    %142 = arith.truncf %141 : vector<17x17xf32> to vector<17x17xbf16>
    %cst_46 = arith.constant dense<0.000000e+00> : vector<17x8xf32>
    %143 = tpu.matmul %142, %130, %cst_46 {dimension_numbers = #tpu.dot_dimension_numbers<[1], [0], [0], [1], [0, 0, 1, 1], [], []>} : vector<17x17xbf16>, vector<17x8xbf16>, vector<17x8xf32> -> vector<17x8xf32>
    %144 = vector.extract_strided_slice %105 {offsets = [0, 16], sizes = [17, 8], strides = [1, 1]} : vector<17x96xf32> to vector<17x8xf32>
    %145 = arith.truncf %144 : vector<17x8xf32> to vector<17x8xbf16>
    %146 = vector.extract_strided_slice %105 {offsets = [0, 48], sizes = [17, 8], strides = [1, 1]} : vector<17x96xf32> to vector<17x8xf32>
    %147 = arith.truncf %146 : vector<17x8xf32> to vector<17x8xbf16>
    %148 = vector.extract_strided_slice %105 {offsets = [0, 80], sizes = [17, 8], strides = [1, 1]} : vector<17x96xf32> to vector<17x8xf32>
    %149 = arith.truncf %148 : vector<17x8xf32> to vector<17x8xbf16>
    %cst_47 = arith.constant dense<0.000000e+00> : vector<17x17xf32>
    %150 = tpu.matmul %145, %147, %cst_47 {dimension_numbers = #tpu.dot_dimension_numbers<[1], [1], [0], [0], [0, 0, 1, 0], [], []>} : vector<17x8xbf16>, vector<17x8xbf16>, vector<17x17xf32> -> vector<17x17xf32>
    %cst_48 = arith.constant dense<0xFF800000> : vector<17xf32>
    %151 = vector.multi_reduction <maximumf>, %150, %cst_48 [1] : vector<17x17xf32> to vector<17xf32>
    %152 = vector.shape_cast %151 : vector<17xf32> to vector<17x1xf32>
    %153 = vector.broadcast %152 : vector<17x1xf32> to vector<17x17xf32>
    %154 = arith.subf %150, %153 : vector<17x17xf32>
    %155 = math.exp %154 : vector<17x17xf32>
    %cst_49 = arith.constant dense<0.000000e+00> : vector<17xf32>
    %156 = vector.multi_reduction <add>, %155, %cst_49 [1] : vector<17x17xf32> to vector<17xf32>
    %157 = vector.shape_cast %156 : vector<17xf32> to vector<17x1xf32>
    %158 = tpu.reciprocal %157 {approx = true} : vector<17x1xf32> -> vector<17x1xf32>
    %159 = vector.broadcast %158 : vector<17x1xf32> to vector<17x17xf32>
    %160 = arith.mulf %155, %159 : vector<17x17xf32>
    %161 = arith.truncf %160 : vector<17x17xf32> to vector<17x17xbf16>
    %cst_50 = arith.constant dense<0.000000e+00> : vector<17x8xf32>
    %162 = tpu.matmul %161, %149, %cst_50 {dimension_numbers = #tpu.dot_dimension_numbers<[1], [0], [0], [1], [0, 0, 1, 1], [], []>} : vector<17x17xbf16>, vector<17x8xbf16>, vector<17x8xf32> -> vector<17x8xf32>
    %163 = vector.extract_strided_slice %105 {offsets = [0, 24], sizes = [17, 8], strides = [1, 1]} : vector<17x96xf32> to vector<17x8xf32>
    %164 = arith.truncf %163 : vector<17x8xf32> to vector<17x8xbf16>
    %165 = vector.extract_strided_slice %105 {offsets = [0, 56], sizes = [17, 8], strides = [1, 1]} : vector<17x96xf32> to vector<17x8xf32>
    %166 = arith.truncf %165 : vector<17x8xf32> to vector<17x8xbf16>
    %167 = vector.extract_strided_slice %105 {offsets = [0, 88], sizes = [17, 8], strides = [1, 1]} : vector<17x96xf32> to vector<17x8xf32>
    %168 = arith.truncf %167 : vector<17x8xf32> to vector<17x8xbf16>
    %cst_51 = arith.constant dense<0.000000e+00> : vector<17x17xf32>
    %169 = tpu.matmul %164, %166, %cst_51 {dimension_numbers = #tpu.dot_dimension_numbers<[1], [1], [0], [0], [0, 0, 1, 0], [], []>} : vector<17x8xbf16>, vector<17x8xbf16>, vector<17x17xf32> -> vector<17x17xf32>
    %cst_52 = arith.constant dense<0xFF800000> : vector<17xf32>
    %170 = vector.multi_reduction <maximumf>, %169, %cst_52 [1] : vector<17x17xf32> to vector<17xf32>
    %171 = vector.shape_cast %170 : vector<17xf32> to vector<17x1xf32>
    %172 = vector.broadcast %171 : vector<17x1xf32> to vector<17x17xf32>
    %173 = arith.subf %169, %172 : vector<17x17xf32>
    %174 = math.exp %173 : vector<17x17xf32>
    %cst_53 = arith.constant dense<0.000000e+00> : vector<17xf32>
    %175 = vector.multi_reduction <add>, %174, %cst_53 [1] : vector<17x17xf32> to vector<17xf32>
    %176 = vector.shape_cast %175 : vector<17xf32> to vector<17x1xf32>
    %177 = tpu.reciprocal %176 {approx = true} : vector<17x1xf32> -> vector<17x1xf32>
    %178 = vector.broadcast %177 : vector<17x1xf32> to vector<17x17xf32>
    %179 = arith.mulf %174, %178 : vector<17x17xf32>
    %180 = arith.truncf %179 : vector<17x17xf32> to vector<17x17xbf16>
    %cst_54 = arith.constant dense<0.000000e+00> : vector<17x8xf32>
    %181 = tpu.matmul %180, %168, %cst_54 {dimension_numbers = #tpu.dot_dimension_numbers<[1], [0], [0], [1], [0, 0, 1, 1], [], []>} : vector<17x17xbf16>, vector<17x8xbf16>, vector<17x8xf32> -> vector<17x8xf32>
    %182 = tpu.concatenate %124, %143, %162, %181 in 1 : vector<17x8xf32>, vector<17x8xf32>, vector<17x8xf32>, vector<17x8xf32> -> vector<17x32xf32>
    %183 = arith.truncf %182 : vector<17x32xf32> to vector<17x32xbf16>
    %c0_55 = arith.constant 0 : index
    %c0_56 = arith.constant 0 : index
    %c0_57 = arith.constant 0 : index
    %184 = vector.load %arg11[%c0_55, %c0_56, %c0_57] : memref<2x32x32xbf16, #tpu.memory_space<vmem>>, vector<1x32x32xbf16>
    %185 = vector.shape_cast %184 : vector<1x32x32xbf16> to vector<32x32xbf16>
    %cst_58 = arith.constant dense<0.000000e+00> : vector<17x32xf32>
    %186 = tpu.matmul %183, %185, %cst_58 {dimension_numbers = #tpu.dot_dimension_numbers<[1], [0], [0], [1], [0, 0, 1, 1], [], []>} : vector<17x32xbf16>, vector<32x32xbf16>, vector<17x32xf32> -> vector<17x32xf32>
    %187 = arith.addf %41, %186 : vector<17x32xf32>
    %c0_59 = arith.constant 0 : index
    %c0_60 = arith.constant 0 : index
    %c0_61 = arith.constant 0 : index
    %188 = vector.load %arg12[%c0_59, %c0_60, %c0_61] : memref<2x1x32xf32, #tpu.memory_space<vmem>>, vector<1x1x32xf32>
    %189 = vector.shape_cast %188 : vector<1x1x32xf32> to vector<1x32xf32>
    %190 = vector.broadcast %189 : vector<1x32xf32> to vector<17x32xf32>
    %191 = arith.addf %187, %190 : vector<17x32xf32>
    %cst_62 = arith.constant dense<0.000000e+00> : vector<17xf32>
    %192 = vector.multi_reduction <add>, %191, %cst_62 [1] : vector<17x32xf32> to vector<17xf32>
    %193 = vector.shape_cast %192 : vector<17xf32> to vector<17x1xf32>
    %cst_63 = arith.constant 3.200000e+01 : f32
    %194 = vector.broadcast %cst_63 : f32 to vector<17x1xf32>
    %195 = arith.divf %193, %194 : vector<17x1xf32>
    %196 = vector.broadcast %195 : vector<17x1xf32> to vector<17x32xf32>
    %197 = arith.subf %191, %196 : vector<17x32xf32>
    %198 = arith.mulf %197, %197 : vector<17x32xf32>
    %cst_64 = arith.constant dense<0.000000e+00> : vector<17xf32>
    %199 = vector.multi_reduction <add>, %198, %cst_64 [1] : vector<17x32xf32> to vector<17xf32>
    %200 = vector.shape_cast %199 : vector<17xf32> to vector<17x1xf32>
    %cst_65 = arith.constant 3.200000e+01 : f32
    %201 = vector.broadcast %cst_65 : f32 to vector<17x1xf32>
    %202 = arith.divf %200, %201 : vector<17x1xf32>
    %203 = vector.broadcast %195 : vector<17x1xf32> to vector<17x32xf32>
    %204 = arith.subf %191, %203 : vector<17x32xf32>
    %cst_66 = arith.constant 9.99999974E-6 : f32
    %205 = vector.broadcast %cst_66 : f32 to vector<17x1xf32>
    %206 = arith.addf %202, %205 : vector<17x1xf32>
    %207 = math.rsqrt %206 : vector<17x1xf32>
    %208 = vector.broadcast %207 : vector<17x1xf32> to vector<17x32xf32>
    %209 = arith.mulf %204, %208 : vector<17x32xf32>
    %210 = vector.extract_strided_slice %43 {offsets = [2, 0], sizes = [1, 32], strides = [1, 1]} : vector<4x32xf32> to vector<1x32xf32>
    %211 = vector.broadcast %210 : vector<1x32xf32> to vector<17x32xf32>
    %212 = arith.mulf %209, %211 : vector<17x32xf32>
    %213 = vector.extract_strided_slice %43 {offsets = [3, 0], sizes = [1, 32], strides = [1, 1]} : vector<4x32xf32> to vector<1x32xf32>
    %214 = vector.broadcast %213 : vector<1x32xf32> to vector<17x32xf32>
    %215 = arith.addf %212, %214 : vector<17x32xf32>
    %216 = arith.truncf %215 : vector<17x32xf32> to vector<17x32xbf16>
    %c0_67 = arith.constant 0 : index
    %c0_68 = arith.constant 0 : index
    %c0_69 = arith.constant 0 : index
    %217 = vector.load %arg13[%c0_67, %c0_68, %c0_69] : memref<2x32x128xbf16, #tpu.memory_space<vmem>>, vector<1x32x128xbf16>
    %218 = vector.shape_cast %217 : vector<1x32x128xbf16> to vector<32x128xbf16>
    %cst_70 = arith.constant dense<0.000000e+00> : vector<17x128xf32>
    %219 = tpu.matmul %216, %218, %cst_70 {dimension_numbers = #tpu.dot_dimension_numbers<[1], [0], [0], [1], [0, 0, 1, 1], [], []>} : vector<17x32xbf16>, vector<32x128xbf16>, vector<17x128xf32> -> vector<17x128xf32>
    %c0_71 = arith.constant 0 : index
    %c0_72 = arith.constant 0 : index
    %c0_73 = arith.constant 0 : index
    %220 = vector.load %arg14[%c0_71, %c0_72, %c0_73] : memref<2x1x128xf32, #tpu.memory_space<vmem>>, vector<1x1x128xf32>
    %221 = vector.shape_cast %220 : vector<1x1x128xf32> to vector<1x128xf32>
    %222 = vector.broadcast %221 : vector<1x128xf32> to vector<17x128xf32>
    %223 = arith.addf %219, %222 : vector<17x128xf32>
    %cst_74 = arith.constant 5.000000e-01 : f32
    %224 = vector.broadcast %cst_74 : f32 to vector<17x128xf32>
    %225 = arith.mulf %224, %223 : vector<17x128xf32>
    %cst_75 = arith.constant 4.471500e-02 : f32
    %226 = vector.broadcast %cst_75 : f32 to vector<17x128xf32>
    %227 = arith.mulf %226, %223 : vector<17x128xf32>
    %228 = arith.mulf %227, %223 : vector<17x128xf32>
    %229 = arith.mulf %228, %223 : vector<17x128xf32>
    %230 = arith.addf %223, %229 : vector<17x128xf32>
    %cst_76 = arith.constant 0.797884583 : f32
    %231 = vector.broadcast %cst_76 : f32 to vector<17x128xf32>
    %232 = arith.mulf %231, %230 : vector<17x128xf32>
    %233 = math.tanh %232 : vector<17x128xf32>
    %cst_77 = arith.constant 1.000000e+00 : f32
    %234 = vector.broadcast %cst_77 : f32 to vector<17x128xf32>
    %235 = arith.addf %234, %233 : vector<17x128xf32>
    %236 = arith.mulf %225, %235 : vector<17x128xf32>
    %237 = arith.truncf %236 : vector<17x128xf32> to vector<17x128xbf16>
    %c0_78 = arith.constant 0 : index
    %c0_79 = arith.constant 0 : index
    %c0_80 = arith.constant 0 : index
    %238 = vector.load %arg15[%c0_78, %c0_79, %c0_80] : memref<2x128x32xbf16, #tpu.memory_space<vmem>>, vector<1x128x32xbf16>
    %239 = vector.shape_cast %238 : vector<1x128x32xbf16> to vector<128x32xbf16>
    %cst_81 = arith.constant dense<0.000000e+00> : vector<17x32xf32>
    %240 = tpu.matmul %237, %239, %cst_81 {dimension_numbers = #tpu.dot_dimension_numbers<[1], [0], [0], [1], [0, 0, 1, 1], [], []>} : vector<17x128xbf16>, vector<128x32xbf16>, vector<17x32xf32> -> vector<17x32xf32>
    %241 = arith.addf %191, %240 : vector<17x32xf32>
    %c0_82 = arith.constant 0 : index
    %c0_83 = arith.constant 0 : index
    %c0_84 = arith.constant 0 : index
    %242 = vector.load %arg16[%c0_82, %c0_83, %c0_84] : memref<2x1x32xf32, #tpu.memory_space<vmem>>, vector<1x1x32xf32>
    %243 = vector.shape_cast %242 : vector<1x1x32xf32> to vector<1x32xf32>
    %244 = vector.broadcast %243 : vector<1x32xf32> to vector<17x32xf32>
    %245 = arith.addf %241, %244 : vector<17x32xf32>
    %c1 = arith.constant 1 : index
    %c0_85 = arith.constant 0 : index
    %c0_86 = arith.constant 0 : index
    %246 = vector.load %arg7[%c1, %c0_85, %c0_86] : memref<2x4x32xf32, #tpu.memory_space<vmem>>, vector<1x4x32xf32>
    %247 = vector.shape_cast %246 : vector<1x4x32xf32> to vector<4x32xf32>
    %cst_87 = arith.constant dense<0.000000e+00> : vector<17xf32>
    %248 = vector.multi_reduction <add>, %245, %cst_87 [1] : vector<17x32xf32> to vector<17xf32>
    %249 = vector.shape_cast %248 : vector<17xf32> to vector<17x1xf32>
    %cst_88 = arith.constant 3.200000e+01 : f32
    %250 = vector.broadcast %cst_88 : f32 to vector<17x1xf32>
    %251 = arith.divf %249, %250 : vector<17x1xf32>
    %252 = vector.broadcast %251 : vector<17x1xf32> to vector<17x32xf32>
    %253 = arith.subf %245, %252 : vector<17x32xf32>
    %254 = arith.mulf %253, %253 : vector<17x32xf32>
    %cst_89 = arith.constant dense<0.000000e+00> : vector<17xf32>
    %255 = vector.multi_reduction <add>, %254, %cst_89 [1] : vector<17x32xf32> to vector<17xf32>
    %256 = vector.shape_cast %255 : vector<17xf32> to vector<17x1xf32>
    %cst_90 = arith.constant 3.200000e+01 : f32
    %257 = vector.broadcast %cst_90 : f32 to vector<17x1xf32>
    %258 = arith.divf %256, %257 : vector<17x1xf32>
    %259 = vector.broadcast %251 : vector<17x1xf32> to vector<17x32xf32>
    %260 = arith.subf %245, %259 : vector<17x32xf32>
    %cst_91 = arith.constant 9.99999974E-6 : f32
    %261 = vector.broadcast %cst_91 : f32 to vector<17x1xf32>
    %262 = arith.addf %258, %261 : vector<17x1xf32>
    %263 = math.rsqrt %262 : vector<17x1xf32>
    %264 = vector.broadcast %263 : vector<17x1xf32> to vector<17x32xf32>
    %265 = arith.mulf %260, %264 : vector<17x32xf32>
    %266 = vector.extract_strided_slice %247 {offsets = [0, 0], sizes = [1, 32], strides = [1, 1]} : vector<4x32xf32> to vector<1x32xf32>
    %267 = vector.broadcast %266 : vector<1x32xf32> to vector<17x32xf32>
    %268 = arith.mulf %265, %267 : vector<17x32xf32>
    %269 = vector.extract_strided_slice %247 {offsets = [1, 0], sizes = [1, 32], strides = [1, 1]} : vector<4x32xf32> to vector<1x32xf32>
    %270 = vector.broadcast %269 : vector<1x32xf32> to vector<17x32xf32>
    %271 = arith.addf %268, %270 : vector<17x32xf32>
    %272 = vector.extract_strided_slice %271 {offsets = [16, 0], sizes = [1, 32], strides = [1, 1]} : vector<17x32xf32> to vector<1x32xf32>
    %273 = vector.extract_strided_slice %271 {offsets = [0, 0], sizes = [16, 32], strides = [1, 1]} : vector<17x32xf32> to vector<16x32xf32>
    %274 = tpu.concatenate %5, %273, %6 in 0 : vector<8x32xf32>, vector<16x32xf32>, vector<8x32xf32> -> vector<32x32xf32>
    %275 = vector.extract_strided_slice %274 {offsets = [3, 0], sizes = [16, 32], strides = [1, 1]} : vector<32x32xf32> to vector<16x32xf32>
    %276 = vector.broadcast %2 : vector<16x1xf32> to vector<16x32xf32>
    %277 = arith.mulf %275, %276 : vector<16x32xf32>
    %278 = vector.extract_strided_slice %274 {offsets = [4, 0], sizes = [16, 32], strides = [1, 1]} : vector<32x32xf32> to vector<16x32xf32>
    %279 = vector.extract_strided_slice %274 {offsets = [5, 0], sizes = [16, 32], strides = [1, 1]} : vector<32x32xf32> to vector<16x32xf32>
    %280 = vector.broadcast %4 : vector<16x1xf32> to vector<16x32xf32>
    %281 = arith.mulf %279, %280 : vector<16x32xf32>
    %282 = vector.extract_strided_slice %274 {offsets = [7, 0], sizes = [16, 32], strides = [1, 1]} : vector<32x32xf32> to vector<16x32xf32>
    %283 = vector.broadcast %2 : vector<16x1xf32> to vector<16x32xf32>
    %284 = arith.mulf %282, %283 : vector<16x32xf32>
    %285 = vector.extract_strided_slice %274 {offsets = [8, 0], sizes = [16, 32], strides = [1, 1]} : vector<32x32xf32> to vector<16x32xf32>
    %286 = vector.extract_strided_slice %274 {offsets = [9, 0], sizes = [16, 32], strides = [1, 1]} : vector<32x32xf32> to vector<16x32xf32>
    %287 = vector.broadcast %4 : vector<16x1xf32> to vector<16x32xf32>
    %288 = arith.mulf %286, %287 : vector<16x32xf32>
    %289 = vector.extract_strided_slice %274 {offsets = [11, 0], sizes = [16, 32], strides = [1, 1]} : vector<32x32xf32> to vector<16x32xf32>
    %290 = vector.broadcast %2 : vector<16x1xf32> to vector<16x32xf32>
    %291 = arith.mulf %289, %290 : vector<16x32xf32>
    %292 = vector.extract_strided_slice %274 {offsets = [12, 0], sizes = [16, 32], strides = [1, 1]} : vector<32x32xf32> to vector<16x32xf32>
    %293 = vector.extract_strided_slice %274 {offsets = [13, 0], sizes = [16, 32], strides = [1, 1]} : vector<32x32xf32> to vector<16x32xf32>
    %294 = vector.broadcast %4 : vector<16x1xf32> to vector<16x32xf32>
    %295 = arith.mulf %293, %294 : vector<16x32xf32>
    %296 = tpu.concatenate %277, %278, %281, %284, %285, %288, %291, %292, %295 in 1 : vector<16x32xf32>, vector<16x32xf32>, vector<16x32xf32>, vector<16x32xf32>, vector<16x32xf32>, vector<16x32xf32>, vector<16x32xf32>, vector<16x32xf32>, vector<16x32xf32> -> vector<16x288xf32>
    %297 = arith.truncf %296 : vector<16x288xf32> to vector<16x288xbf16>
    %c1_92 = arith.constant 1 : index
    %c0_93 = arith.constant 0 : index
    %c0_94 = arith.constant 0 : index
    %298 = vector.load %arg8[%c1_92, %c0_93, %c0_94] : memref<2x288x96xbf16, #tpu.memory_space<vmem>>, vector<1x288x96xbf16>
    %299 = vector.shape_cast %298 : vector<1x288x96xbf16> to vector<288x96xbf16>
    %cst_95 = arith.constant dense<0.000000e+00> : vector<16x96xf32>
    %300 = tpu.matmul %297, %299, %cst_95 {dimension_numbers = #tpu.dot_dimension_numbers<[1], [0], [0], [1], [0, 0, 1, 1], [], []>} : vector<16x288xbf16>, vector<288x96xbf16>, vector<16x96xf32> -> vector<16x96xf32>
    %c1_96 = arith.constant 1 : index
    %c0_97 = arith.constant 0 : index
    %c0_98 = arith.constant 0 : index
    %301 = vector.load %arg9[%c1_96, %c0_97, %c0_98] : memref<2x1x96xf32, #tpu.memory_space<vmem>>, vector<1x1x96xf32>
    %302 = vector.shape_cast %301 : vector<1x1x96xf32> to vector<1x96xf32>
    %303 = vector.broadcast %302 : vector<1x96xf32> to vector<16x96xf32>
    %304 = arith.addf %300, %303 : vector<16x96xf32>
    %305 = arith.truncf %272 : vector<1x32xf32> to vector<1x32xbf16>
    %c1_99 = arith.constant 1 : index
    %c0_100 = arith.constant 0 : index
    %c0_101 = arith.constant 0 : index
    %306 = vector.load %arg10[%c1_99, %c0_100, %c0_101] : memref<2x32x96xbf16, #tpu.memory_space<vmem>>, vector<1x32x96xbf16>
    %307 = vector.shape_cast %306 : vector<1x32x96xbf16> to vector<32x96xbf16>
    %cst_102 = arith.constant dense<0.000000e+00> : vector<1x96xf32>
    %308 = tpu.matmul %305, %307, %cst_102 {dimension_numbers = #tpu.dot_dimension_numbers<[1], [0], [0], [1], [0, 0, 1, 1], [], []>} : vector<1x32xbf16>, vector<32x96xbf16>, vector<1x96xf32> -> vector<1x96xf32>
    %309 = tpu.concatenate %304, %308 in 0 : vector<16x96xf32>, vector<1x96xf32> -> vector<17x96xf32>
    %310 = vector.extract_strided_slice %309 {offsets = [0, 0], sizes = [17, 8], strides = [1, 1]} : vector<17x96xf32> to vector<17x8xf32>
    %311 = arith.truncf %310 : vector<17x8xf32> to vector<17x8xbf16>
    %312 = vector.extract_strided_slice %309 {offsets = [0, 32], sizes = [17, 8], strides = [1, 1]} : vector<17x96xf32> to vector<17x8xf32>
    %313 = arith.truncf %312 : vector<17x8xf32> to vector<17x8xbf16>
    %314 = vector.extract_strided_slice %309 {offsets = [0, 64], sizes = [17, 8], strides = [1, 1]} : vector<17x96xf32> to vector<17x8xf32>
    %315 = arith.truncf %314 : vector<17x8xf32> to vector<17x8xbf16>
    %cst_103 = arith.constant dense<0.000000e+00> : vector<17x17xf32>
    %316 = tpu.matmul %311, %313, %cst_103 {dimension_numbers = #tpu.dot_dimension_numbers<[1], [1], [0], [0], [0, 0, 1, 0], [], []>} : vector<17x8xbf16>, vector<17x8xbf16>, vector<17x17xf32> -> vector<17x17xf32>
    %cst_104 = arith.constant dense<0xFF800000> : vector<17xf32>
    %317 = vector.multi_reduction <maximumf>, %316, %cst_104 [1] : vector<17x17xf32> to vector<17xf32>
    %318 = vector.shape_cast %317 : vector<17xf32> to vector<17x1xf32>
    %319 = vector.broadcast %318 : vector<17x1xf32> to vector<17x17xf32>
    %320 = arith.subf %316, %319 : vector<17x17xf32>
    %321 = math.exp %320 : vector<17x17xf32>
    %cst_105 = arith.constant dense<0.000000e+00> : vector<17xf32>
    %322 = vector.multi_reduction <add>, %321, %cst_105 [1] : vector<17x17xf32> to vector<17xf32>
    %323 = vector.shape_cast %322 : vector<17xf32> to vector<17x1xf32>
    %324 = tpu.reciprocal %323 {approx = true} : vector<17x1xf32> -> vector<17x1xf32>
    %325 = vector.broadcast %324 : vector<17x1xf32> to vector<17x17xf32>
    %326 = arith.mulf %321, %325 : vector<17x17xf32>
    %327 = arith.truncf %326 : vector<17x17xf32> to vector<17x17xbf16>
    %cst_106 = arith.constant dense<0.000000e+00> : vector<17x8xf32>
    %328 = tpu.matmul %327, %315, %cst_106 {dimension_numbers = #tpu.dot_dimension_numbers<[1], [0], [0], [1], [0, 0, 1, 1], [], []>} : vector<17x17xbf16>, vector<17x8xbf16>, vector<17x8xf32> -> vector<17x8xf32>
    %329 = vector.extract_strided_slice %309 {offsets = [0, 8], sizes = [17, 8], strides = [1, 1]} : vector<17x96xf32> to vector<17x8xf32>
    %330 = arith.truncf %329 : vector<17x8xf32> to vector<17x8xbf16>
    %331 = vector.extract_strided_slice %309 {offsets = [0, 40], sizes = [17, 8], strides = [1, 1]} : vector<17x96xf32> to vector<17x8xf32>
    %332 = arith.truncf %331 : vector<17x8xf32> to vector<17x8xbf16>
    %333 = vector.extract_strided_slice %309 {offsets = [0, 72], sizes = [17, 8], strides = [1, 1]} : vector<17x96xf32> to vector<17x8xf32>
    %334 = arith.truncf %333 : vector<17x8xf32> to vector<17x8xbf16>
    %cst_107 = arith.constant dense<0.000000e+00> : vector<17x17xf32>
    %335 = tpu.matmul %330, %332, %cst_107 {dimension_numbers = #tpu.dot_dimension_numbers<[1], [1], [0], [0], [0, 0, 1, 0], [], []>} : vector<17x8xbf16>, vector<17x8xbf16>, vector<17x17xf32> -> vector<17x17xf32>
    %cst_108 = arith.constant dense<0xFF800000> : vector<17xf32>
    %336 = vector.multi_reduction <maximumf>, %335, %cst_108 [1] : vector<17x17xf32> to vector<17xf32>
    %337 = vector.shape_cast %336 : vector<17xf32> to vector<17x1xf32>
    %338 = vector.broadcast %337 : vector<17x1xf32> to vector<17x17xf32>
    %339 = arith.subf %335, %338 : vector<17x17xf32>
    %340 = math.exp %339 : vector<17x17xf32>
    %cst_109 = arith.constant dense<0.000000e+00> : vector<17xf32>
    %341 = vector.multi_reduction <add>, %340, %cst_109 [1] : vector<17x17xf32> to vector<17xf32>
    %342 = vector.shape_cast %341 : vector<17xf32> to vector<17x1xf32>
    %343 = tpu.reciprocal %342 {approx = true} : vector<17x1xf32> -> vector<17x1xf32>
    %344 = vector.broadcast %343 : vector<17x1xf32> to vector<17x17xf32>
    %345 = arith.mulf %340, %344 : vector<17x17xf32>
    %346 = arith.truncf %345 : vector<17x17xf32> to vector<17x17xbf16>
    %cst_110 = arith.constant dense<0.000000e+00> : vector<17x8xf32>
    %347 = tpu.matmul %346, %334, %cst_110 {dimension_numbers = #tpu.dot_dimension_numbers<[1], [0], [0], [1], [0, 0, 1, 1], [], []>} : vector<17x17xbf16>, vector<17x8xbf16>, vector<17x8xf32> -> vector<17x8xf32>
    %348 = vector.extract_strided_slice %309 {offsets = [0, 16], sizes = [17, 8], strides = [1, 1]} : vector<17x96xf32> to vector<17x8xf32>
    %349 = arith.truncf %348 : vector<17x8xf32> to vector<17x8xbf16>
    %350 = vector.extract_strided_slice %309 {offsets = [0, 48], sizes = [17, 8], strides = [1, 1]} : vector<17x96xf32> to vector<17x8xf32>
    %351 = arith.truncf %350 : vector<17x8xf32> to vector<17x8xbf16>
    %352 = vector.extract_strided_slice %309 {offsets = [0, 80], sizes = [17, 8], strides = [1, 1]} : vector<17x96xf32> to vector<17x8xf32>
    %353 = arith.truncf %352 : vector<17x8xf32> to vector<17x8xbf16>
    %cst_111 = arith.constant dense<0.000000e+00> : vector<17x17xf32>
    %354 = tpu.matmul %349, %351, %cst_111 {dimension_numbers = #tpu.dot_dimension_numbers<[1], [1], [0], [0], [0, 0, 1, 0], [], []>} : vector<17x8xbf16>, vector<17x8xbf16>, vector<17x17xf32> -> vector<17x17xf32>
    %cst_112 = arith.constant dense<0xFF800000> : vector<17xf32>
    %355 = vector.multi_reduction <maximumf>, %354, %cst_112 [1] : vector<17x17xf32> to vector<17xf32>
    %356 = vector.shape_cast %355 : vector<17xf32> to vector<17x1xf32>
    %357 = vector.broadcast %356 : vector<17x1xf32> to vector<17x17xf32>
    %358 = arith.subf %354, %357 : vector<17x17xf32>
    %359 = math.exp %358 : vector<17x17xf32>
    %cst_113 = arith.constant dense<0.000000e+00> : vector<17xf32>
    %360 = vector.multi_reduction <add>, %359, %cst_113 [1] : vector<17x17xf32> to vector<17xf32>
    %361 = vector.shape_cast %360 : vector<17xf32> to vector<17x1xf32>
    %362 = tpu.reciprocal %361 {approx = true} : vector<17x1xf32> -> vector<17x1xf32>
    %363 = vector.broadcast %362 : vector<17x1xf32> to vector<17x17xf32>
    %364 = arith.mulf %359, %363 : vector<17x17xf32>
    %365 = arith.truncf %364 : vector<17x17xf32> to vector<17x17xbf16>
    %cst_114 = arith.constant dense<0.000000e+00> : vector<17x8xf32>
    %366 = tpu.matmul %365, %353, %cst_114 {dimension_numbers = #tpu.dot_dimension_numbers<[1], [0], [0], [1], [0, 0, 1, 1], [], []>} : vector<17x17xbf16>, vector<17x8xbf16>, vector<17x8xf32> -> vector<17x8xf32>
    %367 = vector.extract_strided_slice %309 {offsets = [0, 24], sizes = [17, 8], strides = [1, 1]} : vector<17x96xf32> to vector<17x8xf32>
    %368 = arith.truncf %367 : vector<17x8xf32> to vector<17x8xbf16>
    %369 = vector.extract_strided_slice %309 {offsets = [0, 56], sizes = [17, 8], strides = [1, 1]} : vector<17x96xf32> to vector<17x8xf32>
    %370 = arith.truncf %369 : vector<17x8xf32> to vector<17x8xbf16>
    %371 = vector.extract_strided_slice %309 {offsets = [0, 88], sizes = [17, 8], strides = [1, 1]} : vector<17x96xf32> to vector<17x8xf32>
    %372 = arith.truncf %371 : vector<17x8xf32> to vector<17x8xbf16>
    %cst_115 = arith.constant dense<0.000000e+00> : vector<17x17xf32>
    %373 = tpu.matmul %368, %370, %cst_115 {dimension_numbers = #tpu.dot_dimension_numbers<[1], [1], [0], [0], [0, 0, 1, 0], [], []>} : vector<17x8xbf16>, vector<17x8xbf16>, vector<17x17xf32> -> vector<17x17xf32>
    %cst_116 = arith.constant dense<0xFF800000> : vector<17xf32>
    %374 = vector.multi_reduction <maximumf>, %373, %cst_116 [1] : vector<17x17xf32> to vector<17xf32>
    %375 = vector.shape_cast %374 : vector<17xf32> to vector<17x1xf32>
    %376 = vector.broadcast %375 : vector<17x1xf32> to vector<17x17xf32>
    %377 = arith.subf %373, %376 : vector<17x17xf32>
    %378 = math.exp %377 : vector<17x17xf32>
    %cst_117 = arith.constant dense<0.000000e+00> : vector<17xf32>
    %379 = vector.multi_reduction <add>, %378, %cst_117 [1] : vector<17x17xf32> to vector<17xf32>
    %380 = vector.shape_cast %379 : vector<17xf32> to vector<17x1xf32>
    %381 = tpu.reciprocal %380 {approx = true} : vector<17x1xf32> -> vector<17x1xf32>
    %382 = vector.broadcast %381 : vector<17x1xf32> to vector<17x17xf32>
    %383 = arith.mulf %378, %382 : vector<17x17xf32>
    %384 = arith.truncf %383 : vector<17x17xf32> to vector<17x17xbf16>
    %cst_118 = arith.constant dense<0.000000e+00> : vector<17x8xf32>
    %385 = tpu.matmul %384, %372, %cst_118 {dimension_numbers = #tpu.dot_dimension_numbers<[1], [0], [0], [1], [0, 0, 1, 1], [], []>} : vector<17x17xbf16>, vector<17x8xbf16>, vector<17x8xf32> -> vector<17x8xf32>
    %386 = tpu.concatenate %328, %347, %366, %385 in 1 : vector<17x8xf32>, vector<17x8xf32>, vector<17x8xf32>, vector<17x8xf32> -> vector<17x32xf32>
    %387 = arith.truncf %386 : vector<17x32xf32> to vector<17x32xbf16>
    %c1_119 = arith.constant 1 : index
    %c0_120 = arith.constant 0 : index
    %c0_121 = arith.constant 0 : index
    %388 = vector.load %arg11[%c1_119, %c0_120, %c0_121] : memref<2x32x32xbf16, #tpu.memory_space<vmem>>, vector<1x32x32xbf16>
    %389 = vector.shape_cast %388 : vector<1x32x32xbf16> to vector<32x32xbf16>
    %cst_122 = arith.constant dense<0.000000e+00> : vector<17x32xf32>
    %390 = tpu.matmul %387, %389, %cst_122 {dimension_numbers = #tpu.dot_dimension_numbers<[1], [0], [0], [1], [0, 0, 1, 1], [], []>} : vector<17x32xbf16>, vector<32x32xbf16>, vector<17x32xf32> -> vector<17x32xf32>
    %391 = arith.addf %245, %390 : vector<17x32xf32>
    %c1_123 = arith.constant 1 : index
    %c0_124 = arith.constant 0 : index
    %c0_125 = arith.constant 0 : index
    %392 = vector.load %arg12[%c1_123, %c0_124, %c0_125] : memref<2x1x32xf32, #tpu.memory_space<vmem>>, vector<1x1x32xf32>
    %393 = vector.shape_cast %392 : vector<1x1x32xf32> to vector<1x32xf32>
    %394 = vector.broadcast %393 : vector<1x32xf32> to vector<17x32xf32>
    %395 = arith.addf %391, %394 : vector<17x32xf32>
    %cst_126 = arith.constant dense<0.000000e+00> : vector<17xf32>
    %396 = vector.multi_reduction <add>, %395, %cst_126 [1] : vector<17x32xf32> to vector<17xf32>
    %397 = vector.shape_cast %396 : vector<17xf32> to vector<17x1xf32>
    %cst_127 = arith.constant 3.200000e+01 : f32
    %398 = vector.broadcast %cst_127 : f32 to vector<17x1xf32>
    %399 = arith.divf %397, %398 : vector<17x1xf32>
    %400 = vector.broadcast %399 : vector<17x1xf32> to vector<17x32xf32>
    %401 = arith.subf %395, %400 : vector<17x32xf32>
    %402 = arith.mulf %401, %401 : vector<17x32xf32>
    %cst_128 = arith.constant dense<0.000000e+00> : vector<17xf32>
    %403 = vector.multi_reduction <add>, %402, %cst_128 [1] : vector<17x32xf32> to vector<17xf32>
    %404 = vector.shape_cast %403 : vector<17xf32> to vector<17x1xf32>
    %cst_129 = arith.constant 3.200000e+01 : f32
    %405 = vector.broadcast %cst_129 : f32 to vector<17x1xf32>
    %406 = arith.divf %404, %405 : vector<17x1xf32>
    %407 = vector.broadcast %399 : vector<17x1xf32> to vector<17x32xf32>
    %408 = arith.subf %395, %407 : vector<17x32xf32>
    %cst_130 = arith.constant 9.99999974E-6 : f32
    %409 = vector.broadcast %cst_130 : f32 to vector<17x1xf32>
    %410 = arith.addf %406, %409 : vector<17x1xf32>
    %411 = math.rsqrt %410 : vector<17x1xf32>
    %412 = vector.broadcast %411 : vector<17x1xf32> to vector<17x32xf32>
    %413 = arith.mulf %408, %412 : vector<17x32xf32>
    %414 = vector.extract_strided_slice %247 {offsets = [2, 0], sizes = [1, 32], strides = [1, 1]} : vector<4x32xf32> to vector<1x32xf32>
    %415 = vector.broadcast %414 : vector<1x32xf32> to vector<17x32xf32>
    %416 = arith.mulf %413, %415 : vector<17x32xf32>
    %417 = vector.extract_strided_slice %247 {offsets = [3, 0], sizes = [1, 32], strides = [1, 1]} : vector<4x32xf32> to vector<1x32xf32>
    %418 = vector.broadcast %417 : vector<1x32xf32> to vector<17x32xf32>
    %419 = arith.addf %416, %418 : vector<17x32xf32>
    %420 = arith.truncf %419 : vector<17x32xf32> to vector<17x32xbf16>
    %c1_131 = arith.constant 1 : index
    %c0_132 = arith.constant 0 : index
    %c0_133 = arith.constant 0 : index
    %421 = vector.load %arg13[%c1_131, %c0_132, %c0_133] : memref<2x32x128xbf16, #tpu.memory_space<vmem>>, vector<1x32x128xbf16>
    %422 = vector.shape_cast %421 : vector<1x32x128xbf16> to vector<32x128xbf16>
    %cst_134 = arith.constant dense<0.000000e+00> : vector<17x128xf32>
    %423 = tpu.matmul %420, %422, %cst_134 {dimension_numbers = #tpu.dot_dimension_numbers<[1], [0], [0], [1], [0, 0, 1, 1], [], []>} : vector<17x32xbf16>, vector<32x128xbf16>, vector<17x128xf32> -> vector<17x128xf32>
    %c1_135 = arith.constant 1 : index
    %c0_136 = arith.constant 0 : index
    %c0_137 = arith.constant 0 : index
    %424 = vector.load %arg14[%c1_135, %c0_136, %c0_137] : memref<2x1x128xf32, #tpu.memory_space<vmem>>, vector<1x1x128xf32>
    %425 = vector.shape_cast %424 : vector<1x1x128xf32> to vector<1x128xf32>
    %426 = vector.broadcast %425 : vector<1x128xf32> to vector<17x128xf32>
    %427 = arith.addf %423, %426 : vector<17x128xf32>
    %cst_138 = arith.constant 5.000000e-01 : f32
    %428 = vector.broadcast %cst_138 : f32 to vector<17x128xf32>
    %429 = arith.mulf %428, %427 : vector<17x128xf32>
    %cst_139 = arith.constant 4.471500e-02 : f32
    %430 = vector.broadcast %cst_139 : f32 to vector<17x128xf32>
    %431 = arith.mulf %430, %427 : vector<17x128xf32>
    %432 = arith.mulf %431, %427 : vector<17x128xf32>
    %433 = arith.mulf %432, %427 : vector<17x128xf32>
    %434 = arith.addf %427, %433 : vector<17x128xf32>
    %cst_140 = arith.constant 0.797884583 : f32
    %435 = vector.broadcast %cst_140 : f32 to vector<17x128xf32>
    %436 = arith.mulf %435, %434 : vector<17x128xf32>
    %437 = math.tanh %436 : vector<17x128xf32>
    %cst_141 = arith.constant 1.000000e+00 : f32
    %438 = vector.broadcast %cst_141 : f32 to vector<17x128xf32>
    %439 = arith.addf %438, %437 : vector<17x128xf32>
    %440 = arith.mulf %429, %439 : vector<17x128xf32>
    %441 = arith.truncf %440 : vector<17x128xf32> to vector<17x128xbf16>
    %c1_142 = arith.constant 1 : index
    %c0_143 = arith.constant 0 : index
    %c0_144 = arith.constant 0 : index
    %442 = vector.load %arg15[%c1_142, %c0_143, %c0_144] : memref<2x128x32xbf16, #tpu.memory_space<vmem>>, vector<1x128x32xbf16>
    %443 = vector.shape_cast %442 : vector<1x128x32xbf16> to vector<128x32xbf16>
    %cst_145 = arith.constant dense<0.000000e+00> : vector<17x32xf32>
    %444 = tpu.matmul %441, %443, %cst_145 {dimension_numbers = #tpu.dot_dimension_numbers<[1], [0], [0], [1], [0, 0, 1, 1], [], []>} : vector<17x128xbf16>, vector<128x32xbf16>, vector<17x32xf32> -> vector<17x32xf32>
    %445 = arith.addf %395, %444 : vector<17x32xf32>
    %c1_146 = arith.constant 1 : index
    %c0_147 = arith.constant 0 : index
    %c0_148 = arith.constant 0 : index
    %446 = vector.load %arg16[%c1_146, %c0_147, %c0_148] : memref<2x1x32xf32, #tpu.memory_space<vmem>>, vector<1x1x32xf32>
    %447 = vector.shape_cast %446 : vector<1x1x32xf32> to vector<1x32xf32>
    %448 = vector.broadcast %447 : vector<1x32xf32> to vector<17x32xf32>
    %449 = arith.addf %445, %448 : vector<17x32xf32>
    %c0_149 = arith.constant 0 : index
    %c0_150 = arith.constant 0 : index
    %c0_151 = arith.constant 0 : index
    %450 = vector.load %arg17[%c0_149, %c0_150, %c0_151] : memref<1x17x32xf32, #tpu.memory_space<vmem>>, vector<1x17x32xf32>
    %451 = vector.shape_cast %450 : vector<1x17x32xf32> to vector<17x32xf32>
    %452 = vector.shape_cast %449 : vector<17x32xf32> to vector<1x17x32xf32>
    tpu.vector_store %arg17[%c0_149, %c0_150, %c0_151], %452 {strides = array<i32>} : memref<1x17x32xf32, #tpu.memory_space<vmem>>, vector<1x17x32xf32>,
    return
  }
  func.func @transform_0(%arg0: i32) -> (i32, i32, i32) {
    %c0_i32 = arith.constant 0 : i32
    %c0_i32_0 = arith.constant 0 : i32
    %c0_i32_1 = arith.constant 0 : i32
    return %arg0, %c0_i32, %c0_i32_0 : i32, i32, i32
  }
  func.func @transform_1(%arg0: i32) -> (i32, i32) {
    %c0_i32 = arith.constant 0 : i32
    %c0_i32_0 = arith.constant 0 : i32
    %c0_i32_1 = arith.constant 0 : i32
    return %c0_i32, %c0_i32_0 : i32, i32
  }
  func.func @transform_2(%arg0: i32) -> (i32, i32) {
    %c0_i32 = arith.constant 0 : i32
    %c0_i32_0 = arith.constant 0 : i32
    %c0_i32_1 = arith.constant 0 : i32
    return %c0_i32, %c0_i32_0 : i32, i32
  }
  func.func @transform_3(%arg0: i32) -> (i32, i32) {
    %c0_i32 = arith.constant 0 : i32
    %c0_i32_0 = arith.constant 0 : i32
    %c0_i32_1 = arith.constant 0 : i32
    return %c0_i32, %c0_i32_0 : i32, i32
  }
  func.func @transform_4(%arg0: i32) -> (i32, i32) {
    %c0_i32 = arith.constant 0 : i32
    %c0_i32_0 = arith.constant 0 : i32
    %c0_i32_1 = arith.constant 0 : i32
    return %c0_i32, %c0_i32_0 : i32, i32
  }
  func.func @transform_5(%arg0: i32) -> (i32, i32, i32) {
    %c0_i32 = arith.constant 0 : i32
    %c0_i32_0 = arith.constant 0 : i32
    %c0_i32_1 = arith.constant 0 : i32
    %c0_i32_2 = arith.constant 0 : i32
    return %c0_i32, %c0_i32_0, %c0_i32_1 : i32, i32, i32
  }
  func.func @transform_6(%arg0: i32) -> (i32, i32, i32) {
    %c0_i32 = arith.constant 0 : i32
    %c0_i32_0 = arith.constant 0 : i32
    %c0_i32_1 = arith.constant 0 : i32
    %c0_i32_2 = arith.constant 0 : i32
    return %c0_i32, %c0_i32_0, %c0_i32_1 : i32, i32, i32
  }
  func.func @transform_7(%arg0: i32) -> (i32, i32, i32) {
    %c0_i32 = arith.constant 0 : i32
    %c0_i32_0 = arith.constant 0 : i32
    %c0_i32_1 = arith.constant 0 : i32
    %c0_i32_2 = arith.constant 0 : i32
    return %c0_i32, %c0_i32_0, %c0_i32_1 : i32, i32, i32
  }
  func.func @transform_8(%arg0: i32) -> (i32, i32, i32) {
    %c0_i32 = arith.constant 0 : i32
    %c0_i32_0 = arith.constant 0 : i32
    %c0_i32_1 = arith.constant 0 : i32
    %c0_i32_2 = arith.constant 0 : i32
    return %c0_i32, %c0_i32_0, %c0_i32_1 : i32, i32, i32
  }
  func.func @transform_9(%arg0: i32) -> (i32, i32, i32) {
    %c0_i32 = arith.constant 0 : i32
    %c0_i32_0 = arith.constant 0 : i32
    %c0_i32_1 = arith.constant 0 : i32
    %c0_i32_2 = arith.constant 0 : i32
    return %c0_i32, %c0_i32_0, %c0_i32_1 : i32, i32, i32
  }
  func.func @transform_10(%arg0: i32) -> (i32, i32, i32) {
    %c0_i32 = arith.constant 0 : i32
    %c0_i32_0 = arith.constant 0 : i32
    %c0_i32_1 = arith.constant 0 : i32
    %c0_i32_2 = arith.constant 0 : i32
    return %c0_i32, %c0_i32_0, %c0_i32_1 : i32, i32, i32
  }
  func.func @transform_11(%arg0: i32) -> (i32, i32, i32) {
    %c0_i32 = arith.constant 0 : i32
    %c0_i32_0 = arith.constant 0 : i32
    %c0_i32_1 = arith.constant 0 : i32
    %c0_i32_2 = arith.constant 0 : i32
    return %c0_i32, %c0_i32_0, %c0_i32_1 : i32, i32, i32
  }
  func.func @transform_12(%arg0: i32) -> (i32, i32, i32) {
    %c0_i32 = arith.constant 0 : i32
    %c0_i32_0 = arith.constant 0 : i32
    %c0_i32_1 = arith.constant 0 : i32
    %c0_i32_2 = arith.constant 0 : i32
    return %c0_i32, %c0_i32_0, %c0_i32_1 : i32, i32, i32
  }
  func.func @transform_13(%arg0: i32) -> (i32, i32, i32) {
    %c0_i32 = arith.constant 0 : i32
    %c0_i32_0 = arith.constant 0 : i32
    %c0_i32_1 = arith.constant 0 : i32
    %c0_i32_2 = arith.constant 0 : i32
    return %c0_i32, %c0_i32_0, %c0_i32_1 : i32, i32, i32
  }
  func.func @transform_14(%arg0: i32) -> (i32, i32, i32) {
    %c0_i32 = arith.constant 0 : i32
    %c0_i32_0 = arith.constant 0 : i32
    %c0_i32_1 = arith.constant 0 : i32
    %c0_i32_2 = arith.constant 0 : i32
    return %c0_i32, %c0_i32_0, %c0_i32_1 : i32, i32, i32
  }
  func.func @transform_15(%arg0: i32) -> (i32, i32, i32) {
    %c0_i32 = arith.constant 0 : i32
    %c0_i32_0 = arith.constant 0 : i32
    %c0_i32_1 = arith.constant 0 : i32
    %c0_i32_2 = arith.constant 0 : i32
    return %c0_i32, %c0_i32_0, %c0_i32_1 : i32, i32, i32
  }
  func.func @transform_16(%arg0: i32) -> (i32, i32, i32) {
    %c0_i32 = arith.constant 0 : i32
    %c0_i32_0 = arith.constant 0 : i32
    %c0_i32_1 = arith.constant 0 : i32
    return %arg0, %c0_i32, %c0_i32_0 : i32, i32, i32
  }
}

</mosaic_0001>

<llo_original>
// kernel: vision_transformer_forward.1
$region0: #{vision_transformer_forward.1}
  #allocation0 [shape = 'u32[]', space=smem, size = 0x4, offset = 0x4, fixed_abs, tag = 'smem constant byte address 0x4 - core index']
  #allocation1 [shape = 'u32[144,128]{1,0:T(1,128)}', space=vmem, size = 0x12000, scoped, tag = 'internal scratch']
  %s0 = inlined_call_operand.vmem [shape: f32[2,16,64], index: 0, kind: input, shape index: {}]
  %s1 = inlined_call_operand.vmem [shape: f32[1,32], index: 1, kind: input, shape index: {}]
  %s2 = inlined_call_operand.vmem [shape: bf16[64,32], index: 2, kind: input, shape index: {}]
  %s3 = inlined_call_operand.vmem [shape: f32[1,32], index: 3, kind: input, shape index: {}]
  %s4 = inlined_call_operand.vmem [shape: f32[2,32], index: 4, kind: input, shape index: {}]
  %s5 = inlined_call_operand.vmem [shape: f32[2,16,1], index: 5, kind: input, shape index: {}]
  %s6 = inlined_call_operand.vmem [shape: f32[2,4,32], index: 6, kind: input, shape index: {}]
  %s7 = inlined_call_operand.vmem [shape: bf16[2,288,96], index: 7, kind: input, shape index: {}]
  %s8 = inlined_call_operand.vmem [shape: f32[2,1,96], index: 8, kind: input, shape index: {}]
  %s9 = inlined_call_operand.vmem [shape: bf16[2,32,96], index: 9, kind: input, shape index: {}]
  %s10 = inlined_call_operand.vmem [shape: bf16[2,32,32], index: 10, kind: input, shape index: {}]
  %s11 = inlined_call_operand.vmem [shape: f32[2,1,32], index: 11, kind: input, shape index: {}]
  %s12 = inlined_call_operand.vmem [shape: bf16[2,32,128], index: 12, kind: input, shape index: {}]
  %s13 = inlined_call_operand.vmem [shape: f32[2,1,128], index: 13, kind: input, shape index: {}]
  %s14 = inlined_call_operand.vmem [shape: bf16[2,128,32], index: 14, kind: input, shape index: {}]
  %s15 = inlined_call_operand.vmem [shape: f32[2,1,32], index: 15, kind: input, shape index: {}]
  %s16 = inlined_call_operand.vmem [shape: f32[2,17,32], index: 16, kind: output, shape index: {}]
  %s17 = sld [smem:[#allocation0]]
  $region97: #{vision_transformer_forward.1} parent=0
    _
  %s19 = ssub.s32 1, %s17
  %s20 = scalar_select 0, %s19, %s17
  loop: start=0, step=1, limit=4
  $region2: #{vision_transformer_forward.1} parent=0 // loop_pre_header
    _
  $region3: #{vision_transformer_forward.1} parent=0 // loop_header
    %s22 = sphi 0, %s26
    %p23 = scmp.ge.s32.totalorder %s22, 4
    %s32 = sphi 0, %s34
    %s35 = sphi 0, %s32
    %s36 = sphi 0, %s35
    %s52 = sphi 0, %s36
    %s56 = sphi 0, %s56
    %s58 = sphi 0, %s56
    %s59 = sphi 0, %s58
    %s73 = sphi 0, %s59
    %s77 = sphi 0, %s77
    %s79 = sphi 0, %s77
    %s80 = sphi 0, %s79
    %s94 = sphi 0, %s80
    %s98 = sphi 0, %s98
    %s100 = sphi 0, %s98
    %s101 = sphi 0, %s100
    %s115 = sphi 0, %s101
    %s119 = sphi 0, %s119
    %s121 = sphi 0, %s119
    %s122 = sphi 0, %s121
    %s136 = sphi 0, %s122
    %s140 = sphi 0, %s140
    %s142 = sphi 0, %s140
    %s143 = sphi 0, %s142
    %s157 = sphi 0, %s143
    %s161 = sphi 0, %s161
    %s163 = sphi 0, %s161
    %s164 = sphi 0, %s163
    %s178 = sphi 0, %s164
    %s182 = sphi 0, %s182
    %s184 = sphi 0, %s182
    %s185 = sphi 0, %s184
    %s199 = sphi 0, %s185
    %s203 = sphi 0, %s203
    %s205 = sphi 0, %s203
    %s206 = sphi 0, %s205
    %s220 = sphi 0, %s206
    %s224 = sphi 0, %s224
    %s226 = sphi 0, %s224
    %s227 = sphi 0, %s226
    %s241 = sphi 0, %s227
    %s245 = sphi 0, %s245
    %s247 = sphi 0, %s245
    %s248 = sphi 0, %s247
    %s262 = sphi 0, %s248
    %s266 = sphi 0, %s266
    %s268 = sphi 0, %s266
    %s269 = sphi 0, %s268
    %s283 = sphi 0, %s269
    %s287 = sphi 0, %s287
    %s289 = sphi 0, %s287
    %s290 = sphi 0, %s289
    %s304 = sphi 0, %s290
    %s308 = sphi 0, %s308
    %s310 = sphi 0, %s308
    %s311 = sphi 0, %s310
    %s325 = sphi 0, %s311
    %s329 = sphi 0, %s329
    %s331 = sphi 0, %s329
    %s332 = sphi 0, %s331
    %s346 = sphi 0, %s332
    %s350 = sphi 0, %s350
    %s352 = sphi 0, %s350
    %s353 = sphi 0, %s352
    %s367 = sphi 0, %s353
    %s373 = sphi 0, %s375
    %s376 = sphi 0, %s373
    %s377 = sphi 0, %s376
    %s393 = sphi 0, %s377
  $region4: #{vision_transformer_forward.1} parent=0 // loop_header_branch
    %25 = sbr.rel (%p23) target = $region8
  $region5: #{vision_transformer_forward.1} parent=0 // loop_body
    %s27 = ssub.s32 %s22, 1
    %s28 = ssub.s32 %s22, 2
    %s29 = sadd.s32 %s22, 1
    %s30 = ssub.s32 %s22, %s29
    %p31 = scmp.eq.s32.totalorder %s30, 0
    %s33 = sadd.s32 %s32, 1
    %s34 = scalar_select %p31, %s32, %s33
    %p37 = pneg %p31
    %p38 = scmp.eq.s32.totalorder %s22, 1
    %p39 = por %p37, %p38
    %p40 = scmp.ne.s32.totalorder %s32, %s35
    %p41 = scmp.eq.s32.totalorder %s22, 0
    %p42 = por %p40, %p41
    %p43 = scmp.ne.s32.totalorder %s32, %s35
    %p44 = scmp.eq.s32.totalorder %s27, 1
    %p45 = por %p43, %p44
    %p46 = scmp.ne.s32.totalorder %s35, %s36
    %p47 = scmp.eq.s32.totalorder %s27, 0
    %p48 = por %p46, %p47
    %p49 = scmp.ne.s32.totalorder %s35, %s36
    %p50 = scmp.eq.s32.totalorder %s28, 1
    %p51 = por %p49, %p50
    %p53 = scmp.ne.s32.totalorder %s36, %s52
    %p54 = scmp.eq.s32.totalorder %s28, 0
    %p55 = por %p53, %p54
    %s57 = sadd.s32 %s56, 1
    %p60 = scmp.eq.s32.totalorder %s22, 1
    %p61 = scmp.ne.s32.totalorder %s56, %s58
    %p62 = scmp.eq.s32.totalorder %s22, 0
    %p63 = por %p61, %p62
    %p64 = scmp.ne.s32.totalorder %s56, %s58
    %p65 = scmp.eq.s32.totalorder %s27, 1
    %p66 = por %p64, %p65
    %p67 = scmp.ne.s32.totalorder %s58, %s59
    %p68 = scmp.eq.s32.totalorder %s27, 0
    %p69 = por %p67, %p68
    %p70 = scmp.ne.s32.totalorder %s58, %s59
    %p71 = scmp.eq.s32.totalorder %s28, 1
    %p72 = por %p70, %p71
    %p74 = scmp.ne.s32.totalorder %s59, %s73
    %p75 = scmp.eq.s32.totalorder %s28, 0
    %p76 = por %p74, %p75
    %s78 = sadd.s32 %s77, 1
    %p81 = scmp.eq.s32.totalorder %s22, 1
    %p82 = scmp.ne.s32.totalorder %s77, %s79
    %p83 = scmp.eq.s32.totalorder %s22, 0
    %p84 = por %p82, %p83
    %p85 = scmp.ne.s32.totalorder %s77, %s79
    %p86 = scmp.eq.s32.totalorder %s27, 1
    %p87 = por %p85, %p86
    %p88 = scmp.ne.s32.totalorder %s79, %s80
    %p89 = scmp.eq.s32.totalorder %s27, 0
    %p90 = por %p88, %p89
    %p91 = scmp.ne.s32.totalorder %s79, %s80
    %p92 = scmp.eq.s32.totalorder %s28, 1
    %p93 = por %p91, %p92
    %p95 = scmp.ne.s32.totalorder %s80, %s94
    %p96 = scmp.eq.s32.totalorder %s28, 0
    %p97 = por %p95, %p96
    %s99 = sadd.s32 %s98, 1
    %p102 = scmp.eq.s32.totalorder %s22, 1
    %p103 = scmp.ne.s32.totalorder %s98, %s100
    %p104 = scmp.eq.s32.totalorder %s22, 0
    %p105 = por %p103, %p104
    %p106 = scmp.ne.s32.totalorder %s98, %s100
    %p107 = scmp.eq.s32.totalorder %s27, 1
    %p108 = por %p106, %p107
    %p109 = scmp.ne.s32.totalorder %s100, %s101
    %p110 = scmp.eq.s32.totalorder %s27, 0
    %p111 = por %p109, %p110
    %p112 = scmp.ne.s32.totalorder %s100, %s101
    %p113 = scmp.eq.s32.totalorder %s28, 1
    %p114 = por %p112, %p113
    %p116 = scmp.ne.s32.totalorder %s101, %s115
    %p117 = scmp.eq.s32.totalorder %s28, 0
    %p118 = por %p116, %p117
    %s120 = sadd.s32 %s119, 1
    %p123 = scmp.eq.s32.totalorder %s22, 1
    %p124 = scmp.ne.s32.totalorder %s119, %s121
    %p125 = scmp.eq.s32.totalorder %s22, 0
    %p126 = por %p124, %p125
    %p127 = scmp.ne.s32.totalorder %s119, %s121
    %p128 = scmp.eq.s32.totalorder %s27, 1
    %p129 = por %p127, %p128
    %p130 = scmp.ne.s32.totalorder %s121, %s122
    %p131 = scmp.eq.s32.totalorder %s27, 0
    %p132 = por %p130, %p131
    %p133 = scmp.ne.s32.totalorder %s121, %s122
    %p134 = scmp.eq.s32.totalorder %s28, 1
    %p135 = por %p133, %p134
    %p137 = scmp.ne.s32.totalorder %s122, %s136
    %p138 = scmp.eq.s32.totalorder %s28, 0
    %p139 = por %p137, %p138
    %s141 = sadd.s32 %s140, 1
    %p144 = scmp.eq.s32.totalorder %s22, 1
    %p145 = scmp.ne.s32.totalorder %s140, %s142
    %p146 = scmp.eq.s32.totalorder %s22, 0
    %p147 = por %p145, %p146
    %p148 = scmp.ne.s32.totalorder %s140, %s142
    %p149 = scmp.eq.s32.totalorder %s27, 1
    %p150 = por %p148, %p149
    %p151 = scmp.ne.s32.totalorder %s142, %s143
    %p152 = scmp.eq.s32.totalorder %s27, 0
    %p153 = por %p151, %p152
    %p154 = scmp.ne.s32.totalorder %s142, %s143
    %p155 = scmp.eq.s32.totalorder %s28, 1
    %p156 = por %p154, %p155
    %p158 = scmp.ne.s32.totalorder %s143, %s157
    %p159 = scmp.eq.s32.totalorder %s28, 0
    %p160 = por %p158, %p159
    %s162 = sadd.s32 %s161, 1
    %p165 = scmp.eq.s32.totalorder %s22, 1
    %p166 = scmp.ne.s32.totalorder %s161, %s163
    %p167 = scmp.eq.s32.totalorder %s22, 0
    %p168 = por %p166, %p167
    %p169 = scmp.ne.s32.totalorder %s161, %s163
    %p170 = scmp.eq.s32.totalorder %s27, 1
    %p171 = por %p169, %p170
    %p172 = scmp.ne.s32.totalorder %s163, %s164
    %p173 = scmp.eq.s32.totalorder %s27, 0
    %p174 = por %p172, %p173
    %p175 = scmp.ne.s32.totalorder %s163, %s164
    %p176 = scmp.eq.s32.totalorder %s28, 1
    %p177 = por %p175, %p176
    %p179 = scmp.ne.s32.totalorder %s164, %s178
    %p180 = scmp.eq.s32.totalorder %s28, 0
    %p181 = por %p179, %p180
    %s183 = sadd.s32 %s182, 1
    %p186 = scmp.eq.s32.totalorder %s22, 1
    %p187 = scmp.ne.s32.totalorder %s182, %s184
    %p188 = scmp.eq.s32.totalorder %s22, 0
    %p189 = por %p187, %p188
    %p190 = scmp.ne.s32.totalorder %s182, %s184
    %p191 = scmp.eq.s32.totalorder %s27, 1
    %p192 = por %p190, %p191
    %p193 = scmp.ne.s32.totalorder %s184, %s185
    %p194 = scmp.eq.s32.totalorder %s27, 0
    %p195 = por %p193, %p194
    %p196 = scmp.ne.s32.totalorder %s184, %s185
    %p197 = scmp.eq.s32.totalorder %s28, 1
    %p198 = por %p196, %p197
    %p200 = scmp.ne.s32.totalorder %s185, %s199
    %p201 = scmp.eq.s32.totalorder %s28, 0
    %p202 = por %p200, %p201
    %s204 = sadd.s32 %s203, 1
    %p207 = scmp.eq.s32.totalorder %s22, 1
    %p208 = scmp.ne.s32.totalorder %s203, %s205
    %p209 = scmp.eq.s32.totalorder %s22, 0
    %p210 = por %p208, %p209
    %p211 = scmp.ne.s32.totalorder %s203, %s205
    %p212 = scmp.eq.s32.totalorder %s27, 1
    %p213 = por %p211, %p212
    %p214 = scmp.ne.s32.totalorder %s205, %s206
    %p215 = scmp.eq.s32.totalorder %s27, 0
    %p216 = por %p214, %p215
    %p217 = scmp.ne.s32.totalorder %s205, %s206
    %p218 = scmp.eq.s32.totalorder %s28, 1
    %p219 = por %p217, %p218
    %p221 = scmp.ne.s32.totalorder %s206, %s220
    %p222 = scmp.eq.s32.totalorder %s28, 0
    %p223 = por %p221, %p222
    %s225 = sadd.s32 %s224, 1
    %p228 = scmp.eq.s32.totalorder %s22, 1
    %p229 = scmp.ne.s32.totalorder %s224, %s226
    %p230 = scmp.eq.s32.totalorder %s22, 0
    %p231 = por %p229, %p230
    %p232 = scmp.ne.s32.totalorder %s224, %s226
    %p233 = scmp.eq.s32.totalorder %s27, 1
    %p234 = por %p232, %p233
    %p235 = scmp.ne.s32.totalorder %s226, %s227
    %p236 = scmp.eq.s32.totalorder %s27, 0
    %p237 = por %p235, %p236
    %p238 = scmp.ne.s32.totalorder %s226, %s227
    %p239 = scmp.eq.s32.totalorder %s28, 1
    %p240 = por %p238, %p239
    %p242 = scmp.ne.s32.totalorder %s227, %s241
    %p243 = scmp.eq.s32.totalorder %s28, 0
    %p244 = por %p242, %p243
    %s246 = sadd.s32 %s245, 1
    %p249 = scmp.eq.s32.totalorder %s22, 1
    %p250 = scmp.ne.s32.totalorder %s245, %s247
    %p251 = scmp.eq.s32.totalorder %s22, 0
    %p252 = por %p250, %p251
    %p253 = scmp.ne.s32.totalorder %s245, %s247
    %p254 = scmp.eq.s32.totalorder %s27, 1
    %p255 = por %p253, %p254
    %p256 = scmp.ne.s32.totalorder %s247, %s248
    %p257 = scmp.eq.s32.totalorder %s27, 0
    %p258 = por %p256, %p257
    %p259 = scmp.ne.s32.totalorder %s247, %s248
    %p260 = scmp.eq.s32.totalorder %s28, 1
    %p261 = por %p259, %p260
    %p263 = scmp.ne.s32.totalorder %s248, %s262
    %p264 = scmp.eq.s32.totalorder %s28, 0
    %p265 = por %p263, %p264
    %s267 = sadd.s32 %s266, 1
    %p270 = scmp.eq.s32.totalorder %s22, 1
    %p271 = scmp.ne.s32.totalorder %s266, %s268
    %p272 = scmp.eq.s32.totalorder %s22, 0
    %p273 = por %p271, %p272
    %p274 = scmp.ne.s32.totalorder %s266, %s268
    %p275 = scmp.eq.s32.totalorder %s27, 1
    %p276 = por %p274, %p275
    %p277 = scmp.ne.s32.totalorder %s268, %s269
    %p278 = scmp.eq.s32.totalorder %s27, 0
    %p279 = por %p277, %p278
    %p280 = scmp.ne.s32.totalorder %s268, %s269
    %p281 = scmp.eq.s32.totalorder %s28, 1
    %p282 = por %p280, %p281
    %p284 = scmp.ne.s32.totalorder %s269, %s283
    %p285 = scmp.eq.s32.totalorder %s28, 0
    %p286 = por %p284, %p285
    %s288 = sadd.s32 %s287, 1
    %p291 = scmp.eq.s32.totalorder %s22, 1
    %p292 = scmp.ne.s32.totalorder %s287, %s289
    %p293 = scmp.eq.s32.totalorder %s22, 0
    %p294 = por %p292, %p293
    %p295 = scmp.ne.s32.totalorder %s287, %s289
    %p296 = scmp.eq.s32.totalorder %s27, 1
    %p297 = por %p295, %p296
    %p298 = scmp.ne.s32.totalorder %s289, %s290
    %p299 = scmp.eq.s32.totalorder %s27, 0
    %p300 = por %p298, %p299
    %p301 = scmp.ne.s32.totalorder %s289, %s290
    %p302 = scmp.eq.s32.totalorder %s28, 1
    %p303 = por %p301, %p302
    %p305 = scmp.ne.s32.totalorder %s290, %s304
    %p306 = scmp.eq.s32.totalorder %s28, 0
    %p307 = por %p305, %p306
    %s309 = sadd.s32 %s308, 1
    %p312 = scmp.eq.s32.totalorder %s22, 1
    %p313 = scmp.ne.s32.totalorder %s308, %s310
    %p314 = scmp.eq.s32.totalorder %s22, 0
    %p315 = por %p313, %p314
    %p316 = scmp.ne.s32.totalorder %s308, %s310
    %p317 = scmp.eq.s32.totalorder %s27, 1
    %p318 = por %p316, %p317
    %p319 = scmp.ne.s32.totalorder %s310, %s311
    %p320 = scmp.eq.s32.totalorder %s27, 0
    %p321 = por %p319, %p320
    %p322 = scmp.ne.s32.totalorder %s310, %s311
    %p323 = scmp.eq.s32.totalorder %s28, 1
    %p324 = por %p322, %p323
    %p326 = scmp.ne.s32.totalorder %s311, %s325
    %p327 = scmp.eq.s32.totalorder %s28, 0
    %p328 = por %p326, %p327
    %s330 = sadd.s32 %s329, 1
    %p333 = scmp.eq.s32.totalorder %s22, 1
    %p334 = scmp.ne.s32.totalorder %s329, %s331
    %p335 = scmp.eq.s32.totalorder %s22, 0
    %p336 = por %p334, %p335
    %p337 = scmp.ne.s32.totalorder %s329, %s331
    %p338 = scmp.eq.s32.totalorder %s27, 1
    %p339 = por %p337, %p338
    %p340 = scmp.ne.s32.totalorder %s331, %s332
    %p341 = scmp.eq.s32.totalorder %s27, 0
    %p342 = por %p340, %p341
    %p343 = scmp.ne.s32.totalorder %s331, %s332
    %p344 = scmp.eq.s32.totalorder %s28, 1
    %p345 = por %p343, %p344
    %p347 = scmp.ne.s32.totalorder %s332, %s346
    %p348 = scmp.eq.s32.totalorder %s28, 0
    %p349 = por %p347, %p348
    %s351 = sadd.s32 %s350, 1
    %p354 = scmp.eq.s32.totalorder %s22, 1
    %p355 = scmp.ne.s32.totalorder %s350, %s352
    %p356 = scmp.eq.s32.totalorder %s22, 0
    %p357 = por %p355, %p356
    %p358 = scmp.ne.s32.totalorder %s350, %s352
    %p359 = scmp.eq.s32.totalorder %s27, 1
    %p360 = por %p358, %p359
    %p361 = scmp.ne.s32.totalorder %s352, %s353
    %p362 = scmp.eq.s32.totalorder %s27, 0
    %p363 = por %p361, %p362
    %p364 = scmp.ne.s32.totalorder %s352, %s353
    %p365 = scmp.eq.s32.totalorder %s28, 1
    %p366 = por %p364, %p365
    %p368 = scmp.ne.s32.totalorder %s353, %s367
    %p369 = scmp.eq.s32.totalorder %s28, 0
    %p370 = por %p368, %p369
    %s371 = ssub.s32 %s22, %s29
    %p372 = scmp.eq.s32.totalorder %s371, 0
    %s374 = sadd.s32 %s373, 1
    %s375 = scalar_select %p372, %s373, %s374
    %p378 = pneg %p372
    %p379 = scmp.eq.s32.totalorder %s22, 1
    %p380 = por %p378, %p379
    %p381 = scmp.ne.s32.totalorder %s373, %s376
    %p382 = scmp.eq.s32.totalorder %s22, 0
    %p383 = por %p381, %p382
    %p384 = scmp.ne.s32.totalorder %s373, %s376
    %p385 = scmp.eq.s32.totalorder %s27, 1
    %p386 = por %p384, %p385
    %p387 = scmp.ne.s32.totalorder %s376, %s377
    %p388 = scmp.eq.s32.totalorder %s27, 0
    %p389 = por %p387, %p388
    %p390 = scmp.ne.s32.totalorder %s376, %s377
    %p391 = scmp.eq.s32.totalorder %s28, 1
    %p392 = por %p390, %p391
    %p394 = scmp.ne.s32.totalorder %s377, %s393
    %p395 = scmp.eq.s32.totalorder %s28, 0
    %p396 = por %p394, %p395
    %p397 = scmp.le.s32.totalorder 1, %s22
    %p398 = scmp.lt.s32.totalorder %s22, 3
    %p399 = pnand %p397, %p398
    %p400 = pneg %p399
    // Predicated region
    $region9: #{vision_transformer_forward.1} parent=5 // pred_check
      _
    $region10: #{vision_transformer_forward.1} parent=5 // pred_check_branch
      %402 = sbr.rel (%p399) target = $region12
    $region11: #{vision_transformer_forward.1} parent=5 // pred_region
      %s403 = ssub.s32 %s22, 1
      // Predicated region
      $region13: #{vision_transformer_forward.1} parent=11 // pred_check
        %p404 = pneg %p69
      $region14: #{vision_transformer_forward.1} parent=11 // pred_check_branch
        %406 = sbr.rel (%p404) target = $region16
      $region15: #{vision_transformer_forward.1} parent=11 // pred_region
        _
      $region16: #{vision_transformer_forward.1} parent=11 // pred_fallthru
        _
      // Predicated region
      $region17: #{vision_transformer_forward.1} parent=11 // pred_check
        %p407 = pneg %p90
      $region18: #{vision_transformer_forward.1} parent=11 // pred_check_branch
        %409 = sbr.rel (%p407) target = $region20
      $region19: #{vision_transformer_forward.1} parent=11 // pred_region
        _
      $region20: #{vision_transformer_forward.1} parent=11 // pred_fallthru
        _
      // Predicated region
      $region21: #{vision_transformer_forward.1} parent=11 // pred_check
        %p410 = pneg %p111
      $region22: #{vision_transformer_forward.1} parent=11 // pred_check_branch
        %412 = sbr.rel (%p410) target = $region24
      $region23: #{vision_transformer_forward.1} parent=11 // pred_region
        _
      $region24: #{vision_transformer_forward.1} parent=11 // pred_fallthru
        _
      // Predicated region
      $region25: #{vision_transformer_forward.1} parent=11 // pred_check
        %p413 = pneg %p132
      $region26: #{vision_transformer_forward.1} parent=11 // pred_check_branch
        %415 = sbr.rel (%p413) target = $region28
      $region27: #{vision_transformer_forward.1} parent=11 // pred_region
        _
      $region28: #{vision_transformer_forward.1} parent=11 // pred_fallthru
        _
      // Predicated region
      $region29: #{vision_transformer_forward.1} parent=11 // pred_check
        %p416 = pneg %p153
      $region30: #{vision_transformer_forward.1} parent=11 // pred_check_branch
        %418 = sbr.rel (%p416) target = $region32
      $region31: #{vision_transformer_forward.1} parent=11 // pred_region
        _
      $region32: #{vision_transformer_forward.1} parent=11 // pred_fallthru
        _
      // Predicated region
      $region33: #{vision_transformer_forward.1} parent=11 // pred_check
        %p419 = pneg %p174
      $region34: #{vision_transformer_forward.1} parent=11 // pred_check_branch
        %421 = sbr.rel (%p419) target = $region36
      $region35: #{vision_transformer_forward.1} parent=11 // pred_region
        _
      $region36: #{vision_transformer_forward.1} parent=11 // pred_fallthru
        _
      // Predicated region
      $region37: #{vision_transformer_forward.1} parent=11 // pred_check
        %p422 = pneg %p195
      $region38: #{vision_transformer_forward.1} parent=11 // pred_check_branch
        %424 = sbr.rel (%p422) target = $region40
      $region39: #{vision_transformer_forward.1} parent=11 // pred_region
        _
      $region40: #{vision_transformer_forward.1} parent=11 // pred_fallthru
        _
      // Predicated region
      $region41: #{vision_transformer_forward.1} parent=11 // pred_check
        %p425 = pneg %p216
      $region42: #{vision_transformer_forward.1} parent=11 // pred_check_branch
        %427 = sbr.rel (%p425) target = $region44
      $region43: #{vision_transformer_forward.1} parent=11 // pred_region
        _
      $region44: #{vision_transformer_forward.1} parent=11 // pred_fallthru
        _
      // Predicated region
      $region45: #{vision_transformer_forward.1} parent=11 // pred_check
        %p428 = pneg %p237
      $region46: #{vision_transformer_forward.1} parent=11 // pred_check_branch
        %430 = sbr.rel (%p428) target = $region48
      $region47: #{vision_transformer_forward.1} parent=11 // pred_region
        _
      $region48: #{vision_transformer_forward.1} parent=11 // pred_fallthru
        _
      // Predicated region
      $region49: #{vision_transformer_forward.1} parent=11 // pred_check
        %p431 = pneg %p258
      $region50: #{vision_transformer_forward.1} parent=11 // pred_check_branch
        %433 = sbr.rel (%p431) target = $region52
      $region51: #{vision_transformer_forward.1} parent=11 // pred_region
        _
      $region52: #{vision_transformer_forward.1} parent=11 // pred_fallthru
        _
      // Predicated region
      $region53: #{vision_transformer_forward.1} parent=11 // pred_check
        %p434 = pneg %p279
      $region54: #{vision_transformer_forward.1} parent=11 // pred_check_branch
        %436 = sbr.rel (%p434) target = $region56
      $region55: #{vision_transformer_forward.1} parent=11 // pred_region
        _
      $region56: #{vision_transformer_forward.1} parent=11 // pred_fallthru
        _
      // Predicated region
      $region57: #{vision_transformer_forward.1} parent=11 // pred_check
        %p437 = pneg %p300
      $region58: #{vision_transformer_forward.1} parent=11 // pred_check_branch
        %439 = sbr.rel (%p437) target = $region60
      $region59: #{vision_transformer_forward.1} parent=11 // pred_region
        _
      $region60: #{vision_transformer_forward.1} parent=11 // pred_fallthru
        _
      // Predicated region
      $region61: #{vision_transformer_forward.1} parent=11 // pred_check
        %p440 = pneg %p321
      $region62: #{vision_transformer_forward.1} parent=11 // pred_check_branch
        %442 = sbr.rel (%p440) target = $region64
      $region63: #{vision_transformer_forward.1} parent=11 // pred_region
        _
      $region64: #{vision_transformer_forward.1} parent=11 // pred_fallthru
        _
      // Predicated region
      $region65: #{vision_transformer_forward.1} parent=11 // pred_check
        %p443 = pneg %p342
      $region66: #{vision_transformer_forward.1} parent=11 // pred_check_branch
        %445 = sbr.rel (%p443) target = $region68
      $region67: #{vision_transformer_forward.1} parent=11 // pred_region
        _
      $region68: #{vision_transformer_forward.1} parent=11 // pred_fallthru
        _
      // Predicated region
      $region69: #{vision_transformer_forward.1} parent=11 // pred_check
        %p446 = pneg %p363
      $region70: #{vision_transformer_forward.1} parent=11 // pred_check_branch
        %448 = sbr.rel (%p446) target = $region72
      $region71: #{vision_transformer_forward.1} parent=11 // pred_region
        _
      $region72: #{vision_transformer_forward.1} parent=11 // pred_fallthru
        _
    $region12: #{vision_transformer_forward.1} parent=5 // pred_fallthru
      _
    %p449 = scmp.lt.s32.totalorder %s22, 2
    // Predicated region
    $region73: #{vision_transformer_forward.1} parent=5 // pred_check
      %p450 = pneg %p449
    $region74: #{vision_transformer_forward.1} parent=5 // pred_check_branch
      %452 = sbr.rel (%p450) target = $region76
    $region75: #{vision_transformer_forward.1} parent=5 // pred_region
      // Predicated region
      $region77: #{vision_transformer_forward.1} parent=75 // pred_check
        %p453 = pneg %p42
      $region78: #{vision_transformer_forward.1} parent=75 // pred_check_branch
        %455 = sbr.rel (%p453) target = $region80
      $region79: #{vision_transformer_forward.1} parent=75 // pred_region
        %p456 = scmp.lt.s32.totalorder %s22, 1
        %s457 = scalar_select %p456, %s22, 1
        %s458 = smul.addr %s457, 2
        %s459 = smul.addr %s458, 8
        %s460 = scalar_lea.vmem %s0, %s459
      $region80: #{vision_transformer_forward.1} parent=75 // pred_fallthru
        _
    $region76: #{vision_transformer_forward.1} parent=5 // pred_fallthru
      _
    %p461 = scmp.le.s32.totalorder 1, %s22
    %p462 = scmp.lt.s32.totalorder %s22, 3
    %p463 = pnand %p461, %p462
    %p464 = pneg %p463
    // Predicated region
    $region81: #{vision_transformer_forward.1} parent=5 // pred_check
      _
    $region82: #{vision_transformer_forward.1} parent=5 // pred_check_branch
      %466 = sbr.rel (%p463) target = $region84
    $region83: #{vision_transformer_forward.1} parent=5 // pred_region
      %s467 = ssub.s32 %s22, 1
      %p468 = scmp.lt.s32.totalorder %s27, 1
      %s469 = scalar_select %p468, %s27, 1
      %s470 = smul.addr %s469, 2
      %s471 = smul.addr %s470, 8
      %s472 = scalar_lea.vmem %s0, %s471
      %p473 = pneg %p48
      %p474 = pneg %p45
      %p475 = pneg %p69
      %p476 = pneg %p66
      %p477 = pneg %p90
      %p478 = pneg %p87
      %p479 = pneg %p111
      %p480 = pneg %p108
      %p481 = pneg %p132
      %p482 = pneg %p129
      %p483 = pneg %p153
      %p484 = pneg %p150
      %p485 = pneg %p174
      %p486 = pneg %p171
      %p487 = pneg %p195
      %p488 = pneg %p192
      %p489 = pneg %p216
      %p490 = pneg %p213
      %p491 = pneg %p237
      %p492 = pneg %p234
      %p493 = pneg %p258
      %p494 = pneg %p255
      %p495 = pneg %p279
      %p496 = pneg %p276
      %p497 = pneg %p300
      %p498 = pneg %p297
      %p499 = pneg %p321
      %p500 = pneg %p318
      %p501 = pneg %p342
      %p502 = pneg %p339
      %p503 = pneg %p363
      %p504 = pneg %p360
      %p505 = pneg %p389
      %p506 = pneg %p386
      %p507 = scmp.lt.s32.totalorder %s27, 1
      %s508 = scalar_select %p507, %s27, 1
      %s509 = smul.addr %s508, 3
      %s510 = smul.addr %s509, 8
      %s511 = scalar_lea.vmem %s16, %s510
      %p512 = scmp.lt.s32.totalorder %s27, 1
      %s513 = scalar_select %p512, %s27, 1
      %s514 = smul.addr %s513, 2
      %s515 = smul.addr %s514, 8
      %s516 = scalar_lea.vmem %s0, %s515
      %p517 = scmp.lt.s32.totalorder %s27, 1
      %s518 = scalar_select %p517, %s27, 1
      %s519 = smul.addr %s518, 3
      %s520 = smul.addr %s519, 8
      %s521 = scalar_lea.vmem %s16, %s520
      %v523 = vld [vmem:[%s5] sm:$0xff]
      %v524 = vld [vmem:[%s5 + $0x8] sm:$0xff]
      %v525 = vld [vmem:[%s5 + $0x10] sm:$0xff]
      %v526 = vld [vmem:[%s5 + $0x18] sm:$0xff]
      %v527 = vld [vmem:[%s516] sm:$0xff]
      %v528 = vld [vmem:[%s516 + $0x8] sm:$0xff]
      %v529 = vpack.c.bf16 %v528, %v527
      %v530 = vld [vmem:[%s2] sm:$0xf]
      %v531 = vld [vmem:[%s2 + $0x4] sm:$0xf]
      %v532 = vld [vmem:[%s2 + $0x8] sm:$0xf]
      %v533 = vld [vmem:[%s2 + $0xc] sm:$0xf]
      %v534 = vld [vmem:[%s2 + $0x10] sm:$0xf]
      %v535 = vld [vmem:[%s2 + $0x14] sm:$0xf]
      %v536 = vld [vmem:[%s2 + $0x18] sm:$0xf]
      %v537 = vld [vmem:[%s2 + $0x1c] sm:$0xf]
      %v538 = vld [vmem:[%s3] sm:$0x1]
      %v540 = vlaneseq
      %v541 = vshrl.u32 %v540, 7
      %v542 = vsub.s32 0, %v541
      %v543 = vrot.slane %v538, %v542
      %v553 = vunpack.c.l.b16 %v530
      %v554 = vunpack.c.l.b16 %v531
      %v555 = vunpack.c.l.b16 %v532
      %v556 = vunpack.c.l.b16 %v533
      %v557 = vunpack.c.l.b16 %v534
      %v558 = vunpack.c.l.b16 %v535
      %v559 = vunpack.c.l.b16 %v536
      %v560 = vunpack.c.l.b16 %v537
      %v561 = vpack.c.b16 %v554, %v553
      %v562 = vpack.c.b16 %v556, %v555
      %v563 = vpack.c.b16 %v558, %v557
      %v564 = vpack.c.b16 %v560, %v559
      %vm569 = vcmask 523264
      %v571 = vsel %vm569, %v529, 0
      %573 = vmatprep.subr.bf16.mxu0 0
      %574 = vmatpush1.bf16.msra.mxu0 0
      %575 = vmatprep.subr.bf16.mxu0 0
      %576 = vmatpush1.bf16.msra.mxu0 0
      %577 = vmatprep.subr.bf16.mxu0 0
      %578 = vmatpush1.bf16.msra.mxu0 0
      %579 = vmatprep.subr.bf16.mxu0 0
      %580 = vmatpush1.bf16.msra.mxu0 0
      %581 = vmatprep.subr.bf16.mxu0 0
      %582 = vmatpush1.bf16.msra.mxu0 %v564
      %583 = vmatprep.subr.bf16.mxu0 0
      %584 = vmatpush1.bf16.msra.mxu0 %v563
      %585 = vmatprep.subr.bf16.mxu0 0
      %586 = vmatpush1.bf16.msra.mxu0 %v562
      %587 = vmatprep.subr.bf16.mxu0 0
      %588 = vmatpush1.bf16.msra.mxu0 %v561
      %589 = vmatprep.subr.bf16.mxu0 0
      %590 = vmatpush2.bf16.msra.mxu0 0
      %591 = vmatprep.subr.bf16.mxu0 0
      %592 = vmatpush2.bf16.msra.mxu0 0
      %593 = vmatprep.subr.bf16.mxu0 0
      %594 = vmatpush2.bf16.msra.mxu0 0
      %595 = vmatprep.subr.bf16.mxu0 0
      %596 = vmatpush2.bf16.msra.mxu0 0
      %597 = vmatprep.subr.bf16.mxu0 0
      %598 = vmatpush2.bf16.msra.mxu0 0
      %599 = vmatprep.subr.bf16.mxu0 0
      %600 = vmatpush2.bf16.msra.mxu0 0
      %601 = vmatprep.subr.bf16.mxu0 0
      %602 = vmatpush2.bf16.msra.mxu0 0
      %603 = vmatprep.subr.bf16.mxu0 0
      %604 = vmatpush2.bf16.msra.mxu0 0
      %605 = vmatprep.mubr.bf16.mxu0 0
      %606 = vmatmul.mubr.bf16.gmra.mxu0 %v571
      %v607 = vpop.f32.mrf.mxu0
      %v608 = vadd.f32 %v543, %v607
      %v609 = vpop.f32.mrf.mxu0
      %v610 = vpop.f32.mrf.mxu0
      %v611 = vadd.f32 %v543, %v610
      %v612 = vpop.f32.mrf.mxu0
      %613 = vdwg.mxu0
      %vm614 = vcmask 261120
      %v615 = vsel %vm614, %v608, 0.0
      %616 = vadd.xlane.f32.xlu0 %v615
      %v617 = vpop.xlane.xlu0 %616
      %v618 = vsel %vm614, %v611, 0.0
      %619 = vadd.xlane.f32.xlu0 %v618
      %v620 = vpop.xlane.xlu0 %619
      %v621 = vrcp.pop 32.0
      %v622 = vmul.f32 %v617, %v621
      %v623 = vmul.f32 %v620, %v621
      %v624 = vsub.f32 %v608, %v622
      %v625 = vsub.f32 %v611, %v623
      %v626 = vmul.f32 %v624, %v624
      %v627 = vmul.f32 %v625, %v625
      %v628 = vsel %vm614, %v626, 0.0
      %629 = vadd.xlane.f32.xlu0 %v628
      %v630 = vpop.xlane.xlu0 %629
      %v631 = vsel %vm614, %v627, 0.0
      %632 = vadd.xlane.f32.xlu0 %v631
      %v633 = vpop.xlane.xlu0 %632
      %v634 = vmul.f32 %v630, %v621
      %v635 = vmul.f32 %v633, %v621
      %v636 = vld [vmem:[%s4] sm:$0x3]
      %v637 = vadd.f32 %v634, 1e-05
      %v638 = vadd.f32 %v635, 1e-05
      %v639 = vrsqrt.pop %v637
      %v640 = vrsqrt.pop %v638
      %v641 = vmul.f32 %v624, %v639
      %v642 = vmul.f32 %v625, %v640
      %v643 = vlaneseq
      %v644 = vshrl.u32 %v643, 7
      %v645 = vsub.s32 0, %v644
      %v646 = vrot.slane %v636, %v645
      %v647 = vmul.f32 %v641, %v646
      %v648 = vmul.f32 %v642, %v646
      %v649 = vlaneseq
      %v650 = vshrl.u32 %v649, 7
      %v651 = vsub.s32 1, %v650
      %v652 = vrot.slane %v636, %v651
      %v653 = vadd.f32 %v647, %v652
      %v654 = vadd.f32 %v648, %v652
      %v655 = vld [vmem:[%s1] sm:$0x1]
      %v656 = vld [vmem:[%s6] sm:$0xf]
      %v657 = vsel %vm614, %v653, 0.0
      %658 = vadd.xlane.f32.xlu0 %v657
      %v659 = vpop.xlane.xlu0 %658
      %v660 = vsel %vm614, %v654, 0.0
      %661 = vadd.xlane.f32.xlu0 %v660
      %v662 = vpop.xlane.xlu0 %661
      %vm663 = vcmask 253952
      %v664 = vsel %vm663, %v655, 0.0
      %665 = vadd.xlane.f32.xlu0 %v664
      %v666 = vpop.xlane.xlu0 %665
      %v667 = vmul.f32 %v659, %v621
      %v668 = vmul.f32 %v662, %v621
      %v669 = vmul.f32 %v666, %v621
      %v670 = vsub.f32 %v653, %v667
      %v671 = vsub.f32 %v654, %v668
      %v672 = vsub.f32 %v655, %v669
      %v673 = vmul.f32 %v670, %v670
      %v674 = vmul.f32 %v671, %v671
      %v675 = vmul.f32 %v672, %v672
      %v676 = vsel %vm614, %v673, 0.0
      %677 = vadd.xlane.f32.xlu0 %v676
      %v678 = vpop.xlane.xlu0 %677
      %v679 = vsel %vm614, %v674, 0.0
      %680 = vadd.xlane.f32.xlu0 %v679
      %v681 = vpop.xlane.xlu0 %680
      %v682 = vsel %vm663, %v675, 0.0
      %683 = vadd.xlane.f32.xlu0 %v682
      %v684 = vpop.xlane.xlu0 %683
      %v685 = vmul.f32 %v678, %v621
      %v686 = vmul.f32 %v681, %v621
      %v687 = vmul.f32 %v684, %v621
      %v688 = vadd.f32 %v685, 1e-05
      %v689 = vadd.f32 %v686, 1e-05
      %v690 = vadd.f32 %v687, 1e-05
      %v691 = vrsqrt.pop %v688
      %v692 = vrsqrt.pop %v689
      %v693 = vrsqrt.pop %v690
      %v694 = vmul.f32 %v670, %v691
      %v695 = vmul.f32 %v671, %v692
      %v696 = vmul.f32 %v672, %v693
      %v697 = vlaneseq
      %v698 = vshrl.u32 %v697, 7
      %v699 = vsub.s32 0, %v698
      %v700 = vrot.slane %v656, %v699
      %v701 = vmul.f32 %v694, %v700
      %v702 = vmul.f32 %v695, %v700
      %v703 = vmul.f32 %v696, %v700
      %v704 = vlaneseq
      %v705 = vshrl.u32 %v704, 7
      %v706 = vsub.s32 1, %v705
      %v707 = vrot.slane %v656, %v706
      %v708 = vadd.f32 %v701, %v707
      %v709 = vadd.f32 %v702, %v707
      %v710 = vadd.f32 %v703, %v707
      %712 = vset.pattern.permute.xlu0 0
      %713 = vperm.xlu0 %712, %v523
      %v714 = vpop.permute.xlu0 %713
      %716 = vset.pattern.permute.xlu0 0
      %717 = vperm.xlu0 %716, %v524
      %v718 = vpop.permute.xlu0 %717
      %vm719 = vcmask 1042432
      %v720 = vrot.slane %v714, 5
      %v721 = vrot.slane %v718, 5
      %v722 = vsel %vm719, %v720, %v721
      %v726 = vmul.f32 %v720, 0.0
      %v727 = vmul.f32 %v708, %v722
      %v728 = vmul.f32 %v709, %v721
      %730 = vset.pattern.permute.xlu0 0
      %731 = vperm.xlu0 %730, %v525
      %v732 = vpop.permute.xlu0 %731
      %734 = vset.pattern.permute.xlu0 0
      %735 = vperm.xlu0 %734, %v526
      %v736 = vpop.permute.xlu0 %735
      %vm737 = vcmask 1044480
      %v738 = vrot.slane %v732, 3
      %v739 = vrot.slane %v736, 3
      %v740 = vsel %vm737, %v738, %v739
      %v744 = vmul.f32 %v738, 0.0
      %v745 = vmul.f32 %v708, %v740
      %v746 = vmul.f32 %v709, %v739
      %vm747 = vcmask 1046528
      %v748 = vrot.slane %v714, 1
      %v749 = vrot.slane %v718, 1
      %v750 = vsel %vm747, %v748, %v749
      %v754 = vmul.f32 %v748, 0.0
      %v755 = vmul.f32 %v708, %v750
      %v756 = vmul.f32 %v709, %v749
      %vm757 = vcmask 1040384
      %v758 = vrot.slane %v732, 7
      %v759 = vrot.slane %v736, 7
      %v760 = vsel %vm757, %v758, %v759
      %v764 = vmul.f32 %v708, %v758
      %v765 = vmul.f32 %v709, %v760
      %v766 = vmul.f32 %v759, 0.0
      %v767 = vmul.f32 %v708, %v720
      %v768 = vmul.f32 %v709, %v722
      %v769 = vmul.f32 %v721, 0.0
      %v770 = vmul.f32 %v708, %v738
      %v771 = vmul.f32 %v709, %v740
      %v772 = vmul.f32 %v739, 0.0
      %v776 = vrot.slane 0.0, 1
      %v777 = vrot.slane %v708, 1
      %v778 = vsel %vm747, %v776, %v777
      %v779 = vrot.slane %v709, 1
      %v780 = vsel %vm747, %v777, %v779
      %781 = vrot.lane.b32.xlu0 %v778, 32
      %v782 = vpop.permute.xlu0 %781
      %783 = vrot.lane.b32.xlu0 %v780, 32
      %v784 = vpop.permute.xlu0 %783
      %785 = vrot.lane.b32.xlu0 %v779, 32
      %v786 = vpop.permute.xlu0 %785
      %vm793 = vcmask 1045504
      %v794 = vrot.slane %v744, 2
      %v795 = vrot.slane %v745, 2
      %v796 = vsel %vm793, %v794, %v795
      %v797 = vrot.slane %v746, 2
      %v798 = vsel %vm793, %v795, %v797
      %799 = vrot.lane.b32.xlu0 %v796, 64
      %v800 = vpop.permute.xlu0 %799
      %801 = vrot.lane.b32.xlu0 %v798, 64
      %v802 = vpop.permute.xlu0 %801
      %803 = vrot.lane.b32.xlu0 %v797, 64
      %v804 = vpop.permute.xlu0 %803
      %vm811 = vcmask 1043456
      %v812 = vrot.slane %v754, 4
      %v813 = vrot.slane %v755, 4
      %v814 = vsel %vm811, %v812, %v813
      %v815 = vrot.slane %v756, 4
      %v816 = vsel %vm811, %v813, %v815
      %817 = vrot.lane.b32.xlu0 %v814, 96
      %v818 = vpop.permute.xlu0 %817
      %819 = vrot.lane.b32.xlu0 %v816, 96
      %v820 = vpop.permute.xlu0 %819
      %821 = vrot.lane.b32.xlu0 %v815, 96
      %v822 = vpop.permute.xlu0 %821
      %v826 = vrot.slane %v708, 5
      %v827 = vrot.slane %v709, 5
      %v828 = vsel %vm719, %v826, %v827
      %vm835 = vcmask 1041408
      %v836 = vrot.slane %v764, 6
      %v837 = vrot.slane %v765, 6
      %v838 = vsel %vm835, %v836, %v837
      %v839 = vrot.slane %v766, 6
      %v840 = vsel %vm835, %v837, %v839
      %841 = vrot.lane.b32.xlu0 %v836, 32
      %v842 = vpop.permute.xlu0 %841
      %843 = vrot.lane.b32.xlu0 %v838, 32
      %v844 = vpop.permute.xlu0 %843
      %845 = vrot.lane.b32.xlu0 %v840, 32
      %v846 = vpop.permute.xlu0 %845
      %853 = vrot.lane.b32.xlu0 %v767, 64
      %v854 = vpop.permute.xlu0 %853
      %855 = vrot.lane.b32.xlu0 %v768, 64
      %v856 = vpop.permute.xlu0 %855
      %857 = vrot.lane.b32.xlu0 %v769, 64
      %v858 = vpop.permute.xlu0 %857
      %v862 = vsel %vm747, %v779, %v776
      %863 = vrot.lane.b32.xlu0 %v780, 96
      %v864 = vpop.permute.xlu0 %863
      %865 = vrot.lane.b32.xlu0 %v862, 96
      %v866 = vpop.permute.xlu0 %865
      %867 = vrot.lane.b32.xlu0 %v776, 96
      %v868 = vpop.permute.xlu0 %867
      %v875 = vrot.slane %v770, 2
      %v876 = vrot.slane %v771, 2
      %v877 = vsel %vm793, %v875, %v876
      %v878 = vrot.slane %v772, 2
      %v879 = vsel %vm793, %v876, %v878
      %v883 = vsel %vm614, %v726, %v782
      %v884 = vsel %vm614, %v727, %v784
      %v885 = vsel %vm614, %v728, %v786
      %v886 = vsel %vm569, %v883, %v800
      %v887 = vsel %vm569, %v884, %v802
      %v888 = vsel %vm569, %v885, %v804
      %vm889 = vcmask 785408
      %v890 = vsel %vm889, %v886, %v818
      %v891 = vsel %vm889, %v887, %v820
      %v892 = vsel %vm889, %v888, %v822
      %v893 = vsel %vm614, %v826, %v842
      %v894 = vsel %vm614, %v828, %v844
      %v895 = vsel %vm614, %v827, %v846
      %v896 = vsel %vm569, %v893, %v854
      %v897 = vsel %vm569, %v894, %v856
      %v898 = vsel %vm569, %v895, %v858
      %v899 = vsel %vm889, %v896, %v864
      %v900 = vsel %vm889, %v897, %v866
      %v901 = vsel %vm889, %v898, %v868
      %v902 = vpack.c.bf16 %v891, %v890
      %v903 = vpack.c.bf16 %v900, %v899
      %v904 = vpack.c.bf16 %v879, %v877
      %v905 = vpack.c.bf16 %v892, %v892
      %v906 = vpack.c.bf16 %v901, %v901
      %v907 = vpack.c.bf16 %v878, %v878
      %v908 = vld [vmem:[%s7] sm:$0xf]
      %v909 = vld [vmem:[%s7 + $0x4] sm:$0xf]
      %v910 = vld [vmem:[%s7 + $0x8] sm:$0xf]
      %v911 = vld [vmem:[%s7 + $0xc] sm:$0xf]
      %v912 = vld [vmem:[%s7 + $0x10] sm:$0xf]
      %v913 = vld [vmem:[%s7 + $0x14] sm:$0xf]
      %v914 = vld [vmem:[%s7 + $0x18] sm:$0xf]
      %v915 = vld [vmem:[%s7 + $0x1c] sm:$0xf]
      %v916 = vld [vmem:[%s7 + $0x20] sm:$0xf]
      %v917 = vld [vmem:[%s7 + $0x24] sm:$0xf]
      %v918 = vld [vmem:[%s7 + $0x28] sm:$0xf]
      %v919 = vld [vmem:[%s7 + $0x2c] sm:$0xf]
      %v920 = vld [vmem:[%s7 + $0x30] sm:$0xf]
      %v921 = vld [vmem:[%s7 + $0x34] sm:$0xf]
      %v922 = vld [vmem:[%s7 + $0x38] sm:$0xf]
      %v923 = vld [vmem:[%s7 + $0x3c] sm:$0xf]
      %v924 = vld [vmem:[%s7 + $0x40] sm:$0xf]
      %v925 = vld [vmem:[%s7 + $0x44] sm:$0xf]
      %v926 = vld [vmem:[%s7 + $0x48] sm:$0xf]
      %v927 = vld [vmem:[%s7 + $0x4c] sm:$0xf]
      %v928 = vld [vmem:[%s7 + $0x50] sm:$0xf]
      %v929 = vld [vmem:[%s7 + $0x54] sm:$0xf]
      %v930 = vld [vmem:[%s7 + $0x58] sm:$0xf]
      %v931 = vld [vmem:[%s7 + $0x5c] sm:$0xf]
      %v932 = vld [vmem:[%s7 + $0x60] sm:$0xf]
      %v933 = vld [vmem:[%s7 + $0x64] sm:$0xf]
      %v934 = vld [vmem:[%s7 + $0x68] sm:$0xf]
      %v935 = vld [vmem:[%s7 + $0x6c] sm:$0xf]
      %v936 = vld [vmem:[%s7 + $0x70] sm:$0xf]
      %v937 = vld [vmem:[%s7 + $0x74] sm:$0xf]
      %v938 = vld [vmem:[%s7 + $0x78] sm:$0xf]
      %v939 = vld [vmem:[%s7 + $0x7c] sm:$0xf]
      %v940 = vld [vmem:[%s7 + $0x80] sm:$0xf]
      %v941 = vld [vmem:[%s7 + $0x84] sm:$0xf]
      %v942 = vld [vmem:[%s7 + $0x88] sm:$0xf]
      %v943 = vld [vmem:[%s7 + $0x8c] sm:$0xf]
      %v944 = vld [vmem:[%s8] sm:$0x1]
      %v946 = vlaneseq
      %v947 = vshrl.u32 %v946, 7
      %v948 = vsub.s32 0, %v947
      %v949 = vrot.slane %v944, %v948
      %vm951 = vsmask.f32 6400
      %v953 = vshrl.u32 %v902, 16
      %v955 = vrot.slane %v953, 1
      %v956 = vshll.u32 %v902, 16
      %v958 = vrot.slane %v956, 2
      %v959 = vor.u32 %v955, %v958
      %v961 = vshrl.u32 %v905, 16
      %v963 = vrot.slane %v961, 1
      %v964 = vshll.u32 %v905, 16
      %v966 = vrot.slane %v964, 2
      %v967 = vor.u32 %v963, %v966
      %v968 = vsel %vm951, %v959, %v967
      %v970 = vshrl.u32 %v903, 16
      %v972 = vrot.slane %v970, 1
      %v973 = vshll.u32 %v903, 16
      %v975 = vrot.slane %v973, 2
      %v976 = vor.u32 %v972, %v975
      %v978 = vshrl.u32 %v906, 16
      %v980 = vrot.slane %v978, 1
      %v981 = vshll.u32 %v906, 16
      %v983 = vrot.slane %v981, 2
      %v984 = vor.u32 %v980, %v983
      %v985 = vsel %vm951, %v976, %v984
      %v987 = vshrl.u32 %v904, 16
      %v989 = vrot.slane %v987, 1
      %v990 = vshll.u32 %v904, 16
      %v992 = vrot.slane %v990, 2
      %v993 = vor.u32 %v989, %v992
      %v995 = vshrl.u32 %v907, 16
      %v997 = vrot.slane %v995, 1
      %v998 = vshll.u32 %v907, 16
      %v1000 = vrot.slane %v998, 2
      %v1001 = vor.u32 %v997, %v1000
      %v1002 = vsel %vm951, %v993, %v1001
      %v1041 = vunpack.c.l.b16 %v908
      %v1042 = vunpack.c.l.b16 %v909
      %v1043 = vunpack.c.l.b16 %v910
      %v1044 = vunpack.c.l.b16 %v911
      %v1045 = vunpack.c.l.b16 %v912
      %v1046 = vunpack.c.l.b16 %v913
      %v1047 = vunpack.c.l.b16 %v914
      %v1048 = vunpack.c.l.b16 %v915
      %v1049 = vunpack.c.l.b16 %v916
      %v1050 = vunpack.c.l.b16 %v917
      %v1051 = vunpack.c.l.b16 %v918
      %v1052 = vunpack.c.l.b16 %v919
      %v1053 = vunpack.c.l.b16 %v920
      %v1054 = vunpack.c.l.b16 %v921
      %v1055 = vunpack.c.l.b16 %v922
      %v1056 = vunpack.c.l.b16 %v923
      %v1057 = vunpack.c.l.b16 %v924
      %v1058 = vunpack.c.l.b16 %v925
      %v1059 = vunpack.c.l.b16 %v926
      %v1060 = vunpack.c.l.b16 %v927
      %v1061 = vunpack.c.l.b16 %v928
      %v1062 = vunpack.c.l.b16 %v929
      %v1063 = vunpack.c.l.b16 %v930
      %v1064 = vunpack.c.l.b16 %v931
      %v1065 = vunpack.c.l.b16 %v932
      %v1066 = vunpack.c.l.b16 %v933
      %v1067 = vunpack.c.l.b16 %v934
      %v1068 = vunpack.c.l.b16 %v935
      %v1069 = vunpack.c.l.b16 %v936
      %v1070 = vunpack.c.l.b16 %v937
      %v1071 = vunpack.c.l.b16 %v938
      %v1072 = vunpack.c.l.b16 %v939
      %v1073 = vunpack.c.l.b16 %v940
      %v1074 = vunpack.c.l.b16 %v941
      %v1075 = vunpack.c.l.b16 %v942
      %v1076 = vunpack.c.l.b16 %v943
      %v1077 = vpack.c.b16 %v1042, %v1041
      %v1078 = vpack.c.b16 %v1044, %v1043
      %v1079 = vpack.c.b16 %v1046, %v1045
      %v1080 = vpack.c.b16 %v1048, %v1047
      %v1081 = vpack.c.b16 %v1050, %v1049
      %v1082 = vpack.c.b16 %v1052, %v1051
      %v1083 = vpack.c.b16 %v1054, %v1053
      %v1084 = vpack.c.b16 %v1056, %v1055
      %v1085 = vpack.c.b16 %v1058, %v1057
      %v1086 = vpack.c.b16 %v1060, %v1059
      %v1087 = vpack.c.b16 %v1062, %v1061
      %v1088 = vpack.c.b16 %v1064, %v1063
      %v1089 = vpack.c.b16 %v1066, %v1065
      %v1090 = vpack.c.b16 %v1068, %v1067
      %v1091 = vpack.c.b16 %v1070, %v1069
      %v1092 = vpack.c.b16 %v1072, %v1071
      %v1093 = vpack.c.b16 %v1074, %v1073
      %v1094 = vpack.c.b16 %v1076, %v1075
      %v1114 = vsel %vm614, %v1002, 0
      %1116 = vmatprep.subr.bf16.mxu0 0
      %1117 = vmatpush1.bf16.msra.mxu0 %v1084
      %1118 = vmatprep.subr.bf16.mxu0 0
      %1119 = vmatpush1.bf16.msra.mxu0 %v1083
      %1120 = vmatprep.subr.bf16.mxu0 0
      %1121 = vmatpush1.bf16.msra.mxu0 %v1082
      %1122 = vmatprep.subr.bf16.mxu0 0
      %1123 = vmatpush1.bf16.msra.mxu0 %v1081
      %1124 = vmatprep.subr.bf16.mxu0 0
      %1125 = vmatpush1.bf16.msra.mxu0 %v1080
      %1126 = vmatprep.subr.bf16.mxu0 0
      %1127 = vmatpush1.bf16.msra.mxu0 %v1079
      %1128 = vmatprep.subr.bf16.mxu0 0
      %1129 = vmatpush1.bf16.msra.mxu0 %v1078
      %1130 = vmatprep.subr.bf16.mxu0 0
      %1131 = vmatpush1.bf16.msra.mxu0 %v1077
      %1132 = vmatprep.subr.bf16.mxu0 0
      %1133 = vmatpush2.bf16.msra.mxu0 %v1092
      %1134 = vmatprep.subr.bf16.mxu0 0
      %1135 = vmatpush2.bf16.msra.mxu0 %v1091
      %1136 = vmatprep.subr.bf16.mxu0 0
      %1137 = vmatpush2.bf16.msra.mxu0 %v1090
      %1138 = vmatprep.subr.bf16.mxu0 0
      %1139 = vmatpush2.bf16.msra.mxu0 %v1089
      %1140 = vmatprep.subr.bf16.mxu0 0
      %1141 = vmatpush2.bf16.msra.mxu0 %v1088
      %1142 = vmatprep.subr.bf16.mxu0 0
      %1143 = vmatpush2.bf16.msra.mxu0 %v1087
      %1144 = vmatprep.subr.bf16.mxu0 0
      %1145 = vmatpush2.bf16.msra.mxu0 %v1086
      %1146 = vmatprep.subr.bf16.mxu0 0
      %1147 = vmatpush2.bf16.msra.mxu0 %v1085
      %1148 = vmatprep.mubr.bf16.mxu0 %v985
      %1149 = vmatmul.mubr.bf16.gmra.mxu0 %v968
      %v1150 = vpop.f32.mrf.mxu0
      %v1151 = vadd.f32 %v949, %v1150
      %v1152 = vpop.f32.mrf.mxu0
      %v1153 = vpop.f32.mrf.mxu0
      %v1154 = vadd.f32 %v949, %v1153
      %v1155 = vpop.f32.mrf.mxu0
      %1156 = vdwg.mxu0
      %1157 = vmatprep.subr.bf16.mxu0 0
      %1158 = vmatpush1.bf16.msra.mxu0 0
      %1159 = vmatprep.subr.bf16.mxu0 0
      %1160 = vmatpush1.bf16.msra.mxu0 0
      %1161 = vmatprep.subr.bf16.mxu0 0
      %1162 = vmatpush1.bf16.msra.mxu0 0
      %1163 = vmatprep.subr.bf16.mxu0 0
      %1164 = vmatpush1.bf16.msra.mxu0 0
      %1165 = vmatprep.subr.bf16.mxu0 0
      %1166 = vmatpush1.bf16.msra.mxu0 0
      %1167 = vmatprep.subr.bf16.mxu0 0
      %1168 = vmatpush1.bf16.msra.mxu0 0
      %1169 = vmatprep.subr.bf16.mxu0 0
      %1170 = vmatpush1.bf16.msra.mxu0 %v1094
      %1171 = vmatprep.subr.bf16.mxu0 0
      %1172 = vmatpush1.bf16.msra.mxu0 %v1093
      %1173 = vmatprep.subr.bf16.mxu0 0
      %1174 = vmatpush2.bf16.msra.mxu0 0
      %1175 = vmatprep.subr.bf16.mxu0 0
      %1176 = vmatpush2.bf16.msra.mxu0 0
      %1177 = vmatprep.subr.bf16.mxu0 0
      %1178 = vmatpush2.bf16.msra.mxu0 0
      %1179 = vmatprep.subr.bf16.mxu0 0
      %1180 = vmatpush2.bf16.msra.mxu0 0
      %1181 = vmatprep.subr.bf16.mxu0 0
      %1182 = vmatpush2.bf16.msra.mxu0 0
      %1183 = vmatprep.subr.bf16.mxu0 0
      %1184 = vmatpush2.bf16.msra.mxu0 0
      %1185 = vmatprep.subr.bf16.mxu0 0
      %1186 = vmatpush2.bf16.msra.mxu0 0
      %1187 = vmatprep.subr.bf16.mxu0 0
      %1188 = vmatpush2.bf16.msra.mxu0 0
      %1189 = vmatprep.mubr.bf16.mxu0 0
      %1190 = vmatmul.mubr.bf16.gmra.mxu0 %v1114
      %v1191 = vpop.f32.mrf.mxu0
      %v1192 = vadd.f32 %v1151, %v1191
      %v1193 = vpop.f32.mrf.mxu0
      %v1194 = vpop.f32.mrf.mxu0
      %v1195 = vadd.f32 %v1154, %v1194
      %v1196 = vpop.f32.mrf.mxu0
      %1197 = vdwg.mxu0
      %v1198 = vpack.c.bf16 %v710, %v710
      %v1199 = vld [vmem:[%s9] sm:$0xf]
      %v1200 = vld [vmem:[%s9 + $0x4] sm:$0xf]
      %v1201 = vld [vmem:[%s9 + $0x8] sm:$0xf]
      %v1202 = vld [vmem:[%s9 + $0xc] sm:$0xf]
      %v1207 = vunpack.c.l.b16 %v1199
      %v1208 = vunpack.c.l.b16 %v1200
      %v1209 = vunpack.c.l.b16 %v1201
      %v1210 = vunpack.c.l.b16 %v1202
      %v1211 = vpack.c.b16 %v1208, %v1207
      %v1212 = vpack.c.b16 %v1210, %v1209
      %v1216 = vsel %vm614, %v1198, 0
      %1218 = vmatprep.subr.bf16.mxu0 0
      %1219 = vmatpush1.bf16.msra.mxu0 0
      %1220 = vmatprep.subr.bf16.mxu0 0
      %1221 = vmatpush1.bf16.msra.mxu0 0
      %1222 = vmatprep.subr.bf16.mxu0 0
      %1223 = vmatpush1.bf16.msra.mxu0 0
      %1224 = vmatprep.subr.bf16.mxu0 0
      %1225 = vmatpush1.bf16.msra.mxu0 0
      %1226 = vmatprep.subr.bf16.mxu0 0
      %1227 = vmatpush1.bf16.msra.mxu0 0
      %1228 = vmatprep.subr.bf16.mxu0 0
      %1229 = vmatpush1.bf16.msra.mxu0 0
      %1230 = vmatprep.subr.bf16.mxu0 0
      %1231 = vmatpush1.bf16.msra.mxu0 %v1212
      %1232 = vmatprep.subr.bf16.mxu0 0
      %1233 = vmatpush1.bf16.msra.mxu0 %v1211
      %1234 = vmatprep.subr.bf16.mxu0 0
      %1235 = vmatpush2.bf16.msra.mxu0 0
      %1236 = vmatprep.subr.bf16.mxu0 0
      %1237 = vmatpush2.bf16.msra.mxu0 0
      %1238 = vmatprep.subr.bf16.mxu0 0
      %1239 = vmatpush2.bf16.msra.mxu0 0
      %1240 = vmatprep.subr.bf16.mxu0 0
      %1241 = vmatpush2.bf16.msra.mxu0 0
      %1242 = vmatprep.subr.bf16.mxu0 0
      %1243 = vmatpush2.bf16.msra.mxu0 0
      %1244 = vmatprep.subr.bf16.mxu0 0
      %1245 = vmatpush2.bf16.msra.mxu0 0
      %1246 = vmatprep.subr.bf16.mxu0 0
      %1247 = vmatpush2.bf16.msra.mxu0 0
      %1248 = vmatprep.subr.bf16.mxu0 0
      %1249 = vmatpush2.bf16.msra.mxu0 0
      %1250 = vmatprep.mubr.bf16.mxu0 0
      %1251 = vmatmul.mubr.bf16.gmra.mxu0 %v1216
      %v1252 = vpop.f32.mrf.mxu0
      %v1253 = vadd.f32 0.0, %v1252
      %v1254 = vpop.f32.mrf.mxu0
      %v1255 = vpop.f32.mrf.mxu0
      %v1256 = vpop.f32.mrf.mxu0
      %1257 = vdwg.mxu0
      %v1258 = vpack.c.bf16 %v1195, %v1192
      %v1259 = vpack.c.bf16 %v1253, %v1253
      %1262 = vrot.lane.b32.xlu0 %v1258, 96
      %v1263 = vpop.permute.xlu0 %1262
      %1264 = vrot.lane.b32.xlu0 %v1259, 96
      %v1265 = vpop.permute.xlu0 %1264
      %vm1266 = vcmask 64512
      %v1268 = vsel %vm1266, %v1258, 0
      %v1271 = vsel %vm1266, %v1259, 0
      %v1274 = vsel %vm1266, %v1263, 0
      %v1277 = vsel %vm1266, %v1265, 0
      %1279 = vmatprep.subr.bf16.mxu0 0
      %1280 = vmatpush1.bf16.xpose.msra.mxu0 0
      %1281 = vmatprep.subr.bf16.mxu0 0
      %1282 = vmatpush1.bf16.xpose.msra.mxu0 0
      %1283 = vmatprep.subr.bf16.mxu0 0
      %1284 = vmatpush1.bf16.xpose.msra.mxu0 0
      %1285 = vmatprep.subr.bf16.mxu0 0
      %1286 = vmatpush1.bf16.xpose.msra.mxu0 0
      %1287 = vmatprep.subr.bf16.mxu0 0
      %1288 = vmatpush1.bf16.xpose.msra.mxu0 0
      %1289 = vmatprep.subr.bf16.mxu0 0
      %1290 = vmatpush1.bf16.xpose.msra.mxu0 0
      %1291 = vmatprep.subr.bf16.mxu0 0
      %1292 = vmatpush1.bf16.xpose.msra.mxu0 %v1277
      %1293 = vmatprep.subr.bf16.mxu0 0
      %1294 = vmatpush1.bf16.xpose.msra.mxu0 %v1274
      %1295 = vmatprep.subr.bf16.mxu0 0
      %1296 = vmatpush2.bf16.xpose.msra.mxu0 0
      %1297 = vmatprep.subr.bf16.mxu0 0
      %1298 = vmatpush2.bf16.xpose.msra.mxu0 0
      %1299 = vmatprep.subr.bf16.mxu0 0
      %1300 = vmatpush2.bf16.xpose.msra.mxu0 0
      %1301 = vmatprep.subr.bf16.mxu0 0
      %1302 = vmatpush2.bf16.xpose.msra.mxu0 0
      %1303 = vmatprep.subr.bf16.mxu0 0
      %1304 = vmatpush2.bf16.xpose.msra.mxu0 0
      %1305 = vmatprep.subr.bf16.mxu0 0
      %1306 = vmatpush2.bf16.xpose.msra.mxu0 0
      %1307 = vmatprep.subr.bf16.mxu0 0
      %1308 = vmatpush2.bf16.xpose.msra.mxu0 0
      %1309 = vmatprep.subr.bf16.mxu0 0
      %1310 = vmatpush2.bf16.xpose.msra.mxu0 0
      %1311 = vmatprep.mubr.bf16.mxu0 0
      %1312 = vmatmul.mubr.bf16.gmra.mxu0 %v1268
      %v1313 = vpop.f32.mrf.mxu0
      %v1314 = vadd.f32 0.0, %v1313
      %v1315 = vpop.f32.mrf.mxu0
      %v1316 = vpop.f32.mrf.mxu0
      %v1317 = vadd.f32 0.0, %v1316
      %v1318 = vpop.f32.mrf.mxu0
      %1319 = vmatprep.mubr.bf16.mxu0 0
      %1320 = vmatmul.mubr.bf16.gmra.mxu0 %v1271
      %v1321 = vpop.f32.mrf.mxu0
      %v1322 = vadd.f32 0.0, %v1321
      %v1323 = vpop.f32.mrf.mxu0
      %v1324 = vpop.f32.mrf.mxu0
      %v1325 = vpop.f32.mrf.mxu0
      %1326 = vdwg.mxu0
      %vm1327 = vcmask 138240
      %v1328 = vsel %vm1327, %v1314, -inf
      %1329 = vmax.xlane.f32.xlu0 %v1328
      %v1330 = vpop.xlane.xlu0 %1329
      %v1331 = vsel %vm1327, %v1317, -inf
      %1332 = vmax.xlane.f32.xlu0 %v1331
      %v1333 = vpop.xlane.xlu0 %1332
      %vm1334 = vcmask 131072
      %v1335 = vsel %vm1334, %v1322, -inf
      %1336 = vmax.xlane.f32.xlu0 %v1335
      %v1337 = vpop.xlane.xlu0 %1336
      %v1338 = vsub.f32 %v1314, %v1330
      %v1339 = vsub.f32 %v1317, %v1333
      %v1340 = vsub.f32 %v1322, %v1337
      %v1341 = vmul.f32 %v1338, 1.442695
      %v1342 = vpow.pop %v1341
      %v1343 = vmul.f32 %v1339, 1.442695
      %v1344 = vpow.pop %v1343
      %v1345 = vmul.f32 %v1340, 1.442695
      %v1346 = vpow.pop %v1345
      %v1347 = vsel %vm1327, %v1342, 0.0
      %1348 = vadd.xlane.f32.xlu0 %v1347
      %v1349 = vpop.xlane.xlu0 %1348
      %v1350 = vsel %vm1327, %v1344, 0.0
      %1351 = vadd.xlane.f32.xlu0 %v1350
      %v1352 = vpop.xlane.xlu0 %1351
      %v1353 = vsel %vm1334, %v1346, 0.0
      %1354 = vadd.xlane.f32.xlu0 %v1353
      %v1355 = vpop.xlane.xlu0 %1354
      %v1356 = vrcp.pop %v1349
      %v1357 = vrcp.pop %v1352
      %v1358 = vrcp.pop %v1355
      %v1359 = vmul.f32 %v1342, %v1356
      %v1360 = vmul.f32 %v1344, %v1357
      %v1361 = vmul.f32 %v1346, %v1358
      %v1362 = vpack.c.bf16 %v1360, %v1359
      %v1363 = vpack.c.bf16 %v1361, %v1361
      %1364 = vrot.lane.b32.xlu0 %v1258, 64
      %v1365 = vpop.permute.xlu0 %1364
      %1366 = vrot.lane.b32.xlu0 %v1259, 64
      %v1367 = vpop.permute.xlu0 %1366
      %v1370 = vsel %vm1327, %v1362, 0
      %v1373 = vsel %vm1327, %v1363, 0
      %v1375 = vsel 0, 4294967295, 65535
      %v1376 = vsel %vm757, %v1375, 0
      %v1378 = vand.u32 %v1367, %v1376
      %1380 = vmatprep.subr.bf16.mxu0 0
      %1381 = vmatpush1.bf16.msra.mxu0 0
      %1382 = vmatprep.subr.bf16.mxu0 0
      %1383 = vmatpush1.bf16.msra.mxu0 0
      %1384 = vmatprep.subr.bf16.mxu0 0
      %1385 = vmatpush1.bf16.msra.mxu0 0
      %1386 = vmatprep.subr.bf16.mxu0 0
      %1387 = vmatpush1.bf16.msra.mxu0 0
      %1388 = vmatprep.subr.bf16.mxu0 0
      %1389 = vmatpush1.bf16.msra.mxu0 0
      %1390 = vmatprep.subr.bf16.mxu0 0
      %1391 = vmatpush1.bf16.msra.mxu0 0
      %1392 = vmatprep.subr.bf16.mxu0 0
      %1393 = vmatpush1.bf16.msra.mxu0 %v1378
      %1394 = vmatprep.subr.bf16.mxu0 0
      %1395 = vmatpush1.bf16.msra.mxu0 %v1365
      %1396 = vmatprep.subr.bf16.mxu0 0
      %1397 = vmatpush2.bf16.msra.mxu0 0
      %1398 = vmatprep.subr.bf16.mxu0 0
      %1399 = vmatpush2.bf16.msra.mxu0 0
      %1400 = vmatprep.subr.bf16.mxu0 0
      %1401 = vmatpush2.bf16.msra.mxu0 0
      %1402 = vmatprep.subr.bf16.mxu0 0
      %1403 = vmatpush2.bf16.msra.mxu0 0
      %1404 = vmatprep.subr.bf16.mxu0 0
      %1405 = vmatpush2.bf16.msra.mxu0 0
      %1406 = vmatprep.subr.bf16.mxu0 0
      %1407 = vmatpush2.bf16.msra.mxu0 0
      %1408 = vmatprep.subr.bf16.mxu0 0
      %1409 = vmatpush2.bf16.msra.mxu0 0
      %1410 = vmatprep.subr.bf16.mxu0 0
      %1411 = vmatpush2.bf16.msra.mxu0 0
      %1412 = vmatprep.mubr.bf16.mxu0 0
      %1413 = vmatmul.mubr.bf16.gmra.mxu0 %v1370
      %v1414 = vpop.f32.mrf.mxu0
      %v1415 = vadd.f32 0.0, %v1414
      %v1416 = vpop.f32.mrf.mxu0
      %v1417 = vpop.f32.mrf.mxu0
      %v1418 = vadd.f32 0.0, %v1417
      %v1419 = vpop.f32.mrf.mxu0
      %1420 = vmatprep.mubr.bf16.mxu0 0
      %1421 = vmatmul.mubr.bf16.gmra.mxu0 %v1373
      %v1422 = vpop.f32.mrf.mxu0
      %v1423 = vadd.f32 0.0, %v1422
      %v1424 = vpop.f32.mrf.mxu0
      %v1425 = vpop.f32.mrf.mxu0
      %v1426 = vpop.f32.mrf.mxu0
      %1427 = vdwg.mxu0
      %1428 = vrot.lane.b32.xlu0 %v1258, 120
      %v1429 = vpop.permute.xlu0 %1428
      %1430 = vrot.lane.b32.xlu0 %v1259, 120
      %v1431 = vpop.permute.xlu0 %1430
      %1432 = vrot.lane.b32.xlu0 %v1258, 88
      %v1433 = vpop.permute.xlu0 %1432
      %1434 = vrot.lane.b32.xlu0 %v1259, 88
      %v1435 = vpop.permute.xlu0 %1434
      %v1437 = vsel %vm1266, %v1429, 0
      %v1440 = vsel %vm1266, %v1431, 0
      %v1443 = vsel %vm1266, %v1433, 0
      %v1446 = vsel %vm1266, %v1435, 0
      %1448 = vmatprep.subr.bf16.mxu0 0
      %1449 = vmatpush1.bf16.xpose.msra.mxu0 0
      %1450 = vmatprep.subr.bf16.mxu0 0
      %1451 = vmatpush1.bf16.xpose.msra.mxu0 0
      %1452 = vmatprep.subr.bf16.mxu0 0
      %1453 = vmatpush1.bf16.xpose.msra.mxu0 0
      %1454 = vmatprep.subr.bf16.mxu0 0
      %1455 = vmatpush1.bf16.xpose.msra.mxu0 0
      %1456 = vmatprep.subr.bf16.mxu0 0
      %1457 = vmatpush1.bf16.xpose.msra.mxu0 0
      %1458 = vmatprep.subr.bf16.mxu0 0
      %1459 = vmatpush1.bf16.xpose.msra.mxu0 0
      %1460 = vmatprep.subr.bf16.mxu0 0
      %1461 = vmatpush1.bf16.xpose.msra.mxu0 %v1446
      %1462 = vmatprep.subr.bf16.mxu0 0
      %1463 = vmatpush1.bf16.xpose.msra.mxu0 %v1443
      %1464 = vmatprep.subr.bf16.mxu0 0
      %1465 = vmatpush2.bf16.xpose.msra.mxu0 0
      %1466 = vmatprep.subr.bf16.mxu0 0
      %1467 = vmatpush2.bf16.xpose.msra.mxu0 0
      %1468 = vmatprep.subr.bf16.mxu0 0
      %1469 = vmatpush2.bf16.xpose.msra.mxu0 0
      %1470 = vmatprep.subr.bf16.mxu0 0
      %1471 = vmatpush2.bf16.xpose.msra.mxu0 0
      %1472 = vmatprep.subr.bf16.mxu0 0
      %1473 = vmatpush2.bf16.xpose.msra.mxu0 0
      %1474 = vmatprep.subr.bf16.mxu0 0
      %1475 = vmatpush2.bf16.xpose.msra.mxu0 0
      %1476 = vmatprep.subr.bf16.mxu0 0
      %1477 = vmatpush2.bf16.xpose.msra.mxu0 0
      %1478 = vmatprep.subr.bf16.mxu0 0
      %1479 = vmatpush2.bf16.xpose.msra.mxu0 0
      %1480 = vmatprep.mubr.bf16.mxu0 0
      %1481 = vmatmul.mubr.bf16.gmra.mxu0 %v1437
      %v1482 = vpop.f32.mrf.mxu0
      %v1483 = vadd.f32 0.0, %v1482
      %v1484 = vpop.f32.mrf.mxu0
      %v1485 = vpop.f32.mrf.mxu0
      %v1486 = vadd.f32 0.0, %v1485
      %v1487 = vpop.f32.mrf.mxu0
      %1488 = vmatprep.mubr.bf16.mxu0 0
      %1489 = vmatmul.mubr.bf16.gmra.mxu0 %v1440
      %v1490 = vpop.f32.mrf.mxu0
      %v1491 = vadd.f32 0.0, %v1490
      %v1492 = vpop.f32.mrf.mxu0
      %v1493 = vpop.f32.mrf.mxu0
      %v1494 = vpop.f32.mrf.mxu0
      %1495 = vdwg.mxu0
      %v1496 = vsel %vm1327, %v1483, -inf
      %1497 = vmax.xlane.f32.xlu0 %v1496
      %v1498 = vpop.xlane.xlu0 %1497
      %v1499 = vsel %vm1327, %v1486, -inf
      %1500 = vmax.xlane.f32.xlu0 %v1499
      %v1501 = vpop.xlane.xlu0 %1500
      %v1502 = vsel %vm1334, %v1491, -inf
      %1503 = vmax.xlane.f32.xlu0 %v1502
      %v1504 = vpop.xlane.xlu0 %1503
      %v1505 = vsub.f32 %v1483, %v1498
      %v1506 = vsub.f32 %v1486, %v1501
      %v1507 = vsub.f32 %v1491, %v1504
      %v1508 = vmul.f32 %v1505, 1.442695
      %v1509 = vpow.pop %v1508
      %v1510 = vmul.f32 %v1506, 1.442695
      %v1511 = vpow.pop %v1510
      %v1512 = vmul.f32 %v1507, 1.442695
      %v1513 = vpow.pop %v1512
      %v1514 = vsel %vm1327, %v1509, 0.0
      %1515 = vadd.xlane.f32.xlu0 %v1514
      %v1516 = vpop.xlane.xlu0 %1515
      %v1517 = vsel %vm1327, %v1511, 0.0
      %1518 = vadd.xlane.f32.xlu0 %v1517
      %v1519 = vpop.xlane.xlu0 %1518
      %v1520 = vsel %vm1334, %v1513, 0.0
      %1521 = vadd.xlane.f32.xlu0 %v1520
      %v1522 = vpop.xlane.xlu0 %1521
      %v1523 = vrcp.pop %v1516
      %v1524 = vrcp.pop %v1519
      %v1525 = vrcp.pop %v1522
      %v1526 = vmul.f32 %v1509, %v1523
      %v1527 = vmul.f32 %v1511, %v1524
      %v1528 = vmul.f32 %v1513, %v1525
      %v1529 = vpack.c.bf16 %v1527, %v1526
      %v1530 = vpack.c.bf16 %v1528, %v1528
      %1531 = vrot.lane.b32.xlu0 %v1258, 56
      %v1532 = vpop.permute.xlu0 %1531
      %1533 = vrot.lane.b32.xlu0 %v1259, 56
      %v1534 = vpop.permute.xlu0 %1533
      %v1537 = vsel %vm1327, %v1529, 0
      %v1540 = vsel %vm1327, %v1530, 0
      %v1543 = vand.u32 %v1534, %v1376
      %1545 = vmatprep.subr.bf16.mxu0 0
      %1546 = vmatpush1.bf16.msra.mxu0 0
      %1547 = vmatprep.subr.bf16.mxu0 0
      %1548 = vmatpush1.bf16.msra.mxu0 0
      %1549 = vmatprep.subr.bf16.mxu0 0
      %1550 = vmatpush1.bf16.msra.mxu0 0
      %1551 = vmatprep.subr.bf16.mxu0 0
      %1552 = vmatpush1.bf16.msra.mxu0 0
      %1553 = vmatprep.subr.bf16.mxu0 0
      %1554 = vmatpush1.bf16.msra.mxu0 0
      %1555 = vmatprep.subr.bf16.mxu0 0
      %1556 = vmatpush1.bf16.msra.mxu0 0
      %1557 = vmatprep.subr.bf16.mxu0 0
      %1558 = vmatpush1.bf16.msra.mxu0 %v1543
      %1559 = vmatprep.subr.bf16.mxu0 0
      %1560 = vmatpush1.bf16.msra.mxu0 %v1532
      %1561 = vmatprep.subr.bf16.mxu0 0
      %1562 = vmatpush2.bf16.msra.mxu0 0
      %1563 = vmatprep.subr.bf16.mxu0 0
      %1564 = vmatpush2.bf16.msra.mxu0 0
      %1565 = vmatprep.subr.bf16.mxu0 0
      %1566 = vmatpush2.bf16.msra.mxu0 0
      %1567 = vmatprep.subr.bf16.mxu0 0
      %1568 = vmatpush2.bf16.msra.mxu0 0
      %1569 = vmatprep.subr.bf16.mxu0 0
      %1570 = vmatpush2.bf16.msra.mxu0 0
      %1571 = vmatprep.subr.bf16.mxu0 0
      %1572 = vmatpush2.bf16.msra.mxu0 0
      %1573 = vmatprep.subr.bf16.mxu0 0
      %1574 = vmatpush2.bf16.msra.mxu0 0
      %1575 = vmatprep.subr.bf16.mxu0 0
      %1576 = vmatpush2.bf16.msra.mxu0 0
      %1577 = vmatprep.mubr.bf16.mxu0 0
      %1578 = vmatmul.mubr.bf16.gmra.mxu0 %v1537
      %v1579 = vpop.f32.mrf.mxu0
      %v1580 = vadd.f32 0.0, %v1579
      %v1581 = vpop.f32.mrf.mxu0
      %v1582 = vpop.f32.mrf.mxu0
      %v1583 = vadd.f32 0.0, %v1582
      %v1584 = vpop.f32.mrf.mxu0
      %1585 = vmatprep.mubr.bf16.mxu0 0
      %1586 = vmatmul.mubr.bf16.gmra.mxu0 %v1540
      %v1587 = vpop.f32.mrf.mxu0
      %v1588 = vadd.f32 0.0, %v1587
      %v1589 = vpop.f32.mrf.mxu0
      %v1590 = vpop.f32.mrf.mxu0
      %v1591 = vpop.f32.mrf.mxu0
      %1592 = vdwg.mxu0
      %1593 = vrot.lane.b32.xlu0 %v1258, 112
      %v1594 = vpop.permute.xlu0 %1593
      %1595 = vrot.lane.b32.xlu0 %v1259, 112
      %v1596 = vpop.permute.xlu0 %1595
      %1597 = vrot.lane.b32.xlu0 %v1258, 80
      %v1598 = vpop.permute.xlu0 %1597
      %1599 = vrot.lane.b32.xlu0 %v1259, 80
      %v1600 = vpop.permute.xlu0 %1599
      %v1602 = vsel %vm1266, %v1594, 0
      %v1605 = vsel %vm1266, %v1596, 0
      %v1608 = vsel %vm1266, %v1598, 0
      %v1611 = vsel %vm1266, %v1600, 0
      %1613 = vmatprep.subr.bf16.mxu0 0
      %1614 = vmatpush1.bf16.xpose.msra.mxu0 0
      %1615 = vmatprep.subr.bf16.mxu0 0
      %1616 = vmatpush1.bf16.xpose.msra.mxu0 0
      %1617 = vmatprep.subr.bf16.mxu0 0
      %1618 = vmatpush1.bf16.xpose.msra.mxu0 0
      %1619 = vmatprep.subr.bf16.mxu0 0
      %1620 = vmatpush1.bf16.xpose.msra.mxu0 0
      %1621 = vmatprep.subr.bf16.mxu0 0
      %1622 = vmatpush1.bf16.xpose.msra.mxu0 0
      %1623 = vmatprep.subr.bf16.mxu0 0
      %1624 = vmatpush1.bf16.xpose.msra.mxu0 0
      %1625 = vmatprep.subr.bf16.mxu0 0
      %1626 = vmatpush1.bf16.xpose.msra.mxu0 %v1611
      %1627 = vmatprep.subr.bf16.mxu0 0
      %1628 = vmatpush1.bf16.xpose.msra.mxu0 %v1608
      %1629 = vmatprep.subr.bf16.mxu0 0
      %1630 = vmatpush2.bf16.xpose.msra.mxu0 0
      %1631 = vmatprep.subr.bf16.mxu0 0
      %1632 = vmatpush2.bf16.xpose.msra.mxu0 0
      %1633 = vmatprep.subr.bf16.mxu0 0
      %1634 = vmatpush2.bf16.xpose.msra.mxu0 0
      %1635 = vmatprep.subr.bf16.mxu0 0
      %1636 = vmatpush2.bf16.xpose.msra.mxu0 0
      %1637 = vmatprep.subr.bf16.mxu0 0
      %1638 = vmatpush2.bf16.xpose.msra.mxu0 0
      %1639 = vmatprep.subr.bf16.mxu0 0
      %1640 = vmatpush2.bf16.xpose.msra.mxu0 0
      %1641 = vmatprep.subr.bf16.mxu0 0
      %1642 = vmatpush2.bf16.xpose.msra.mxu0 0
      %1643 = vmatprep.subr.bf16.mxu0 0
      %1644 = vmatpush2.bf16.xpose.msra.mxu0 0
      %1645 = vmatprep.mubr.bf16.mxu0 0
      %1646 = vmatmul.mubr.bf16.gmra.mxu0 %v1602
      %v1647 = vpop.f32.mrf.mxu0
      %v1648 = vadd.f32 0.0, %v1647
      %v1649 = vpop.f32.mrf.mxu0
      %v1650 = vpop.f32.mrf.mxu0
      %v1651 = vadd.f32 0.0, %v1650
      %v1652 = vpop.f32.mrf.mxu0
      %1653 = vmatprep.mubr.bf16.mxu0 0
      %1654 = vmatmul.mubr.bf16.gmra.mxu0 %v1605
      %v1655 = vpop.f32.mrf.mxu0
      %v1656 = vadd.f32 0.0, %v1655
      %v1657 = vpop.f32.mrf.mxu0
      %v1658 = vpop.f32.mrf.mxu0
      %v1659 = vpop.f32.mrf.mxu0
      %1660 = vdwg.mxu0
      %v1661 = vsel %vm1327, %v1648, -inf
      %1662 = vmax.xlane.f32.xlu0 %v1661
      %v1663 = vpop.xlane.xlu0 %1662
      %v1664 = vsel %vm1327, %v1651, -inf
      %1665 = vmax.xlane.f32.xlu0 %v1664
      %v1666 = vpop.xlane.xlu0 %1665
      %v1667 = vsel %vm1334, %v1656, -inf
      %1668 = vmax.xlane.f32.xlu0 %v1667
      %v1669 = vpop.xlane.xlu0 %1668
      %v1670 = vsub.f32 %v1648, %v1663
      %v1671 = vsub.f32 %v1651, %v1666
      %v1672 = vsub.f32 %v1656, %v1669
      %v1673 = vmul.f32 %v1670, 1.442695
      %v1674 = vpow.pop %v1673
      %v1675 = vmul.f32 %v1671, 1.442695
      %v1676 = vpow.pop %v1675
      %v1677 = vmul.f32 %v1672, 1.442695
      %v1678 = vpow.pop %v1677
      %v1679 = vsel %vm1327, %v1674, 0.0
      %1680 = vadd.xlane.f32.xlu0 %v1679
      %v1681 = vpop.xlane.xlu0 %1680
      %v1682 = vsel %vm1327, %v1676, 0.0
      %1683 = vadd.xlane.f32.xlu0 %v1682
      %v1684 = vpop.xlane.xlu0 %1683
      %v1685 = vsel %vm1334, %v1678, 0.0
      %1686 = vadd.xlane.f32.xlu0 %v1685
      %v1687 = vpop.xlane.xlu0 %1686
      %v1688 = vrcp.pop %v1681
      %v1689 = vrcp.pop %v1684
      %v1690 = vrcp.pop %v1687
      %v1691 = vmul.f32 %v1674, %v1688
      %v1692 = vmul.f32 %v1676, %v1689
      %v1693 = vmul.f32 %v1678, %v1690
      %v1694 = vpack.c.bf16 %v1692, %v1691
      %v1695 = vpack.c.bf16 %v1693, %v1693
      %1696 = vrot.lane.b32.xlu0 %v1258, 48
      %v1697 = vpop.permute.xlu0 %1696
      %1698 = vrot.lane.b32.xlu0 %v1259, 48
      %v1699 = vpop.permute.xlu0 %1698
      %v1702 = vsel %vm1327, %v1694, 0
      %v1705 = vsel %vm1327, %v1695, 0
      %v1708 = vand.u32 %v1699, %v1376
      %1710 = vmatprep.subr.bf16.mxu0 0
      %1711 = vmatpush1.bf16.msra.mxu0 0
      %1712 = vmatprep.subr.bf16.mxu0 0
      %1713 = vmatpush1.bf16.msra.mxu0 0
      %1714 = vmatprep.subr.bf16.mxu0 0
      %1715 = vmatpush1.bf16.msra.mxu0 0
      %1716 = vmatprep.subr.bf16.mxu0 0
      %1717 = vmatpush1.bf16.msra.mxu0 0
      %1718 = vmatprep.subr.bf16.mxu0 0
      %1719 = vmatpush1.bf16.msra.mxu0 0
      %1720 = vmatprep.subr.bf16.mxu0 0
      %1721 = vmatpush1.bf16.msra.mxu0 0
      %1722 = vmatprep.subr.bf16.mxu0 0
      %1723 = vmatpush1.bf16.msra.mxu0 %v1708
      %1724 = vmatprep.subr.bf16.mxu0 0
      %1725 = vmatpush1.bf16.msra.mxu0 %v1697
      %1726 = vmatprep.subr.bf16.mxu0 0
      %1727 = vmatpush2.bf16.msra.mxu0 0
      %1728 = vmatprep.subr.bf16.mxu0 0
      %1729 = vmatpush2.bf16.msra.mxu0 0
      %1730 = vmatprep.subr.bf16.mxu0 0
      %1731 = vmatpush2.bf16.msra.mxu0 0
      %1732 = vmatprep.subr.bf16.mxu0 0
      %1733 = vmatpush2.bf16.msra.mxu0 0
      %1734 = vmatprep.subr.bf16.mxu0 0
      %1735 = vmatpush2.bf16.msra.mxu0 0
      %1736 = vmatprep.subr.bf16.mxu0 0
      %1737 = vmatpush2.bf16.msra.mxu0 0
      %1738 = vmatprep.subr.bf16.mxu0 0
      %1739 = vmatpush2.bf16.msra.mxu0 0
      %1740 = vmatprep.subr.bf16.mxu0 0
      %1741 = vmatpush2.bf16.msra.mxu0 0
      %1742 = vmatprep.mubr.bf16.mxu0 0
      %1743 = vmatmul.mubr.bf16.gmra.mxu0 %v1702
      %v1744 = vpop.f32.mrf.mxu0
      %v1745 = vadd.f32 0.0, %v1744
      %v1746 = vpop.f32.mrf.mxu0
      %v1747 = vpop.f32.mrf.mxu0
      %v1748 = vadd.f32 0.0, %v1747
      %v1749 = vpop.f32.mrf.mxu0
      %1750 = vmatprep.mubr.bf16.mxu0 0
      %1751 = vmatmul.mubr.bf16.gmra.mxu0 %v1705
      %v1752 = vpop.f32.mrf.mxu0
      %v1753 = vadd.f32 0.0, %v1752
      %v1754 = vpop.f32.mrf.mxu0
      %v1755 = vpop.f32.mrf.mxu0
      %v1756 = vpop.f32.mrf.mxu0
      %1757 = vdwg.mxu0
      %1758 = vrot.lane.b32.xlu0 %v1258, 104
      %v1759 = vpop.permute.xlu0 %1758
      %1760 = vrot.lane.b32.xlu0 %v1259, 104
      %v1761 = vpop.permute.xlu0 %1760
      %1762 = vrot.lane.b32.xlu0 %v1258, 72
      %v1763 = vpop.permute.xlu0 %1762
      %1764 = vrot.lane.b32.xlu0 %v1259, 72
      %v1765 = vpop.permute.xlu0 %1764
      %v1767 = vsel %vm1266, %v1759, 0
      %v1770 = vsel %vm1266, %v1761, 0
      %v1773 = vsel %vm1266, %v1763, 0
      %v1776 = vsel %vm1266, %v1765, 0
      %1778 = vmatprep.subr.bf16.mxu0 0
      %1779 = vmatpush1.bf16.xpose.msra.mxu0 0
      %1780 = vmatprep.subr.bf16.mxu0 0
      %1781 = vmatpush1.bf16.xpose.msra.mxu0 0
      %1782 = vmatprep.subr.bf16.mxu0 0
      %1783 = vmatpush1.bf16.xpose.msra.mxu0 0
      %1784 = vmatprep.subr.bf16.mxu0 0
      %1785 = vmatpush1.bf16.xpose.msra.mxu0 0
      %1786 = vmatprep.subr.bf16.mxu0 0
      %1787 = vmatpush1.bf16.xpose.msra.mxu0 0
      %1788 = vmatprep.subr.bf16.mxu0 0
      %1789 = vmatpush1.bf16.xpose.msra.mxu0 0
      %1790 = vmatprep.subr.bf16.mxu0 0
      %1791 = vmatpush1.bf16.xpose.msra.mxu0 %v1776
      %1792 = vmatprep.subr.bf16.mxu0 0
      %1793 = vmatpush1.bf16.xpose.msra.mxu0 %v1773
      %1794 = vmatprep.subr.bf16.mxu0 0
      %1795 = vmatpush2.bf16.xpose.msra.mxu0 0
      %1796 = vmatprep.subr.bf16.mxu0 0
      %1797 = vmatpush2.bf16.xpose.msra.mxu0 0
      %1798 = vmatprep.subr.bf16.mxu0 0
      %1799 = vmatpush2.bf16.xpose.msra.mxu0 0
      %1800 = vmatprep.subr.bf16.mxu0 0
      %1801 = vmatpush2.bf16.xpose.msra.mxu0 0
      %1802 = vmatprep.subr.bf16.mxu0 0
      %1803 = vmatpush2.bf16.xpose.msra.mxu0 0
      %1804 = vmatprep.subr.bf16.mxu0 0
      %1805 = vmatpush2.bf16.xpose.msra.mxu0 0
      %1806 = vmatprep.subr.bf16.mxu0 0
      %1807 = vmatpush2.bf16.xpose.msra.mxu0 0
      %1808 = vmatprep.subr.bf16.mxu0 0
      %1809 = vmatpush2.bf16.xpose.msra.mxu0 0
      %1810 = vmatprep.mubr.bf16.mxu0 0
      %1811 = vmatmul.mubr.bf16.gmra.mxu0 %v1767
      %v1812 = vpop.f32.mrf.mxu0
      %v1813 = vadd.f32 0.0, %v1812
      %v1814 = vpop.f32.mrf.mxu0
      %v1815 = vpop.f32.mrf.mxu0
      %v1816 = vadd.f32 0.0, %v1815
      %v1817 = vpop.f32.mrf.mxu0
      %1818 = vmatprep.mubr.bf16.mxu0 0
      %1819 = vmatmul.mubr.bf16.gmra.mxu0 %v1770
      %v1820 = vpop.f32.mrf.mxu0
      %v1821 = vadd.f32 0.0, %v1820
      %v1822 = vpop.f32.mrf.mxu0
      %v1823 = vpop.f32.mrf.mxu0
      %v1824 = vpop.f32.mrf.mxu0
      %1825 = vdwg.mxu0
      %v1826 = vsel %vm1327, %v1813, -inf
      %1827 = vmax.xlane.f32.xlu0 %v1826
      %v1828 = vpop.xlane.xlu0 %1827
      %v1829 = vsel %vm1327, %v1816, -inf
      %1830 = vmax.xlane.f32.xlu0 %v1829
      %v1831 = vpop.xlane.xlu0 %1830
      %v1832 = vsel %vm1334, %v1821, -inf
      %1833 = vmax.xlane.f32.xlu0 %v1832
      %v1834 = vpop.xlane.xlu0 %1833
      %v1835 = vsub.f32 %v1813, %v1828
      %v1836 = vsub.f32 %v1816, %v1831
      %v1837 = vsub.f32 %v1821, %v1834
      %v1838 = vmul.f32 %v1835, 1.442695
      %v1839 = vpow.pop %v1838
      %v1840 = vmul.f32 %v1836, 1.442695
      %v1841 = vpow.pop %v1840
      %v1842 = vmul.f32 %v1837, 1.442695
      %v1843 = vpow.pop %v1842
      %v1844 = vsel %vm1327, %v1839, 0.0
      %1845 = vadd.xlane.f32.xlu0 %v1844
      %v1846 = vpop.xlane.xlu0 %1845
      %v1847 = vsel %vm1327, %v1841, 0.0
      %1848 = vadd.xlane.f32.xlu0 %v1847
      %v1849 = vpop.xlane.xlu0 %1848
      %v1850 = vsel %vm1334, %v1843, 0.0
      %1851 = vadd.xlane.f32.xlu0 %v1850
      %v1852 = vpop.xlane.xlu0 %1851
      %v1853 = vrcp.pop %v1846
      %v1854 = vrcp.pop %v1849
      %v1855 = vrcp.pop %v1852
      %v1856 = vmul.f32 %v1839, %v1853
      %v1857 = vmul.f32 %v1841, %v1854
      %v1858 = vmul.f32 %v1843, %v1855
      %v1859 = vpack.c.bf16 %v1857, %v1856
      %v1860 = vpack.c.bf16 %v1858, %v1858
      %1861 = vrot.lane.b32.xlu0 %v1258, 40
      %v1862 = vpop.permute.xlu0 %1861
      %1863 = vrot.lane.b32.xlu0 %v1259, 40
      %v1864 = vpop.permute.xlu0 %1863
      %v1867 = vsel %vm1327, %v1859, 0
      %v1870 = vsel %vm1327, %v1860, 0
      %v1873 = vand.u32 %v1864, %v1376
      %1875 = vmatprep.subr.bf16.mxu0 0
      %1876 = vmatpush1.bf16.msra.mxu0 0
      %1877 = vmatprep.subr.bf16.mxu0 0
      %1878 = vmatpush1.bf16.msra.mxu0 0
      %1879 = vmatprep.subr.bf16.mxu0 0
      %1880 = vmatpush1.bf16.msra.mxu0 0
      %1881 = vmatprep.subr.bf16.mxu0 0
      %1882 = vmatpush1.bf16.msra.mxu0 0
      %1883 = vmatprep.subr.bf16.mxu0 0
      %1884 = vmatpush1.bf16.msra.mxu0 0
      %1885 = vmatprep.subr.bf16.mxu0 0
      %1886 = vmatpush1.bf16.msra.mxu0 0
      %1887 = vmatprep.subr.bf16.mxu0 0
      %1888 = vmatpush1.bf16.msra.mxu0 %v1873
      %1889 = vmatprep.subr.bf16.mxu0 0
      %1890 = vmatpush1.bf16.msra.mxu0 %v1862
      %1891 = vmatprep.subr.bf16.mxu0 0
      %1892 = vmatpush2.bf16.msra.mxu0 0
      %1893 = vmatprep.subr.bf16.mxu0 0
      %1894 = vmatpush2.bf16.msra.mxu0 0
      %1895 = vmatprep.subr.bf16.mxu0 0
      %1896 = vmatpush2.bf16.msra.mxu0 0
      %1897 = vmatprep.subr.bf16.mxu0 0
      %1898 = vmatpush2.bf16.msra.mxu0 0
      %1899 = vmatprep.subr.bf16.mxu0 0
      %1900 = vmatpush2.bf16.msra.mxu0 0
      %1901 = vmatprep.subr.bf16.mxu0 0
      %1902 = vmatpush2.bf16.msra.mxu0 0
      %1903 = vmatprep.subr.bf16.mxu0 0
      %1904 = vmatpush2.bf16.msra.mxu0 0
      %1905 = vmatprep.subr.bf16.mxu0 0
      %1906 = vmatpush2.bf16.msra.mxu0 0
      %1907 = vmatprep.mubr.bf16.mxu0 0
      %1908 = vmatmul.mubr.bf16.gmra.mxu0 %v1867
      %v1909 = vpop.f32.mrf.mxu0
      %v1910 = vadd.f32 0.0, %v1909
      %v1911 = vpop.f32.mrf.mxu0
      %v1912 = vpop.f32.mrf.mxu0
      %v1913 = vadd.f32 0.0, %v1912
      %v1914 = vpop.f32.mrf.mxu0
      %1915 = vmatprep.mubr.bf16.mxu0 0
      %1916 = vmatmul.mubr.bf16.gmra.mxu0 %v1870
      %v1917 = vpop.f32.mrf.mxu0
      %v1918 = vadd.f32 0.0, %v1917
      %v1919 = vpop.f32.mrf.mxu0
      %v1920 = vpop.f32.mrf.mxu0
      %v1921 = vpop.f32.mrf.mxu0
      %1922 = vdwg.mxu0
      %1926 = vrot.lane.b32.xlu0 %v1580, 8
      %v1927 = vpop.permute.xlu0 %1926
      %1928 = vrot.lane.b32.xlu0 %v1583, 8
      %v1929 = vpop.permute.xlu0 %1928
      %1930 = vrot.lane.b32.xlu0 %v1588, 8
      %v1931 = vpop.permute.xlu0 %1930
      %1938 = vrot.lane.b32.xlu0 %v1745, 16
      %v1939 = vpop.permute.xlu0 %1938
      %1940 = vrot.lane.b32.xlu0 %v1748, 16
      %v1941 = vpop.permute.xlu0 %1940
      %1942 = vrot.lane.b32.xlu0 %v1753, 16
      %v1943 = vpop.permute.xlu0 %1942
      %1950 = vrot.lane.b32.xlu0 %v1910, 24
      %v1951 = vpop.permute.xlu0 %1950
      %1952 = vrot.lane.b32.xlu0 %v1913, 24
      %v1953 = vpop.permute.xlu0 %1952
      %1954 = vrot.lane.b32.xlu0 %v1918, 24
      %v1955 = vpop.permute.xlu0 %1954
      %v1959 = vsel %vm1266, %v1415, %v1927
      %v1960 = vsel %vm1266, %v1418, %v1929
      %v1961 = vsel %vm1266, %v1423, %v1931
      %vm1962 = vcmask 130048
      %v1963 = vsel %vm1962, %v1959, %v1939
      %v1964 = vsel %vm1962, %v1960, %v1941
      %v1965 = vsel %vm1962, %v1961, %v1943
      %vm1966 = vcmask 195584
      %v1967 = vsel %vm1966, %v1963, %v1951
      %v1968 = vsel %vm1966, %v1964, %v1953
      %v1969 = vsel %vm1966, %v1965, %v1955
      %v1970 = vpack.c.bf16 %v1968, %v1967
      %v1971 = vpack.c.bf16 %v1969, %v1969
      %v1972 = vld [vmem:[%s10] sm:$0xf]
      %v1973 = vld [vmem:[%s10 + $0x4] sm:$0xf]
      %v1974 = vld [vmem:[%s10 + $0x8] sm:$0xf]
      %v1975 = vld [vmem:[%s10 + $0xc] sm:$0xf]
      %v1980 = vunpack.c.l.b16 %v1972
      %v1981 = vunpack.c.l.b16 %v1973
      %v1982 = vunpack.c.l.b16 %v1974
      %v1983 = vunpack.c.l.b16 %v1975
      %v1984 = vpack.c.b16 %v1981, %v1980
      %v1985 = vpack.c.b16 %v1983, %v1982
      %v1989 = vsel %vm614, %v1970, 0
      %v1992 = vsel %vm614, %v1971, 0
      %1994 = vmatprep.subr.bf16.mxu0 0
      %1995 = vmatpush1.bf16.msra.mxu0 0
      %1996 = vmatprep.subr.bf16.mxu0 0
      %1997 = vmatpush1.bf16.msra.mxu0 0
      %1998 = vmatprep.subr.bf16.mxu0 0
      %1999 = vmatpush1.bf16.msra.mxu0 0
      %2000 = vmatprep.subr.bf16.mxu0 0
      %2001 = vmatpush1.bf16.msra.mxu0 0
      %2002 = vmatprep.subr.bf16.mxu0 0
      %2003 = vmatpush1.bf16.msra.mxu0 0
      %2004 = vmatprep.subr.bf16.mxu0 0
      %2005 = vmatpush1.bf16.msra.mxu0 0
      %2006 = vmatprep.subr.bf16.mxu0 0
      %2007 = vmatpush1.bf16.msra.mxu0 %v1985
      %2008 = vmatprep.subr.bf16.mxu0 0
      %2009 = vmatpush1.bf16.msra.mxu0 %v1984
      %2010 = vmatprep.subr.bf16.mxu0 0
      %2011 = vmatpush2.bf16.msra.mxu0 0
      %2012 = vmatprep.subr.bf16.mxu0 0
      %2013 = vmatpush2.bf16.msra.mxu0 0
      %2014 = vmatprep.subr.bf16.mxu0 0
      %2015 = vmatpush2.bf16.msra.mxu0 0
      %2016 = vmatprep.subr.bf16.mxu0 0
      %2017 = vmatpush2.bf16.msra.mxu0 0
      %2018 = vmatprep.subr.bf16.mxu0 0
      %2019 = vmatpush2.bf16.msra.mxu0 0
      %2020 = vmatprep.subr.bf16.mxu0 0
      %2021 = vmatpush2.bf16.msra.mxu0 0
      %2022 = vmatprep.subr.bf16.mxu0 0
      %2023 = vmatpush2.bf16.msra.mxu0 0
      %2024 = vmatprep.subr.bf16.mxu0 0
      %2025 = vmatpush2.bf16.msra.mxu0 0
      %2026 = vmatprep.mubr.bf16.mxu0 0
      %2027 = vmatmul.mubr.bf16.gmra.mxu0 %v1989
      %v2028 = vpop.f32.mrf.mxu0
      %v2029 = vadd.f32 0.0, %v2028
      %v2030 = vpop.f32.mrf.mxu0
      %v2031 = vpop.f32.mrf.mxu0
      %v2032 = vadd.f32 0.0, %v2031
      %v2033 = vpop.f32.mrf.mxu0
      %2034 = vmatprep.mubr.bf16.mxu0 0
      %2035 = vmatmul.mubr.bf16.gmra.mxu0 %v1992
      %v2036 = vpop.f32.mrf.mxu0
      %v2037 = vadd.f32 0.0, %v2036
      %v2038 = vpop.f32.mrf.mxu0
      %v2039 = vpop.f32.mrf.mxu0
      %v2040 = vpop.f32.mrf.mxu0
      %2041 = vdwg.mxu0
      %v2042 = vadd.f32 %v653, %v2029
      %v2043 = vadd.f32 %v654, %v2032
      %v2044 = vadd.f32 %v655, %v2037
      %v2045 = vld [vmem:[%s11] sm:$0x1]
      %v2047 = vlaneseq
      %v2048 = vshrl.u32 %v2047, 7
      %v2049 = vsub.s32 0, %v2048
      %v2050 = vrot.slane %v2045, %v2049
      %v2052 = vadd.f32 %v2042, %v2050
      %v2053 = vadd.f32 %v2043, %v2050
      %v2054 = vadd.f32 %v2044, %v2050
      %v2055 = vsel %vm614, %v2052, 0.0
      %2056 = vadd.xlane.f32.xlu0 %v2055
      %v2057 = vpop.xlane.xlu0 %2056
      %v2058 = vsel %vm614, %v2053, 0.0
      %2059 = vadd.xlane.f32.xlu0 %v2058
      %v2060 = vpop.xlane.xlu0 %2059
      %v2061 = vsel %vm663, %v2054, 0.0
      %2062 = vadd.xlane.f32.xlu0 %v2061
      %v2063 = vpop.xlane.xlu0 %2062
      %v2064 = vmul.f32 %v2057, %v621
      %v2065 = vmul.f32 %v2060, %v621
      %v2066 = vmul.f32 %v2063, %v621
      %v2067 = vsub.f32 %v2052, %v2064
      %v2068 = vsub.f32 %v2053, %v2065
      %v2069 = vsub.f32 %v2054, %v2066
      %v2070 = vmul.f32 %v2067, %v2067
      %v2071 = vmul.f32 %v2068, %v2068
      %v2072 = vmul.f32 %v2069, %v2069
      %v2073 = vsel %vm614, %v2070, 0.0
      %2074 = vadd.xlane.f32.xlu0 %v2073
      %v2075 = vpop.xlane.xlu0 %2074
      %v2076 = vsel %vm614, %v2071, 0.0
      %2077 = vadd.xlane.f32.xlu0 %v2076
      %v2078 = vpop.xlane.xlu0 %2077
      %v2079 = vsel %vm663, %v2072, 0.0
      %2080 = vadd.xlane.f32.xlu0 %v2079
      %v2081 = vpop.xlane.xlu0 %2080
      %v2082 = vmul.f32 %v2075, %v621
      %v2083 = vmul.f32 %v2078, %v621
      %v2084 = vmul.f32 %v2081, %v621
      %v2085 = vadd.f32 %v2082, 1e-05
      %v2086 = vadd.f32 %v2083, 1e-05
      %v2087 = vadd.f32 %v2084, 1e-05
      %v2088 = vrsqrt.pop %v2085
      %v2089 = vrsqrt.pop %v2086
      %v2090 = vrsqrt.pop %v2087
      %v2091 = vmul.f32 %v2067, %v2088
      %v2092 = vmul.f32 %v2068, %v2089
      %v2093 = vmul.f32 %v2069, %v2090
      %v2094 = vlaneseq
      %v2095 = vshrl.u32 %v2094, 7
      %v2096 = vsub.s32 2, %v2095
      %v2097 = vrot.slane %v656, %v2096
      %v2098 = vmul.f32 %v2091, %v2097
      %v2099 = vmul.f32 %v2092, %v2097
      %v2100 = vmul.f32 %v2093, %v2097
      %v2101 = vlaneseq
      %v2102 = vshrl.u32 %v2101, 7
      %v2103 = vsub.s32 3, %v2102
      %v2104 = vrot.slane %v656, %v2103
      %v2105 = vadd.f32 %v2098, %v2104
      %v2106 = vadd.f32 %v2099, %v2104
      %v2107 = vadd.f32 %v2100, %v2104
      %v2108 = vpack.c.bf16 %v2106, %v2105
      %v2109 = vpack.c.bf16 %v2107, %v2107
      %v2110 = vld [vmem:[%s12] sm:$0xf]
      %v2111 = vld [vmem:[%s12 + $0x4] sm:$0xf]
      %v2112 = vld [vmem:[%s12 + $0x8] sm:$0xf]
      %v2113 = vld [vmem:[%s12 + $0xc] sm:$0xf]
      %v2114 = vld [vmem:[%s13] sm:$0x1]
      %v2116 = vlaneseq
      %v2117 = vshrl.u32 %v2116, 7
      %v2118 = vsub.s32 0, %v2117
      %v2119 = vrot.slane %v2114, %v2118
      %v2125 = vunpack.c.l.b16 %v2110
      %v2126 = vunpack.c.l.b16 %v2111
      %v2127 = vunpack.c.l.b16 %v2112
      %v2128 = vunpack.c.l.b16 %v2113
      %v2129 = vpack.c.b16 %v2126, %v2125
      %v2130 = vpack.c.b16 %v2128, %v2127
      %v2134 = vsel %vm614, %v2108, 0
      %v2137 = vsel %vm614, %v2109, 0
      %2139 = vmatprep.subr.bf16.mxu0 0
      %2140 = vmatpush1.bf16.msra.mxu0 0
      %2141 = vmatprep.subr.bf16.mxu0 0
      %2142 = vmatpush1.bf16.msra.mxu0 0
      %2143 = vmatprep.subr.bf16.mxu0 0
      %2144 = vmatpush1.bf16.msra.mxu0 0
      %2145 = vmatprep.subr.bf16.mxu0 0
      %2146 = vmatpush1.bf16.msra.mxu0 0
      %2147 = vmatprep.subr.bf16.mxu0 0
      %2148 = vmatpush1.bf16.msra.mxu0 0
      %2149 = vmatprep.subr.bf16.mxu0 0
      %2150 = vmatpush1.bf16.msra.mxu0 0
      %2151 = vmatprep.subr.bf16.mxu0 0
      %2152 = vmatpush1.bf16.msra.mxu0 %v2130
      %2153 = vmatprep.subr.bf16.mxu0 0
      %2154 = vmatpush1.bf16.msra.mxu0 %v2129
      %2155 = vmatprep.subr.bf16.mxu0 0
      %2156 = vmatpush2.bf16.msra.mxu0 0
      %2157 = vmatprep.subr.bf16.mxu0 0
      %2158 = vmatpush2.bf16.msra.mxu0 0
      %2159 = vmatprep.subr.bf16.mxu0 0
      %2160 = vmatpush2.bf16.msra.mxu0 0
      %2161 = vmatprep.subr.bf16.mxu0 0
      %2162 = vmatpush2.bf16.msra.mxu0 0
      %2163 = vmatprep.subr.bf16.mxu0 0
      %2164 = vmatpush2.bf16.msra.mxu0 0
      %2165 = vmatprep.subr.bf16.mxu0 0
      %2166 = vmatpush2.bf16.msra.mxu0 0
      %2167 = vmatprep.subr.bf16.mxu0 0
      %2168 = vmatpush2.bf16.msra.mxu0 0
      %2169 = vmatprep.subr.bf16.mxu0 0
      %2170 = vmatpush2.bf16.msra.mxu0 0
      %2171 = vmatprep.mubr.bf16.mxu0 0
      %2172 = vmatmul.mubr.bf16.gmra.mxu0 %v2134
      %v2173 = vpop.f32.mrf.mxu0
      %v2174 = vadd.f32 %v2119, %v2173
      %v2175 = vpop.f32.mrf.mxu0
      %v2176 = vpop.f32.mrf.mxu0
      %v2177 = vadd.f32 %v2119, %v2176
      %v2178 = vpop.f32.mrf.mxu0
      %2179 = vmatprep.mubr.bf16.mxu0 0
      %2180 = vmatmul.mubr.bf16.gmra.mxu0 %v2137
      %v2181 = vpop.f32.mrf.mxu0
      %v2182 = vadd.f32 %v2119, %v2181
      %v2183 = vpop.f32.mrf.mxu0
      %v2184 = vpop.f32.mrf.mxu0
      %v2185 = vpop.f32.mrf.mxu0
      %2186 = vdwg.mxu0
      %v2187 = vmul.f32 %v2174, 0.5
      %v2188 = vmul.f32 %v2177, 0.5
      %v2189 = vmul.f32 %v2182, 0.5
      %v2190 = vmul.f32 %v2174, 0.044715
      %v2191 = vmul.f32 %v2177, 0.044715
      %v2192 = vmul.f32 %v2182, 0.044715
      %v2193 = vmul.f32 %v2190, %v2174
      %v2194 = vmul.f32 %v2191, %v2177
      %v2195 = vmul.f32 %v2192, %v2182
      %v2196 = vmul.f32 %v2193, %v2174
      %v2197 = vmul.f32 %v2194, %v2177
      %v2198 = vmul.f32 %v2195, %v2182
      %v2199 = vadd.f32 %v2174, %v2196
      %v2200 = vadd.f32 %v2177, %v2197
      %v2201 = vadd.f32 %v2182, %v2198
      %v2202 = vmul.f32 %v2199, 0.7978846
      %v2203 = vmul.f32 %v2200, 0.7978846
      %v2204 = vmul.f32 %v2201, 0.7978846
      %v2205 = vtanh.pop %v2202
      %v2206 = vtanh.pop %v2203
      %v2207 = vtanh.pop %v2204
      %v2208 = vadd.f32 %v2205, 1.0
      %v2209 = vadd.f32 %v2206, 1.0
      %v2210 = vadd.f32 %v2207, 1.0
      %v2211 = vmul.f32 %v2187, %v2208
      %v2212 = vmul.f32 %v2188, %v2209
      %v2213 = vmul.f32 %v2189, %v2210
      %v2214 = vpack.c.bf16 %v2212, %v2211
      %v2215 = vpack.c.bf16 %v2213, %v2213
      %v2216 = vld [vmem:[%s14] sm:$0xf]
      %v2217 = vld [vmem:[%s14 + $0x4] sm:$0xf]
      %v2218 = vld [vmem:[%s14 + $0x8] sm:$0xf]
      %v2219 = vld [vmem:[%s14 + $0xc] sm:$0xf]
      %v2220 = vld [vmem:[%s14 + $0x10] sm:$0xf]
      %v2221 = vld [vmem:[%s14 + $0x14] sm:$0xf]
      %v2222 = vld [vmem:[%s14 + $0x18] sm:$0xf]
      %v2223 = vld [vmem:[%s14 + $0x1c] sm:$0xf]
      %v2224 = vld [vmem:[%s14 + $0x20] sm:$0xf]
      %v2225 = vld [vmem:[%s14 + $0x24] sm:$0xf]
      %v2226 = vld [vmem:[%s14 + $0x28] sm:$0xf]
      %v2227 = vld [vmem:[%s14 + $0x2c] sm:$0xf]
      %v2228 = vld [vmem:[%s14 + $0x30] sm:$0xf]
      %v2229 = vld [vmem:[%s14 + $0x34] sm:$0xf]
      %v2230 = vld [vmem:[%s14 + $0x38] sm:$0xf]
      %v2231 = vld [vmem:[%s14 + $0x3c] sm:$0xf]
      %v2248 = vunpack.c.l.b16 %v2216
      %v2249 = vunpack.c.l.b16 %v2217
      %v2250 = vunpack.c.l.b16 %v2218
      %v2251 = vunpack.c.l.b16 %v2219
      %v2252 = vunpack.c.l.b16 %v2220
      %v2253 = vunpack.c.l.b16 %v2221
      %v2254 = vunpack.c.l.b16 %v2222
      %v2255 = vunpack.c.l.b16 %v2223
      %v2256 = vunpack.c.l.b16 %v2224
      %v2257 = vunpack.c.l.b16 %v2225
      %v2258 = vunpack.c.l.b16 %v2226
      %v2259 = vunpack.c.l.b16 %v2227
      %v2260 = vunpack.c.l.b16 %v2228
      %v2261 = vunpack.c.l.b16 %v2229
      %v2262 = vunpack.c.l.b16 %v2230
      %v2263 = vunpack.c.l.b16 %v2231
      %v2264 = vpack.c.b16 %v2249, %v2248
      %v2265 = vpack.c.b16 %v2251, %v2250
      %v2266 = vpack.c.b16 %v2253, %v2252
      %v2267 = vpack.c.b16 %v2255, %v2254
      %v2268 = vpack.c.b16 %v2257, %v2256
      %v2269 = vpack.c.b16 %v2259, %v2258
      %v2270 = vpack.c.b16 %v2261, %v2260
      %v2271 = vpack.c.b16 %v2263, %v2262
      %2280 = vmatprep.subr.bf16.mxu0 0
      %2281 = vmatpush1.bf16.msra.mxu0 %v2271
      %2282 = vmatprep.subr.bf16.mxu0 0
      %2283 = vmatpush1.bf16.msra.mxu0 %v2270
      %2284 = vmatprep.subr.bf16.mxu0 0
      %2285 = vmatpush1.bf16.msra.mxu0 %v2269
      %2286 = vmatprep.subr.bf16.mxu0 0
      %2287 = vmatpush1.bf16.msra.mxu0 %v2268
      %2288 = vmatprep.subr.bf16.mxu0 0
      %2289 = vmatpush1.bf16.msra.mxu0 %v2267
      %2290 = vmatprep.subr.bf16.mxu0 0
      %2291 = vmatpush1.bf16.msra.mxu0 %v2266
      %2292 = vmatprep.subr.bf16.mxu0 0
      %2293 = vmatpush1.bf16.msra.mxu0 %v2265
      %2294 = vmatprep.subr.bf16.mxu0 0
      %2295 = vmatpush1.bf16.msra.mxu0 %v2264
      %2296 = vmatprep.subr.bf16.mxu0 0
      %2297 = vmatpush2.bf16.msra.mxu0 0
      %2298 = vmatprep.subr.bf16.mxu0 0
      %2299 = vmatpush2.bf16.msra.mxu0 0
      %2300 = vmatprep.subr.bf16.mxu0 0
      %2301 = vmatpush2.bf16.msra.mxu0 0
      %2302 = vmatprep.subr.bf16.mxu0 0
      %2303 = vmatpush2.bf16.msra.mxu0 0
      %2304 = vmatprep.subr.bf16.mxu0 0
      %2305 = vmatpush2.bf16.msra.mxu0 0
      %2306 = vmatprep.subr.bf16.mxu0 0
      %2307 = vmatpush2.bf16.msra.mxu0 0
      %2308 = vmatprep.subr.bf16.mxu0 0
      %2309 = vmatpush2.bf16.msra.mxu0 0
      %2310 = vmatprep.subr.bf16.mxu0 0
      %2311 = vmatpush2.bf16.msra.mxu0 0
      %2312 = vmatprep.mubr.bf16.mxu0 0
      %2313 = vmatmul.mubr.bf16.gmra.mxu0 %v2214
      %v2314 = vpop.f32.mrf.mxu0
      %v2315 = vadd.f32 0.0, %v2314
      %v2316 = vpop.f32.mrf.mxu0
      %v2317 = vpop.f32.mrf.mxu0
      %v2318 = vadd.f32 0.0, %v2317
      %v2319 = vpop.f32.mrf.mxu0
      %2320 = vmatprep.mubr.bf16.mxu0 0
      %2321 = vmatmul.mubr.bf16.gmra.mxu0 %v2215
      %v2322 = vpop.f32.mrf.mxu0
      %v2323 = vadd.f32 0.0, %v2322
      %v2324 = vpop.f32.mrf.mxu0
      %v2325 = vpop.f32.mrf.mxu0
      %v2326 = vpop.f32.mrf.mxu0
      %2327 = vdwg.mxu0
      %v2328 = vadd.f32 %v2052, %v2315
      %v2329 = vadd.f32 %v2053, %v2318
      %v2330 = vadd.f32 %v2054, %v2323
      %v2331 = vld [vmem:[%s15] sm:$0x1]
      %v2333 = vlaneseq
      %v2334 = vshrl.u32 %v2333, 7
      %v2335 = vsub.s32 0, %v2334
      %v2336 = vrot.slane %v2331, %v2335
      %v2338 = vadd.f32 %v2328, %v2336
      %v2339 = vadd.f32 %v2329, %v2336
      %v2340 = vadd.f32 %v2330, %v2336
      %s2341 = scalar_lea.vmem %s6, 4
      %v2342 = vld [vmem:[%s2341] sm:$0xf]
      %v2343 = vsel %vm614, %v2338, 0.0
      %2344 = vadd.xlane.f32.xlu0 %v2343
      %v2345 = vpop.xlane.xlu0 %2344
      %v2346 = vsel %vm614, %v2339, 0.0
      %2347 = vadd.xlane.f32.xlu0 %v2346
      %v2348 = vpop.xlane.xlu0 %2347
      %v2349 = vsel %vm663, %v2340, 0.0
      %2350 = vadd.xlane.f32.xlu0 %v2349
      %v2351 = vpop.xlane.xlu0 %2350
      %v2352 = vmul.f32 %v2345, %v621
      %v2353 = vmul.f32 %v2348, %v621
      %v2354 = vmul.f32 %v2351, %v621
      %v2355 = vsub.f32 %v2338, %v2352
      %v2356 = vsub.f32 %v2339, %v2353
      %v2357 = vsub.f32 %v2340, %v2354
      %v2358 = vmul.f32 %v2355, %v2355
      %v2359 = vmul.f32 %v2356, %v2356
      %v2360 = vmul.f32 %v2357, %v2357
      %v2361 = vsel %vm614, %v2358, 0.0
      %2362 = vadd.xlane.f32.xlu0 %v2361
      %v2363 = vpop.xlane.xlu0 %2362
      %v2364 = vsel %vm614, %v2359, 0.0
      %2365 = vadd.xlane.f32.xlu0 %v2364
      %v2366 = vpop.xlane.xlu0 %2365
      %v2367 = vsel %vm663, %v2360, 0.0
      %2368 = vadd.xlane.f32.xlu0 %v2367
      %v2369 = vpop.xlane.xlu0 %2368
      %v2370 = vmul.f32 %v2363, %v621
      %v2371 = vmul.f32 %v2366, %v621
      %v2372 = vmul.f32 %v2369, %v621
      %v2373 = vadd.f32 %v2370, 1e-05
      %v2374 = vadd.f32 %v2371, 1e-05
      %v2375 = vadd.f32 %v2372, 1e-05
      %v2376 = vrsqrt.pop %v2373
      %v2377 = vrsqrt.pop %v2374
      %v2378 = vrsqrt.pop %v2375
      %v2379 = vmul.f32 %v2355, %v2376
      %v2380 = vmul.f32 %v2356, %v2377
      %v2381 = vmul.f32 %v2357, %v2378
      %v2382 = vlaneseq
      %v2383 = vshrl.u32 %v2382, 7
      %v2384 = vsub.s32 0, %v2383
      %v2385 = vrot.slane %v2342, %v2384
      %v2386 = vmul.f32 %v2379, %v2385
      %v2387 = vmul.f32 %v2380, %v2385
      %v2388 = vmul.f32 %v2381, %v2385
      %v2389 = vlaneseq
      %v2390 = vshrl.u32 %v2389, 7
      %v2391 = vsub.s32 1, %v2390
      %v2392 = vrot.slane %v2342, %v2391
      %v2393 = vadd.f32 %v2386, %v2392
      %v2394 = vadd.f32 %v2387, %v2392
      %v2395 = vadd.f32 %v2388, %v2392
      %v2396 = vmul.f32 %v2393, %v722
      %v2397 = vmul.f32 %v2394, %v721
      %v2398 = vmul.f32 %v2393, %v740
      %v2399 = vmul.f32 %v2394, %v739
      %v2400 = vmul.f32 %v2393, %v750
      %v2401 = vmul.f32 %v2394, %v749
      %v2402 = vmul.f32 %v2393, %v758
      %v2403 = vmul.f32 %v2394, %v760
      %v2404 = vmul.f32 %v2393, %v720
      %v2405 = vmul.f32 %v2394, %v722
      %v2406 = vmul.f32 %v2393, %v738
      %v2407 = vmul.f32 %v2394, %v740
      %v2410 = vrot.slane %v2393, 1
      %v2411 = vsel %vm747, %v776, %v2410
      %v2412 = vrot.slane %v2394, 1
      %v2413 = vsel %vm747, %v2410, %v2412
      %2414 = vrot.lane.b32.xlu0 %v2411, 32
      %v2415 = vpop.permute.xlu0 %2414
      %2416 = vrot.lane.b32.xlu0 %v2413, 32
      %v2417 = vpop.permute.xlu0 %2416
      %2418 = vrot.lane.b32.xlu0 %v2412, 32
      %v2419 = vpop.permute.xlu0 %2418
      %v2425 = vrot.slane %v2398, 2
      %v2426 = vsel %vm793, %v794, %v2425
      %v2427 = vrot.slane %v2399, 2
      %v2428 = vsel %vm793, %v2425, %v2427
      %2429 = vrot.lane.b32.xlu0 %v2426, 64
      %v2430 = vpop.permute.xlu0 %2429
      %2431 = vrot.lane.b32.xlu0 %v2428, 64
      %v2432 = vpop.permute.xlu0 %2431
      %2433 = vrot.lane.b32.xlu0 %v2427, 64
      %v2434 = vpop.permute.xlu0 %2433
      %v2440 = vrot.slane %v2400, 4
      %v2441 = vsel %vm811, %v812, %v2440
      %v2442 = vrot.slane %v2401, 4
      %v2443 = vsel %vm811, %v2440, %v2442
      %2444 = vrot.lane.b32.xlu0 %v2441, 96
      %v2445 = vpop.permute.xlu0 %2444
      %2446 = vrot.lane.b32.xlu0 %v2443, 96
      %v2447 = vpop.permute.xlu0 %2446
      %2448 = vrot.lane.b32.xlu0 %v2442, 96
      %v2449 = vpop.permute.xlu0 %2448
      %v2453 = vrot.slane %v2393, 5
      %v2454 = vrot.slane %v2394, 5
      %v2455 = vsel %vm719, %v2453, %v2454
      %v2461 = vrot.slane %v2402, 6
      %v2462 = vrot.slane %v2403, 6
      %v2463 = vsel %vm835, %v2461, %v2462
      %v2464 = vsel %vm835, %v2462, %v839
      %2465 = vrot.lane.b32.xlu0 %v2461, 32
      %v2466 = vpop.permute.xlu0 %2465
      %2467 = vrot.lane.b32.xlu0 %v2463, 32
      %v2468 = vpop.permute.xlu0 %2467
      %2469 = vrot.lane.b32.xlu0 %v2464, 32
      %v2470 = vpop.permute.xlu0 %2469
      %2476 = vrot.lane.b32.xlu0 %v2404, 64
      %v2477 = vpop.permute.xlu0 %2476
      %2478 = vrot.lane.b32.xlu0 %v2405, 64
      %v2479 = vpop.permute.xlu0 %2478
      %v2482 = vsel %vm747, %v2412, %v776
      %2483 = vrot.lane.b32.xlu0 %v2413, 96
      %v2484 = vpop.permute.xlu0 %2483
      %2485 = vrot.lane.b32.xlu0 %v2482, 96
      %v2486 = vpop.permute.xlu0 %2485
      %v2491 = vrot.slane %v2406, 2
      %v2492 = vrot.slane %v2407, 2
      %v2493 = vsel %vm793, %v2491, %v2492
      %v2494 = vsel %vm793, %v2492, %v878
      %v2497 = vsel %vm614, %v726, %v2415
      %v2498 = vsel %vm614, %v2396, %v2417
      %v2499 = vsel %vm614, %v2397, %v2419
      %v2500 = vsel %vm569, %v2497, %v2430
      %v2501 = vsel %vm569, %v2498, %v2432
      %v2502 = vsel %vm569, %v2499, %v2434
      %v2503 = vsel %vm889, %v2500, %v2445
      %v2504 = vsel %vm889, %v2501, %v2447
      %v2505 = vsel %vm889, %v2502, %v2449
      %v2506 = vsel %vm614, %v2453, %v2466
      %v2507 = vsel %vm614, %v2455, %v2468
      %v2508 = vsel %vm614, %v2454, %v2470
      %v2509 = vsel %vm569, %v2506, %v2477
      %v2510 = vsel %vm569, %v2507, %v2479
      %v2511 = vsel %vm569, %v2508, %v858
      %v2512 = vsel %vm889, %v2509, %v2484
      %v2513 = vsel %vm889, %v2510, %v2486
      %v2514 = vsel %vm889, %v2511, %v868
      %v2515 = vpack.c.bf16 %v2504, %v2503
      %v2516 = vpack.c.bf16 %v2513, %v2512
      %v2517 = vpack.c.bf16 %v2494, %v2493
      %v2518 = vpack.c.bf16 %v2505, %v2505
      %v2519 = vpack.c.bf16 %v2514, %v2514
      %s2520 = scalar_lea.vmem %s7, 144
      %v2521 = vld [vmem:[%s2520] sm:$0xf]
      %v2522 = vld [vmem:[%s2520 + $0x4] sm:$0xf]
      %v2523 = vld [vmem:[%s2520 + $0x8] sm:$0xf]
      %v2524 = vld [vmem:[%s2520 + $0xc] sm:$0xf]
      %v2525 = vld [vmem:[%s2520 + $0x10] sm:$0xf]
      %v2526 = vld [vmem:[%s2520 + $0x14] sm:$0xf]
      %v2527 = vld [vmem:[%s2520 + $0x18] sm:$0xf]
      %v2528 = vld [vmem:[%s2520 + $0x1c] sm:$0xf]
      %v2529 = vld [vmem:[%s2520 + $0x20] sm:$0xf]
      %v2530 = vld [vmem:[%s2520 + $0x24] sm:$0xf]
      %v2531 = vld [vmem:[%s2520 + $0x28] sm:$0xf]
      %v2532 = vld [vmem:[%s2520 + $0x2c] sm:$0xf]
      %v2533 = vld [vmem:[%s2520 + $0x30] sm:$0xf]
      %v2534 = vld [vmem:[%s2520 + $0x34] sm:$0xf]
      %v2535 = vld [vmem:[%s2520 + $0x38] sm:$0xf]
      %v2536 = vld [vmem:[%s2520 + $0x3c] sm:$0xf]
      %v2537 = vld [vmem:[%s2520 + $0x40] sm:$0xf]
      %v2538 = vld [vmem:[%s2520 + $0x44] sm:$0xf]
      %v2539 = vld [vmem:[%s2520 + $0x48] sm:$0xf]
      %v2540 = vld [vmem:[%s2520 + $0x4c] sm:$0xf]
      %v2541 = vld [vmem:[%s2520 + $0x50] sm:$0xf]
      %v2542 = vld [vmem:[%s2520 + $0x54] sm:$0xf]
      %v2543 = vld [vmem:[%s2520 + $0x58] sm:$0xf]
      %v2544 = vld [vmem:[%s2520 + $0x5c] sm:$0xf]
      %v2545 = vld [vmem:[%s2520 + $0x60] sm:$0xf]
      %v2546 = vld [vmem:[%s2520 + $0x64] sm:$0xf]
      %v2547 = vld [vmem:[%s2520 + $0x68] sm:$0xf]
      %v2548 = vld [vmem:[%s2520 + $0x6c] sm:$0xf]
      %v2549 = vld [vmem:[%s2520 + $0x70] sm:$0xf]
      %v2550 = vld [vmem:[%s2520 + $0x74] sm:$0xf]
      %v2551 = vld [vmem:[%s2520 + $0x78] sm:$0xf]
      %v2552 = vld [vmem:[%s2520 + $0x7c] sm:$0xf]
      %v2553 = vld [vmem:[%s2520 + $0x80] sm:$0xf]
      %v2554 = vld [vmem:[%s2520 + $0x84] sm:$0xf]
      %v2555 = vld [vmem:[%s2520 + $0x88] sm:$0xf]
      %v2556 = vld [vmem:[%s2520 + $0x8c] sm:$0xf]
      %s2557 = scalar_lea.vmem %s8, 1
      %v2558 = vld [vmem:[%s2557] sm:$0x1]
      %v2560 = vlaneseq
      %v2561 = vshrl.u32 %v2560, 7
      %v2562 = vsub.s32 0, %v2561
      %v2563 = vrot.slane %v2558, %v2562
      %v2566 = vshrl.u32 %v2515, 16
      %v2568 = vrot.slane %v2566, 1
      %v2569 = vshll.u32 %v2515, 16
      %v2571 = vrot.slane %v2569, 2
      %v2572 = vor.u32 %v2568, %v2571
      %v2574 = vshrl.u32 %v2518, 16
      %v2576 = vrot.slane %v2574, 1
      %v2577 = vshll.u32 %v2518, 16
      %v2579 = vrot.slane %v2577, 2
      %v2580 = vor.u32 %v2576, %v2579
      %v2581 = vsel %vm951, %v2572, %v2580
      %v2583 = vshrl.u32 %v2516, 16
      %v2585 = vrot.slane %v2583, 1
      %v2586 = vshll.u32 %v2516, 16
      %v2588 = vrot.slane %v2586, 2
      %v2589 = vor.u32 %v2585, %v2588
      %v2591 = vshrl.u32 %v2519, 16
      %v2593 = vrot.slane %v2591, 1
      %v2594 = vshll.u32 %v2519, 16
      %v2596 = vrot.slane %v2594, 2
      %v2597 = vor.u32 %v2593, %v2596
      %v2598 = vsel %vm951, %v2589, %v2597
      %v2600 = vshrl.u32 %v2517, 16
      %v2602 = vrot.slane %v2600, 1
      %v2603 = vshll.u32 %v2517, 16
      %v2605 = vrot.slane %v2603, 2
      %v2606 = vor.u32 %v2602, %v2605
      %v2607 = vsel %vm951, %v2606, %v1001
      %v2646 = vunpack.c.l.b16 %v2521
      %v2647 = vunpack.c.l.b16 %v2522
      %v2648 = vunpack.c.l.b16 %v2523
      %v2649 = vunpack.c.l.b16 %v2524
      %v2650 = vunpack.c.l.b16 %v2525
      %v2651 = vunpack.c.l.b16 %v2526
      %v2652 = vunpack.c.l.b16 %v2527
      %v2653 = vunpack.c.l.b16 %v2528
      %v2654 = vunpack.c.l.b16 %v2529
      %v2655 = vunpack.c.l.b16 %v2530
      %v2656 = vunpack.c.l.b16 %v2531
      %v2657 = vunpack.c.l.b16 %v2532
      %v2658 = vunpack.c.l.b16 %v2533
      %v2659 = vunpack.c.l.b16 %v2534
      %v2660 = vunpack.c.l.b16 %v2535
      %v2661 = vunpack.c.l.b16 %v2536
      %v2662 = vunpack.c.l.b16 %v2537
      %v2663 = vunpack.c.l.b16 %v2538
      %v2664 = vunpack.c.l.b16 %v2539
      %v2665 = vunpack.c.l.b16 %v2540
      %v2666 = vunpack.c.l.b16 %v2541
      %v2667 = vunpack.c.l.b16 %v2542
      %v2668 = vunpack.c.l.b16 %v2543
      %v2669 = vunpack.c.l.b16 %v2544
      %v2670 = vunpack.c.l.b16 %v2545
      %v2671 = vunpack.c.l.b16 %v2546
      %v2672 = vunpack.c.l.b16 %v2547
      %v2673 = vunpack.c.l.b16 %v2548
      %v2674 = vunpack.c.l.b16 %v2549
      %v2675 = vunpack.c.l.b16 %v2550
      %v2676 = vunpack.c.l.b16 %v2551
      %v2677 = vunpack.c.l.b16 %v2552
      %v2678 = vunpack.c.l.b16 %v2553
      %v2679 = vunpack.c.l.b16 %v2554
      %v2680 = vunpack.c.l.b16 %v2555
      %v2681 = vunpack.c.l.b16 %v2556
      %v2682 = vpack.c.b16 %v2647, %v2646
      %v2683 = vpack.c.b16 %v2649, %v2648
      %v2684 = vpack.c.b16 %v2651, %v2650
      %v2685 = vpack.c.b16 %v2653, %v2652
      %v2686 = vpack.c.b16 %v2655, %v2654
      %v2687 = vpack.c.b16 %v2657, %v2656
      %v2688 = vpack.c.b16 %v2659, %v2658
      %v2689 = vpack.c.b16 %v2661, %v2660
      %v2690 = vpack.c.b16 %v2663, %v2662
      %v2691 = vpack.c.b16 %v2665, %v2664
      %v2692 = vpack.c.b16 %v2667, %v2666
      %v2693 = vpack.c.b16 %v2669, %v2668
      %v2694 = vpack.c.b16 %v2671, %v2670
      %v2695 = vpack.c.b16 %v2673, %v2672
      %v2696 = vpack.c.b16 %v2675, %v2674
      %v2697 = vpack.c.b16 %v2677, %v2676
      %v2698 = vpack.c.b16 %v2679, %v2678
      %v2699 = vpack.c.b16 %v2681, %v2680
      %v2719 = vsel %vm614, %v2607, 0
      %2721 = vmatprep.subr.bf16.mxu0 0
      %2722 = vmatpush1.bf16.msra.mxu0 %v2689
      %2723 = vmatprep.subr.bf16.mxu0 0
      %2724 = vmatpush1.bf16.msra.mxu0 %v2688
      %2725 = vmatprep.subr.bf16.mxu0 0
      %2726 = vmatpush1.bf16.msra.mxu0 %v2687
      %2727 = vmatprep.subr.bf16.mxu0 0
      %2728 = vmatpush1.bf16.msra.mxu0 %v2686
      %2729 = vmatprep.subr.bf16.mxu0 0
      %2730 = vmatpush1.bf16.msra.mxu0 %v2685
      %2731 = vmatprep.subr.bf16.mxu0 0
      %2732 = vmatpush1.bf16.msra.mxu0 %v2684
      %2733 = vmatprep.subr.bf16.mxu0 0
      %2734 = vmatpush1.bf16.msra.mxu0 %v2683
      %2735 = vmatprep.subr.bf16.mxu0 0
      %2736 = vmatpush1.bf16.msra.mxu0 %v2682
      %2737 = vmatprep.subr.bf16.mxu0 0
      %2738 = vmatpush2.bf16.msra.mxu0 %v2697
      %2739 = vmatprep.subr.bf16.mxu0 0
      %2740 = vmatpush2.bf16.msra.mxu0 %v2696
      %2741 = vmatprep.subr.bf16.mxu0 0
      %2742 = vmatpush2.bf16.msra.mxu0 %v2695
      %2743 = vmatprep.subr.bf16.mxu0 0
      %2744 = vmatpush2.bf16.msra.mxu0 %v2694
      %2745 = vmatprep.subr.bf16.mxu0 0
      %2746 = vmatpush2.bf16.msra.mxu0 %v2693
      %2747 = vmatprep.subr.bf16.mxu0 0
      %2748 = vmatpush2.bf16.msra.mxu0 %v2692
      %2749 = vmatprep.subr.bf16.mxu0 0
      %2750 = vmatpush2.bf16.msra.mxu0 %v2691
      %2751 = vmatprep.subr.bf16.mxu0 0
      %2752 = vmatpush2.bf16.msra.mxu0 %v2690
      %2753 = vmatprep.mubr.bf16.mxu0 %v2598
      %2754 = vmatmul.mubr.bf16.gmra.mxu0 %v2581
      %v2755 = vpop.f32.mrf.mxu0
      %v2756 = vadd.f32 %v2563, %v2755
      %v2757 = vpop.f32.mrf.mxu0
      %v2758 = vpop.f32.mrf.mxu0
      %v2759 = vadd.f32 %v2563, %v2758
      %v2760 = vpop.f32.mrf.mxu0
      %2761 = vdwg.mxu0
      %2762 = vmatprep.subr.bf16.mxu0 0
      %2763 = vmatpush1.bf16.msra.mxu0 0
      %2764 = vmatprep.subr.bf16.mxu0 0
      %2765 = vmatpush1.bf16.msra.mxu0 0
      %2766 = vmatprep.subr.bf16.mxu0 0
      %2767 = vmatpush1.bf16.msra.mxu0 0
      %2768 = vmatprep.subr.bf16.mxu0 0
      %2769 = vmatpush1.bf16.msra.mxu0 0
      %2770 = vmatprep.subr.bf16.mxu0 0
      %2771 = vmatpush1.bf16.msra.mxu0 0
      %2772 = vmatprep.subr.bf16.mxu0 0
      %2773 = vmatpush1.bf16.msra.mxu0 0
      %2774 = vmatprep.subr.bf16.mxu0 0
      %2775 = vmatpush1.bf16.msra.mxu0 %v2699
      %2776 = vmatprep.subr.bf16.mxu0 0
      %2777 = vmatpush1.bf16.msra.mxu0 %v2698
      %2778 = vmatprep.subr.bf16.mxu0 0
      %2779 = vmatpush2.bf16.msra.mxu0 0
      %2780 = vmatprep.subr.bf16.mxu0 0
      %2781 = vmatpush2.bf16.msra.mxu0 0
      %2782 = vmatprep.subr.bf16.mxu0 0
      %2783 = vmatpush2.bf16.msra.mxu0 0
      %2784 = vmatprep.subr.bf16.mxu0 0
      %2785 = vmatpush2.bf16.msra.mxu0 0
      %2786 = vmatprep.subr.bf16.mxu0 0
      %2787 = vmatpush2.bf16.msra.mxu0 0
      %2788 = vmatprep.subr.bf16.mxu0 0
      %2789 = vmatpush2.bf16.msra.mxu0 0
      %2790 = vmatprep.subr.bf16.mxu0 0
      %2791 = vmatpush2.bf16.msra.mxu0 0
      %2792 = vmatprep.subr.bf16.mxu0 0
      %2793 = vmatpush2.bf16.msra.mxu0 0
      %2794 = vmatprep.mubr.bf16.mxu0 0
      %2795 = vmatmul.mubr.bf16.gmra.mxu0 %v2719
      %v2796 = vpop.f32.mrf.mxu0
      %v2797 = vadd.f32 %v2756, %v2796
      %v2798 = vpop.f32.mrf.mxu0
      %v2799 = vpop.f32.mrf.mxu0
      %v2800 = vadd.f32 %v2759, %v2799
      %v2801 = vpop.f32.mrf.mxu0
      %2802 = vdwg.mxu0
      %v2803 = vpack.c.bf16 %v2395, %v2395
      %s2804 = scalar_lea.vmem %s9, 16
      %v2805 = vld [vmem:[%s2804] sm:$0xf]
      %v2806 = vld [vmem:[%s2804 + $0x4] sm:$0xf]
      %v2807 = vld [vmem:[%s2804 + $0x8] sm:$0xf]
      %v2808 = vld [vmem:[%s2804 + $0xc] sm:$0xf]
      %v2813 = vunpack.c.l.b16 %v2805
      %v2814 = vunpack.c.l.b16 %v2806
      %v2815 = vunpack.c.l.b16 %v2807
      %v2816 = vunpack.c.l.b16 %v2808
      %v2817 = vpack.c.b16 %v2814, %v2813
      %v2818 = vpack.c.b16 %v2816, %v2815
      %v2822 = vsel %vm614, %v2803, 0
      %2824 = vmatprep.subr.bf16.mxu0 0
      %2825 = vmatpush1.bf16.msra.mxu0 0
      %2826 = vmatprep.subr.bf16.mxu0 0
      %2827 = vmatpush1.bf16.msra.mxu0 0
      %2828 = vmatprep.subr.bf16.mxu0 0
      %2829 = vmatpush1.bf16.msra.mxu0 0
      %2830 = vmatprep.subr.bf16.mxu0 0
      %2831 = vmatpush1.bf16.msra.mxu0 0
      %2832 = vmatprep.subr.bf16.mxu0 0
      %2833 = vmatpush1.bf16.msra.mxu0 0
      %2834 = vmatprep.subr.bf16.mxu0 0
      %2835 = vmatpush1.bf16.msra.mxu0 0
      %2836 = vmatprep.subr.bf16.mxu0 0
      %2837 = vmatpush1.bf16.msra.mxu0 %v2818
      %2838 = vmatprep.subr.bf16.mxu0 0
      %2839 = vmatpush1.bf16.msra.mxu0 %v2817
      %2840 = vmatprep.subr.bf16.mxu0 0
      %2841 = vmatpush2.bf16.msra.mxu0 0
      %2842 = vmatprep.subr.bf16.mxu0 0
      %2843 = vmatpush2.bf16.msra.mxu0 0
      %2844 = vmatprep.subr.bf16.mxu0 0
      %2845 = vmatpush2.bf16.msra.mxu0 0
      %2846 = vmatprep.subr.bf16.mxu0 0
      %2847 = vmatpush2.bf16.msra.mxu0 0
      %2848 = vmatprep.subr.bf16.mxu0 0
      %2849 = vmatpush2.bf16.msra.mxu0 0
      %2850 = vmatprep.subr.bf16.mxu0 0
      %2851 = vmatpush2.bf16.msra.mxu0 0
      %2852 = vmatprep.subr.bf16.mxu0 0
      %2853 = vmatpush2.bf16.msra.mxu0 0
      %2854 = vmatprep.subr.bf16.mxu0 0
      %2855 = vmatpush2.bf16.msra.mxu0 0
      %2856 = vmatprep.mubr.bf16.mxu0 0
      %2857 = vmatmul.mubr.bf16.gmra.mxu0 %v2822
      %v2858 = vpop.f32.mrf.mxu0
      %v2859 = vadd.f32 0.0, %v2858
      %v2860 = vpop.f32.mrf.mxu0
      %v2861 = vpop.f32.mrf.mxu0
      %v2862 = vpop.f32.mrf.mxu0
      %2863 = vdwg.mxu0
      %v2864 = vpack.c.bf16 %v2800, %v2797
      %v2865 = vpack.c.bf16 %v2859, %v2859
      %2868 = vrot.lane.b32.xlu0 %v2864, 96
      %v2869 = vpop.permute.xlu0 %2868
      %2870 = vrot.lane.b32.xlu0 %v2865, 96
      %v2871 = vpop.permute.xlu0 %2870
      %v2873 = vsel %vm1266, %v2864, 0
      %v2876 = vsel %vm1266, %v2865, 0
      %v2879 = vsel %vm1266, %v2869, 0
      %v2882 = vsel %vm1266, %v2871, 0
      %2884 = vmatprep.subr.bf16.mxu0 0
      %2885 = vmatpush1.bf16.xpose.msra.mxu0 0
      %2886 = vmatprep.subr.bf16.mxu0 0
      %2887 = vmatpush1.bf16.xpose.msra.mxu0 0
      %2888 = vmatprep.subr.bf16.mxu0 0
      %2889 = vmatpush1.bf16.xpose.msra.mxu0 0
      %2890 = vmatprep.subr.bf16.mxu0 0
      %2891 = vmatpush1.bf16.xpose.msra.mxu0 0
      %2892 = vmatprep.subr.bf16.mxu0 0
      %2893 = vmatpush1.bf16.xpose.msra.mxu0 0
      %2894 = vmatprep.subr.bf16.mxu0 0
      %2895 = vmatpush1.bf16.xpose.msra.mxu0 0
      %2896 = vmatprep.subr.bf16.mxu0 0
      %2897 = vmatpush1.bf16.xpose.msra.mxu0 %v2882
      %2898 = vmatprep.subr.bf16.mxu0 0
      %2899 = vmatpush1.bf16.xpose.msra.mxu0 %v2879
      %2900 = vmatprep.subr.bf16.mxu0 0
      %2901 = vmatpush2.bf16.xpose.msra.mxu0 0
      %2902 = vmatprep.subr.bf16.mxu0 0
      %2903 = vmatpush2.bf16.xpose.msra.mxu0 0
      %2904 = vmatprep.subr.bf16.mxu0 0
      %2905 = vmatpush2.bf16.xpose.msra.mxu0 0
      %2906 = vmatprep.subr.bf16.mxu0 0
      %2907 = vmatpush2.bf16.xpose.msra.mxu0 0
      %2908 = vmatprep.subr.bf16.mxu0 0
      %2909 = vmatpush2.bf16.xpose.msra.mxu0 0
      %2910 = vmatprep.subr.bf16.mxu0 0
      %2911 = vmatpush2.bf16.xpose.msra.mxu0 0
      %2912 = vmatprep.subr.bf16.mxu0 0
      %2913 = vmatpush2.bf16.xpose.msra.mxu0 0
      %2914 = vmatprep.subr.bf16.mxu0 0
      %2915 = vmatpush2.bf16.xpose.msra.mxu0 0
      %2916 = vmatprep.mubr.bf16.mxu0 0
      %2917 = vmatmul.mubr.bf16.gmra.mxu0 %v2873
      %v2918 = vpop.f32.mrf.mxu0
      %v2919 = vadd.f32 0.0, %v2918
      %v2920 = vpop.f32.mrf.mxu0
      %v2921 = vpop.f32.mrf.mxu0
      %v2922 = vadd.f32 0.0, %v2921
      %v2923 = vpop.f32.mrf.mxu0
      %2924 = vmatprep.mubr.bf16.mxu0 0
      %2925 = vmatmul.mubr.bf16.gmra.mxu0 %v2876
      %v2926 = vpop.f32.mrf.mxu0
      %v2927 = vadd.f32 0.0, %v2926
      %v2928 = vpop.f32.mrf.mxu0
      %v2929 = vpop.f32.mrf.mxu0
      %v2930 = vpop.f32.mrf.mxu0
      %2931 = vdwg.mxu0
      %v2932 = vsel %vm1327, %v2919, -inf
      %2933 = vmax.xlane.f32.xlu0 %v2932
      %v2934 = vpop.xlane.xlu0 %2933
      %v2935 = vsel %vm1327, %v2922, -inf
      %2936 = vmax.xlane.f32.xlu0 %v2935
      %v2937 = vpop.xlane.xlu0 %2936
      %v2938 = vsel %vm1334, %v2927, -inf
      %2939 = vmax.xlane.f32.xlu0 %v2938
      %v2940 = vpop.xlane.xlu0 %2939
      %v2941 = vsub.f32 %v2919, %v2934
      %v2942 = vsub.f32 %v2922, %v2937
      %v2943 = vsub.f32 %v2927, %v2940
      %v2944 = vmul.f32 %v2941, 1.442695
      %v2945 = vpow.pop %v2944
      %v2946 = vmul.f32 %v2942, 1.442695
      %v2947 = vpow.pop %v2946
      %v2948 = vmul.f32 %v2943, 1.442695
      %v2949 = vpow.pop %v2948
      %v2950 = vsel %vm1327, %v2945, 0.0
      %2951 = vadd.xlane.f32.xlu0 %v2950
      %v2952 = vpop.xlane.xlu0 %2951
      %v2953 = vsel %vm1327, %v2947, 0.0
      %2954 = vadd.xlane.f32.xlu0 %v2953
      %v2955 = vpop.xlane.xlu0 %2954
      %v2956 = vsel %vm1334, %v2949, 0.0
      %2957 = vadd.xlane.f32.xlu0 %v2956
      %v2958 = vpop.xlane.xlu0 %2957
      %v2959 = vrcp.pop %v2952
      %v2960 = vrcp.pop %v2955
      %v2961 = vrcp.pop %v2958
      %v2962 = vmul.f32 %v2945, %v2959
      %v2963 = vmul.f32 %v2947, %v2960
      %v2964 = vmul.f32 %v2949, %v2961
      %v2965 = vpack.c.bf16 %v2963, %v2962
      %v2966 = vpack.c.bf16 %v2964, %v2964
      %2967 = vrot.lane.b32.xlu0 %v2864, 64
      %v2968 = vpop.permute.xlu0 %2967
      %2969 = vrot.lane.b32.xlu0 %v2865, 64
      %v2970 = vpop.permute.xlu0 %2969
      %v2973 = vsel %vm1327, %v2965, 0
      %v2976 = vsel %vm1327, %v2966, 0
      %v2979 = vand.u32 %v2970, %v1376
      %2981 = vmatprep.subr.bf16.mxu0 0
      %2982 = vmatpush1.bf16.msra.mxu0 0
      %2983 = vmatprep.subr.bf16.mxu0 0
      %2984 = vmatpush1.bf16.msra.mxu0 0
      %2985 = vmatprep.subr.bf16.mxu0 0
      %2986 = vmatpush1.bf16.msra.mxu0 0
      %2987 = vmatprep.subr.bf16.mxu0 0
      %2988 = vmatpush1.bf16.msra.mxu0 0
      %2989 = vmatprep.subr.bf16.mxu0 0
      %2990 = vmatpush1.bf16.msra.mxu0 0
      %2991 = vmatprep.subr.bf16.mxu0 0
      %2992 = vmatpush1.bf16.msra.mxu0 0
      %2993 = vmatprep.subr.bf16.mxu0 0
      %2994 = vmatpush1.bf16.msra.mxu0 %v2979
      %2995 = vmatprep.subr.bf16.mxu0 0
      %2996 = vmatpush1.bf16.msra.mxu0 %v2968
      %2997 = vmatprep.subr.bf16.mxu0 0
      %2998 = vmatpush2.bf16.msra.mxu0 0
      %2999 = vmatprep.subr.bf16.mxu0 0
      %3000 = vmatpush2.bf16.msra.mxu0 0
      %3001 = vmatprep.subr.bf16.mxu0 0
      %3002 = vmatpush2.bf16.msra.mxu0 0
      %3003 = vmatprep.subr.bf16.mxu0 0
      %3004 = vmatpush2.bf16.msra.mxu0 0
      %3005 = vmatprep.subr.bf16.mxu0 0
      %3006 = vmatpush2.bf16.msra.mxu0 0
      %3007 = vmatprep.subr.bf16.mxu0 0
      %3008 = vmatpush2.bf16.msra.mxu0 0
      %3009 = vmatprep.subr.bf16.mxu0 0
      %3010 = vmatpush2.bf16.msra.mxu0 0
      %3011 = vmatprep.subr.bf16.mxu0 0
      %3012 = vmatpush2.bf16.msra.mxu0 0
      %3013 = vmatprep.mubr.bf16.mxu0 0
      %3014 = vmatmul.mubr.bf16.gmra.mxu0 %v2973
      %v3015 = vpop.f32.mrf.mxu0
      %v3016 = vadd.f32 0.0, %v3015
      %v3017 = vpop.f32.mrf.mxu0
      %v3018 = vpop.f32.mrf.mxu0
      %v3019 = vadd.f32 0.0, %v3018
      %v3020 = vpop.f32.mrf.mxu0
      %3021 = vmatprep.mubr.bf16.mxu0 0
      %3022 = vmatmul.mubr.bf16.gmra.mxu0 %v2976
      %v3023 = vpop.f32.mrf.mxu0
      %v3024 = vadd.f32 0.0, %v3023
      %v3025 = vpop.f32.mrf.mxu0
      %v3026 = vpop.f32.mrf.mxu0
      %v3027 = vpop.f32.mrf.mxu0
      %3028 = vdwg.mxu0
      %3029 = vrot.lane.b32.xlu0 %v2864, 120
      %v3030 = vpop.permute.xlu0 %3029
      %3031 = vrot.lane.b32.xlu0 %v2865, 120
      %v3032 = vpop.permute.xlu0 %3031
      %3033 = vrot.lane.b32.xlu0 %v2864, 88
      %v3034 = vpop.permute.xlu0 %3033
      %3035 = vrot.lane.b32.xlu0 %v2865, 88
      %v3036 = vpop.permute.xlu0 %3035
      %v3038 = vsel %vm1266, %v3030, 0
      %v3041 = vsel %vm1266, %v3032, 0
      %v3044 = vsel %vm1266, %v3034, 0
      %v3047 = vsel %vm1266, %v3036, 0
      %3049 = vmatprep.subr.bf16.mxu0 0
      %3050 = vmatpush1.bf16.xpose.msra.mxu0 0
      %3051 = vmatprep.subr.bf16.mxu0 0
      %3052 = vmatpush1.bf16.xpose.msra.mxu0 0
      %3053 = vmatprep.subr.bf16.mxu0 0
      %3054 = vmatpush1.bf16.xpose.msra.mxu0 0
      %3055 = vmatprep.subr.bf16.mxu0 0
      %3056 = vmatpush1.bf16.xpose.msra.mxu0 0
      %3057 = vmatprep.subr.bf16.mxu0 0
      %3058 = vmatpush1.bf16.xpose.msra.mxu0 0
      %3059 = vmatprep.subr.bf16.mxu0 0
      %3060 = vmatpush1.bf16.xpose.msra.mxu0 0
      %3061 = vmatprep.subr.bf16.mxu0 0
      %3062 = vmatpush1.bf16.xpose.msra.mxu0 %v3047
      %3063 = vmatprep.subr.bf16.mxu0 0
      %3064 = vmatpush1.bf16.xpose.msra.mxu0 %v3044
      %3065 = vmatprep.subr.bf16.mxu0 0
      %3066 = vmatpush2.bf16.xpose.msra.mxu0 0
      %3067 = vmatprep.subr.bf16.mxu0 0
      %3068 = vmatpush2.bf16.xpose.msra.mxu0 0
      %3069 = vmatprep.subr.bf16.mxu0 0
      %3070 = vmatpush2.bf16.xpose.msra.mxu0 0
      %3071 = vmatprep.subr.bf16.mxu0 0
      %3072 = vmatpush2.bf16.xpose.msra.mxu0 0
      %3073 = vmatprep.subr.bf16.mxu0 0
      %3074 = vmatpush2.bf16.xpose.msra.mxu0 0
      %3075 = vmatprep.subr.bf16.mxu0 0
      %3076 = vmatpush2.bf16.xpose.msra.mxu0 0
      %3077 = vmatprep.subr.bf16.mxu0 0
      %3078 = vmatpush2.bf16.xpose.msra.mxu0 0
      %3079 = vmatprep.subr.bf16.mxu0 0
      %3080 = vmatpush2.bf16.xpose.msra.mxu0 0
      %3081 = vmatprep.mubr.bf16.mxu0 0
      %3082 = vmatmul.mubr.bf16.gmra.mxu0 %v3038
      %v3083 = vpop.f32.mrf.mxu0
      %v3084 = vadd.f32 0.0, %v3083
      %v3085 = vpop.f32.mrf.mxu0
      %v3086 = vpop.f32.mrf.mxu0
      %v3087 = vadd.f32 0.0, %v3086
      %v3088 = vpop.f32.mrf.mxu0
      %3089 = vmatprep.mubr.bf16.mxu0 0
      %3090 = vmatmul.mubr.bf16.gmra.mxu0 %v3041
      %v3091 = vpop.f32.mrf.mxu0
      %v3092 = vadd.f32 0.0, %v3091
      %v3093 = vpop.f32.mrf.mxu0
      %v3094 = vpop.f32.mrf.mxu0
      %v3095 = vpop.f32.mrf.mxu0
      %3096 = vdwg.mxu0
      %v3097 = vsel %vm1327, %v3084, -inf
      %3098 = vmax.xlane.f32.xlu0 %v3097
      %v3099 = vpop.xlane.xlu0 %3098
      %v3100 = vsel %vm1327, %v3087, -inf
      %3101 = vmax.xlane.f32.xlu0 %v3100
      %v3102 = vpop.xlane.xlu0 %3101
      %v3103 = vsel %vm1334, %v3092, -inf
      %3104 = vmax.xlane.f32.xlu0 %v3103
      %v3105 = vpop.xlane.xlu0 %3104
      %v3106 = vsub.f32 %v3084, %v3099
      %v3107 = vsub.f32 %v3087, %v3102
      %v3108 = vsub.f32 %v3092, %v3105
      %v3109 = vmul.f32 %v3106, 1.442695
      %v3110 = vpow.pop %v3109
      %v3111 = vmul.f32 %v3107, 1.442695
      %v3112 = vpow.pop %v3111
      %v3113 = vmul.f32 %v3108, 1.442695
      %v3114 = vpow.pop %v3113
      %v3115 = vsel %vm1327, %v3110, 0.0
      %3116 = vadd.xlane.f32.xlu0 %v3115
      %v3117 = vpop.xlane.xlu0 %3116
      %v3118 = vsel %vm1327, %v3112, 0.0
      %3119 = vadd.xlane.f32.xlu0 %v3118
      %v3120 = vpop.xlane.xlu0 %3119
      %v3121 = vsel %vm1334, %v3114, 0.0
      %3122 = vadd.xlane.f32.xlu0 %v3121
      %v3123 = vpop.xlane.xlu0 %3122
      %v3124 = vrcp.pop %v3117
      %v3125 = vrcp.pop %v3120
      %v3126 = vrcp.pop %v3123
      %v3127 = vmul.f32 %v3110, %v3124
      %v3128 = vmul.f32 %v3112, %v3125
      %v3129 = vmul.f32 %v3114, %v3126
      %v3130 = vpack.c.bf16 %v3128, %v3127
      %v3131 = vpack.c.bf16 %v3129, %v3129
      %3132 = vrot.lane.b32.xlu0 %v2864, 56
      %v3133 = vpop.permute.xlu0 %3132
      %3134 = vrot.lane.b32.xlu0 %v2865, 56
      %v3135 = vpop.permute.xlu0 %3134
      %v3138 = vsel %vm1327, %v3130, 0
      %v3141 = vsel %vm1327, %v3131, 0
      %v3144 = vand.u32 %v3135, %v1376
      %3146 = vmatprep.subr.bf16.mxu0 0
      %3147 = vmatpush1.bf16.msra.mxu0 0
      %3148 = vmatprep.subr.bf16.mxu0 0
      %3149 = vmatpush1.bf16.msra.mxu0 0
      %3150 = vmatprep.subr.bf16.mxu0 0
      %3151 = vmatpush1.bf16.msra.mxu0 0
      %3152 = vmatprep.subr.bf16.mxu0 0
      %3153 = vmatpush1.bf16.msra.mxu0 0
      %3154 = vmatprep.subr.bf16.mxu0 0
      %3155 = vmatpush1.bf16.msra.mxu0 0
      %3156 = vmatprep.subr.bf16.mxu0 0
      %3157 = vmatpush1.bf16.msra.mxu0 0
      %3158 = vmatprep.subr.bf16.mxu0 0
      %3159 = vmatpush1.bf16.msra.mxu0 %v3144
      %3160 = vmatprep.subr.bf16.mxu0 0
      %3161 = vmatpush1.bf16.msra.mxu0 %v3133
      %3162 = vmatprep.subr.bf16.mxu0 0
      %3163 = vmatpush2.bf16.msra.mxu0 0
      %3164 = vmatprep.subr.bf16.mxu0 0
      %3165 = vmatpush2.bf16.msra.mxu0 0
      %3166 = vmatprep.subr.bf16.mxu0 0
      %3167 = vmatpush2.bf16.msra.mxu0 0
      %3168 = vmatprep.subr.bf16.mxu0 0
      %3169 = vmatpush2.bf16.msra.mxu0 0
      %3170 = vmatprep.subr.bf16.mxu0 0
      %3171 = vmatpush2.bf16.msra.mxu0 0
      %3172 = vmatprep.subr.bf16.mxu0 0
      %3173 = vmatpush2.bf16.msra.mxu0 0
      %3174 = vmatprep.subr.bf16.mxu0 0
      %3175 = vmatpush2.bf16.msra.mxu0 0
      %3176 = vmatprep.subr.bf16.mxu0 0
      %3177 = vmatpush2.bf16.msra.mxu0 0
      %3178 = vmatprep.mubr.bf16.mxu0 0
      %3179 = vmatmul.mubr.bf16.gmra.mxu0 %v3138
      %v3180 = vpop.f32.mrf.mxu0
      %v3181 = vadd.f32 0.0, %v3180
      %v3182 = vpop.f32.mrf.mxu0
      %v3183 = vpop.f32.mrf.mxu0
      %v3184 = vadd.f32 0.0, %v3183
      %v3185 = vpop.f32.mrf.mxu0
      %3186 = vmatprep.mubr.bf16.mxu0 0
      %3187 = vmatmul.mubr.bf16.gmra.mxu0 %v3141
      %v3188 = vpop.f32.mrf.mxu0
      %v3189 = vadd.f32 0.0, %v3188
      %v3190 = vpop.f32.mrf.mxu0
      %v3191 = vpop.f32.mrf.mxu0
      %v3192 = vpop.f32.mrf.mxu0
      %3193 = vdwg.mxu0
      %3194 = vrot.lane.b32.xlu0 %v2864, 112
      %v3195 = vpop.permute.xlu0 %3194
      %3196 = vrot.lane.b32.xlu0 %v2865, 112
      %v3197 = vpop.permute.xlu0 %3196
      %3198 = vrot.lane.b32.xlu0 %v2864, 80
      %v3199 = vpop.permute.xlu0 %3198
      %3200 = vrot.lane.b32.xlu0 %v2865, 80
      %v3201 = vpop.permute.xlu0 %3200
      %v3203 = vsel %vm1266, %v3195, 0
      %v3206 = vsel %vm1266, %v3197, 0
      %v3209 = vsel %vm1266, %v3199, 0
      %v3212 = vsel %vm1266, %v3201, 0
      %3214 = vmatprep.subr.bf16.mxu0 0
      %3215 = vmatpush1.bf16.xpose.msra.mxu0 0
      %3216 = vmatprep.subr.bf16.mxu0 0
      %3217 = vmatpush1.bf16.xpose.msra.mxu0 0
      %3218 = vmatprep.subr.bf16.mxu0 0
      %3219 = vmatpush1.bf16.xpose.msra.mxu0 0
      %3220 = vmatprep.subr.bf16.mxu0 0
      %3221 = vmatpush1.bf16.xpose.msra.mxu0 0
      %3222 = vmatprep.subr.bf16.mxu0 0
      %3223 = vmatpush1.bf16.xpose.msra.mxu0 0
      %3224 = vmatprep.subr.bf16.mxu0 0
      %3225 = vmatpush1.bf16.xpose.msra.mxu0 0
      %3226 = vmatprep.subr.bf16.mxu0 0
      %3227 = vmatpush1.bf16.xpose.msra.mxu0 %v3212
      %3228 = vmatprep.subr.bf16.mxu0 0
      %3229 = vmatpush1.bf16.xpose.msra.mxu0 %v3209
      %3230 = vmatprep.subr.bf16.mxu0 0
      %3231 = vmatpush2.bf16.xpose.msra.mxu0 0
      %3232 = vmatprep.subr.bf16.mxu0 0
      %3233 = vmatpush2.bf16.xpose.msra.mxu0 0
      %3234 = vmatprep.subr.bf16.mxu0 0
      %3235 = vmatpush2.bf16.xpose.msra.mxu0 0
      %3236 = vmatprep.subr.bf16.mxu0 0
      %3237 = vmatpush2.bf16.xpose.msra.mxu0 0
      %3238 = vmatprep.subr.bf16.mxu0 0
      %3239 = vmatpush2.bf16.xpose.msra.mxu0 0
      %3240 = vmatprep.subr.bf16.mxu0 0
      %3241 = vmatpush2.bf16.xpose.msra.mxu0 0
      %3242 = vmatprep.subr.bf16.mxu0 0
      %3243 = vmatpush2.bf16.xpose.msra.mxu0 0
      %3244 = vmatprep.subr.bf16.mxu0 0
      %3245 = vmatpush2.bf16.xpose.msra.mxu0 0
      %3246 = vmatprep.mubr.bf16.mxu0 0
      %3247 = vmatmul.mubr.bf16.gmra.mxu0 %v3203
      %v3248 = vpop.f32.mrf.mxu0
      %v3249 = vadd.f32 0.0, %v3248
      %v3250 = vpop.f32.mrf.mxu0
      %v3251 = vpop.f32.mrf.mxu0
      %v3252 = vadd.f32 0.0, %v3251
      %v3253 = vpop.f32.mrf.mxu0
      %3254 = vmatprep.mubr.bf16.mxu0 0
      %3255 = vmatmul.mubr.bf16.gmra.mxu0 %v3206
      %v3256 = vpop.f32.mrf.mxu0
      %v3257 = vadd.f32 0.0, %v3256
      %v3258 = vpop.f32.mrf.mxu0
      %v3259 = vpop.f32.mrf.mxu0
      %v3260 = vpop.f32.mrf.mxu0
      %3261 = vdwg.mxu0
      %v3262 = vsel %vm1327, %v3249, -inf
      %3263 = vmax.xlane.f32.xlu0 %v3262
      %v3264 = vpop.xlane.xlu0 %3263
      %v3265 = vsel %vm1327, %v3252, -inf
      %3266 = vmax.xlane.f32.xlu0 %v3265
      %v3267 = vpop.xlane.xlu0 %3266
      %v3268 = vsel %vm1334, %v3257, -inf
      %3269 = vmax.xlane.f32.xlu0 %v3268
      %v3270 = vpop.xlane.xlu0 %3269
      %v3271 = vsub.f32 %v3249, %v3264
      %v3272 = vsub.f32 %v3252, %v3267
      %v3273 = vsub.f32 %v3257, %v3270
      %v3274 = vmul.f32 %v3271, 1.442695
      %v3275 = vpow.pop %v3274
      %v3276 = vmul.f32 %v3272, 1.442695
      %v3277 = vpow.pop %v3276
      %v3278 = vmul.f32 %v3273, 1.442695
      %v3279 = vpow.pop %v3278
      %v3280 = vsel %vm1327, %v3275, 0.0
      %3281 = vadd.xlane.f32.xlu0 %v3280
      %v3282 = vpop.xlane.xlu0 %3281
      %v3283 = vsel %vm1327, %v3277, 0.0
      %3284 = vadd.xlane.f32.xlu0 %v3283
      %v3285 = vpop.xlane.xlu0 %3284
      %v3286 = vsel %vm1334, %v3279, 0.0
      %3287 = vadd.xlane.f32.xlu0 %v3286
      %v3288 = vpop.xlane.xlu0 %3287
      %v3289 = vrcp.pop %v3282
      %v3290 = vrcp.pop %v3285
      %v3291 = vrcp.pop %v3288
      %v3292 = vmul.f32 %v3275, %v3289
      %v3293 = vmul.f32 %v3277, %v3290
      %v3294 = vmul.f32 %v3279, %v3291
      %v3295 = vpack.c.bf16 %v3293, %v3292
      %v3296 = vpack.c.bf16 %v3294, %v3294
      %3297 = vrot.lane.b32.xlu0 %v2864, 48
      %v3298 = vpop.permute.xlu0 %3297
      %3299 = vrot.lane.b32.xlu0 %v2865, 48
      %v3300 = vpop.permute.xlu0 %3299
      %v3303 = vsel %vm1327, %v3295, 0
      %v3306 = vsel %vm1327, %v3296, 0
      %v3309 = vand.u32 %v3300, %v1376
      %3311 = vmatprep.subr.bf16.mxu0 0
      %3312 = vmatpush1.bf16.msra.mxu0 0
      %3313 = vmatprep.subr.bf16.mxu0 0
      %3314 = vmatpush1.bf16.msra.mxu0 0
      %3315 = vmatprep.subr.bf16.mxu0 0
      %3316 = vmatpush1.bf16.msra.mxu0 0
      %3317 = vmatprep.subr.bf16.mxu0 0
      %3318 = vmatpush1.bf16.msra.mxu0 0
      %3319 = vmatprep.subr.bf16.mxu0 0
      %3320 = vmatpush1.bf16.msra.mxu0 0
      %3321 = vmatprep.subr.bf16.mxu0 0
      %3322 = vmatpush1.bf16.msra.mxu0 0
      %3323 = vmatprep.subr.bf16.mxu0 0
      %3324 = vmatpush1.bf16.msra.mxu0 %v3309
      %3325 = vmatprep.subr.bf16.mxu0 0
      %3326 = vmatpush1.bf16.msra.mxu0 %v3298
      %3327 = vmatprep.subr.bf16.mxu0 0
      %3328 = vmatpush2.bf16.msra.mxu0 0
      %3329 = vmatprep.subr.bf16.mxu0 0
      %3330 = vmatpush2.bf16.msra.mxu0 0
      %3331 = vmatprep.subr.bf16.mxu0 0
      %3332 = vmatpush2.bf16.msra.mxu0 0
      %3333 = vmatprep.subr.bf16.mxu0 0
      %3334 = vmatpush2.bf16.msra.mxu0 0
      %3335 = vmatprep.subr.bf16.mxu0 0
      %3336 = vmatpush2.bf16.msra.mxu0 0
      %3337 = vmatprep.subr.bf16.mxu0 0
      %3338 = vmatpush2.bf16.msra.mxu0 0
      %3339 = vmatprep.subr.bf16.mxu0 0
      %3340 = vmatpush2.bf16.msra.mxu0 0
      %3341 = vmatprep.subr.bf16.mxu0 0
      %3342 = vmatpush2.bf16.msra.mxu0 0
      %3343 = vmatprep.mubr.bf16.mxu0 0
      %3344 = vmatmul.mubr.bf16.gmra.mxu0 %v3303
      %v3345 = vpop.f32.mrf.mxu0
      %v3346 = vadd.f32 0.0, %v3345
      %v3347 = vpop.f32.mrf.mxu0
      %v3348 = vpop.f32.mrf.mxu0
      %v3349 = vadd.f32 0.0, %v3348
      %v3350 = vpop.f32.mrf.mxu0
      %3351 = vmatprep.mubr.bf16.mxu0 0
      %3352 = vmatmul.mubr.bf16.gmra.mxu0 %v3306
      %v3353 = vpop.f32.mrf.mxu0
      %v3354 = vadd.f32 0.0, %v3353
      %v3355 = vpop.f32.mrf.mxu0
      %v3356 = vpop.f32.mrf.mxu0
      %v3357 = vpop.f32.mrf.mxu0
      %3358 = vdwg.mxu0
      %3359 = vrot.lane.b32.xlu0 %v2864, 104
      %v3360 = vpop.permute.xlu0 %3359
      %3361 = vrot.lane.b32.xlu0 %v2865, 104
      %v3362 = vpop.permute.xlu0 %3361
      %3363 = vrot.lane.b32.xlu0 %v2864, 72
      %v3364 = vpop.permute.xlu0 %3363
      %3365 = vrot.lane.b32.xlu0 %v2865, 72
      %v3366 = vpop.permute.xlu0 %3365
      %v3368 = vsel %vm1266, %v3360, 0
      %v3371 = vsel %vm1266, %v3362, 0
      %v3374 = vsel %vm1266, %v3364, 0
      %v3377 = vsel %vm1266, %v3366, 0
      %3379 = vmatprep.subr.bf16.mxu0 0
      %3380 = vmatpush1.bf16.xpose.msra.mxu0 0
      %3381 = vmatprep.subr.bf16.mxu0 0
      %3382 = vmatpush1.bf16.xpose.msra.mxu0 0
      %3383 = vmatprep.subr.bf16.mxu0 0
      %3384 = vmatpush1.bf16.xpose.msra.mxu0 0
      %3385 = vmatprep.subr.bf16.mxu0 0
      %3386 = vmatpush1.bf16.xpose.msra.mxu0 0
      %3387 = vmatprep.subr.bf16.mxu0 0
      %3388 = vmatpush1.bf16.xpose.msra.mxu0 0
      %3389 = vmatprep.subr.bf16.mxu0 0
      %3390 = vmatpush1.bf16.xpose.msra.mxu0 0
      %3391 = vmatprep.subr.bf16.mxu0 0
      %3392 = vmatpush1.bf16.xpose.msra.mxu0 %v3377
      %3393 = vmatprep.subr.bf16.mxu0 0
      %3394 = vmatpush1.bf16.xpose.msra.mxu0 %v3374
      %3395 = vmatprep.subr.bf16.mxu0 0
      %3396 = vmatpush2.bf16.xpose.msra.mxu0 0
      %3397 = vmatprep.subr.bf16.mxu0 0
      %3398 = vmatpush2.bf16.xpose.msra.mxu0 0
      %3399 = vmatprep.subr.bf16.mxu0 0
      %3400 = vmatpush2.bf16.xpose.msra.mxu0 0
      %3401 = vmatprep.subr.bf16.mxu0 0
      %3402 = vmatpush2.bf16.xpose.msra.mxu0 0
      %3403 = vmatprep.subr.bf16.mxu0 0
      %3404 = vmatpush2.bf16.xpose.msra.mxu0 0
      %3405 = vmatprep.subr.bf16.mxu0 0
      %3406 = vmatpush2.bf16.xpose.msra.mxu0 0
      %3407 = vmatprep.subr.bf16.mxu0 0
      %3408 = vmatpush2.bf16.xpose.msra.mxu0 0
      %3409 = vmatprep.subr.bf16.mxu0 0
      %3410 = vmatpush2.bf16.xpose.msra.mxu0 0
      %3411 = vmatprep.mubr.bf16.mxu0 0
      %3412 = vmatmul.mubr.bf16.gmra.mxu0 %v3368
      %v3413 = vpop.f32.mrf.mxu0
      %v3414 = vadd.f32 0.0, %v3413
      %v3415 = vpop.f32.mrf.mxu0
      %v3416 = vpop.f32.mrf.mxu0
      %v3417 = vadd.f32 0.0, %v3416
      %v3418 = vpop.f32.mrf.mxu0
      %3419 = vmatprep.mubr.bf16.mxu0 0
      %3420 = vmatmul.mubr.bf16.gmra.mxu0 %v3371
      %v3421 = vpop.f32.mrf.mxu0
      %v3422 = vadd.f32 0.0, %v3421
      %v3423 = vpop.f32.mrf.mxu0
      %v3424 = vpop.f32.mrf.mxu0
      %v3425 = vpop.f32.mrf.mxu0
      %3426 = vdwg.mxu0
      %v3427 = vsel %vm1327, %v3414, -inf
      %3428 = vmax.xlane.f32.xlu0 %v3427
      %v3429 = vpop.xlane.xlu0 %3428
      %v3430 = vsel %vm1327, %v3417, -inf
      %3431 = vmax.xlane.f32.xlu0 %v3430
      %v3432 = vpop.xlane.xlu0 %3431
      %v3433 = vsel %vm1334, %v3422, -inf
      %3434 = vmax.xlane.f32.xlu0 %v3433
      %v3435 = vpop.xlane.xlu0 %3434
      %v3436 = vsub.f32 %v3414, %v3429
      %v3437 = vsub.f32 %v3417, %v3432
      %v3438 = vsub.f32 %v3422, %v3435
      %v3439 = vmul.f32 %v3436, 1.442695
      %v3440 = vpow.pop %v3439
      %v3441 = vmul.f32 %v3437, 1.442695
      %v3442 = vpow.pop %v3441
      %v3443 = vmul.f32 %v3438, 1.442695
      %v3444 = vpow.pop %v3443
      %v3445 = vsel %vm1327, %v3440, 0.0
      %3446 = vadd.xlane.f32.xlu0 %v3445
      %v3447 = vpop.xlane.xlu0 %3446
      %v3448 = vsel %vm1327, %v3442, 0.0
      %3449 = vadd.xlane.f32.xlu0 %v3448
      %v3450 = vpop.xlane.xlu0 %3449
      %v3451 = vsel %vm1334, %v3444, 0.0
      %3452 = vadd.xlane.f32.xlu0 %v3451
      %v3453 = vpop.xlane.xlu0 %3452
      %v3454 = vrcp.pop %v3447
      %v3455 = vrcp.pop %v3450
      %v3456 = vrcp.pop %v3453
      %v3457 = vmul.f32 %v3440, %v3454
      %v3458 = vmul.f32 %v3442, %v3455
      %v3459 = vmul.f32 %v3444, %v3456
      %v3460 = vpack.c.bf16 %v3458, %v3457
      %v3461 = vpack.c.bf16 %v3459, %v3459
      %3462 = vrot.lane.b32.xlu0 %v2864, 40
      %v3463 = vpop.permute.xlu0 %3462
      %3464 = vrot.lane.b32.xlu0 %v2865, 40
      %v3465 = vpop.permute.xlu0 %3464
      %v3468 = vsel %vm1327, %v3460, 0
      %v3471 = vsel %vm1327, %v3461, 0
      %v3474 = vand.u32 %v3465, %v1376
      %3476 = vmatprep.subr.bf16.mxu0 0
      %3477 = vmatpush1.bf16.msra.mxu0 0
      %3478 = vmatprep.subr.bf16.mxu0 0
      %3479 = vmatpush1.bf16.msra.mxu0 0
      %3480 = vmatprep.subr.bf16.mxu0 0
      %3481 = vmatpush1.bf16.msra.mxu0 0
      %3482 = vmatprep.subr.bf16.mxu0 0
      %3483 = vmatpush1.bf16.msra.mxu0 0
      %3484 = vmatprep.subr.bf16.mxu0 0
      %3485 = vmatpush1.bf16.msra.mxu0 0
      %3486 = vmatprep.subr.bf16.mxu0 0
      %3487 = vmatpush1.bf16.msra.mxu0 0
      %3488 = vmatprep.subr.bf16.mxu0 0
      %3489 = vmatpush1.bf16.msra.mxu0 %v3474
      %3490 = vmatprep.subr.bf16.mxu0 0
      %3491 = vmatpush1.bf16.msra.mxu0 %v3463
      %3492 = vmatprep.subr.bf16.mxu0 0
      %3493 = vmatpush2.bf16.msra.mxu0 0
      %3494 = vmatprep.subr.bf16.mxu0 0
      %3495 = vmatpush2.bf16.msra.mxu0 0
      %3496 = vmatprep.subr.bf16.mxu0 0
      %3497 = vmatpush2.bf16.msra.mxu0 0
      %3498 = vmatprep.subr.bf16.mxu0 0
      %3499 = vmatpush2.bf16.msra.mxu0 0
      %3500 = vmatprep.subr.bf16.mxu0 0
      %3501 = vmatpush2.bf16.msra.mxu0 0
      %3502 = vmatprep.subr.bf16.mxu0 0
      %3503 = vmatpush2.bf16.msra.mxu0 0
      %3504 = vmatprep.subr.bf16.mxu0 0
      %3505 = vmatpush2.bf16.msra.mxu0 0
      %3506 = vmatprep.subr.bf16.mxu0 0
      %3507 = vmatpush2.bf16.msra.mxu0 0
      %3508 = vmatprep.mubr.bf16.mxu0 0
      %3509 = vmatmul.mubr.bf16.gmra.mxu0 %v3468
      %v3510 = vpop.f32.mrf.mxu0
      %v3511 = vadd.f32 0.0, %v3510
      %v3512 = vpop.f32.mrf.mxu0
      %v3513 = vpop.f32.mrf.mxu0
      %v3514 = vadd.f32 0.0, %v3513
      %v3515 = vpop.f32.mrf.mxu0
      %3516 = vmatprep.mubr.bf16.mxu0 0
      %3517 = vmatmul.mubr.bf16.gmra.mxu0 %v3471
      %v3518 = vpop.f32.mrf.mxu0
      %v3519 = vadd.f32 0.0, %v3518
      %v3520 = vpop.f32.mrf.mxu0
      %v3521 = vpop.f32.mrf.mxu0
      %v3522 = vpop.f32.mrf.mxu0
      %3523 = vdwg.mxu0
      %3527 = vrot.lane.b32.xlu0 %v3181, 8
      %v3528 = vpop.permute.xlu0 %3527
      %3529 = vrot.lane.b32.xlu0 %v3184, 8
      %v3530 = vpop.permute.xlu0 %3529
      %3531 = vrot.lane.b32.xlu0 %v3189, 8
      %v3532 = vpop.permute.xlu0 %3531
      %3539 = vrot.lane.b32.xlu0 %v3346, 16
      %v3540 = vpop.permute.xlu0 %3539
      %3541 = vrot.lane.b32.xlu0 %v3349, 16
      %v3542 = vpop.permute.xlu0 %3541
      %3543 = vrot.lane.b32.xlu0 %v3354, 16
      %v3544 = vpop.permute.xlu0 %3543
      %3551 = vrot.lane.b32.xlu0 %v3511, 24
      %v3552 = vpop.permute.xlu0 %3551
      %3553 = vrot.lane.b32.xlu0 %v3514, 24
      %v3554 = vpop.permute.xlu0 %3553
      %3555 = vrot.lane.b32.xlu0 %v3519, 24
      %v3556 = vpop.permute.xlu0 %3555
      %v3560 = vsel %vm1266, %v3016, %v3528
      %v3561 = vsel %vm1266, %v3019, %v3530
      %v3562 = vsel %vm1266, %v3024, %v3532
      %v3563 = vsel %vm1962, %v3560, %v3540
      %v3564 = vsel %vm1962, %v3561, %v3542
      %v3565 = vsel %vm1962, %v3562, %v3544
      %v3566 = vsel %vm1966, %v3563, %v3552
      %v3567 = vsel %vm1966, %v3564, %v3554
      %v3568 = vsel %vm1966, %v3565, %v3556
      %v3569 = vpack.c.bf16 %v3567, %v3566
      %v3570 = vpack.c.bf16 %v3568, %v3568
      %s3571 = scalar_lea.vmem %s10, 16
      %v3572 = vld [vmem:[%s3571] sm:$0xf]
      %v3573 = vld [vmem:[%s3571 + $0x4] sm:$0xf]
      %v3574 = vld [vmem:[%s3571 + $0x8] sm:$0xf]
      %v3575 = vld [vmem:[%s3571 + $0xc] sm:$0xf]
      %v3580 = vunpack.c.l.b16 %v3572
      %v3581 = vunpack.c.l.b16 %v3573
      %v3582 = vunpack.c.l.b16 %v3574
      %v3583 = vunpack.c.l.b16 %v3575
      %v3584 = vpack.c.b16 %v3581, %v3580
      %v3585 = vpack.c.b16 %v3583, %v3582
      %v3589 = vsel %vm614, %v3569, 0
      %v3592 = vsel %vm614, %v3570, 0
      %3594 = vmatprep.subr.bf16.mxu0 0
      %3595 = vmatpush1.bf16.msra.mxu0 0
      %3596 = vmatprep.subr.bf16.mxu0 0
      %3597 = vmatpush1.bf16.msra.mxu0 0
      %3598 = vmatprep.subr.bf16.mxu0 0
      %3599 = vmatpush1.bf16.msra.mxu0 0
      %3600 = vmatprep.subr.bf16.mxu0 0
      %3601 = vmatpush1.bf16.msra.mxu0 0
      %3602 = vmatprep.subr.bf16.mxu0 0
      %3603 = vmatpush1.bf16.msra.mxu0 0
      %3604 = vmatprep.subr.bf16.mxu0 0
      %3605 = vmatpush1.bf16.msra.mxu0 0
      %3606 = vmatprep.subr.bf16.mxu0 0
      %3607 = vmatpush1.bf16.msra.mxu0 %v3585
      %3608 = vmatprep.subr.bf16.mxu0 0
      %3609 = vmatpush1.bf16.msra.mxu0 %v3584
      %3610 = vmatprep.subr.bf16.mxu0 0
      %3611 = vmatpush2.bf16.msra.mxu0 0
      %3612 = vmatprep.subr.bf16.mxu0 0
      %3613 = vmatpush2.bf16.msra.mxu0 0
      %3614 = vmatprep.subr.bf16.mxu0 0
      %3615 = vmatpush2.bf16.msra.mxu0 0
      %3616 = vmatprep.subr.bf16.mxu0 0
      %3617 = vmatpush2.bf16.msra.mxu0 0
      %3618 = vmatprep.subr.bf16.mxu0 0
      %3619 = vmatpush2.bf16.msra.mxu0 0
      %3620 = vmatprep.subr.bf16.mxu0 0
      %3621 = vmatpush2.bf16.msra.mxu0 0
      %3622 = vmatprep.subr.bf16.mxu0 0
      %3623 = vmatpush2.bf16.msra.mxu0 0
      %3624 = vmatprep.subr.bf16.mxu0 0
      %3625 = vmatpush2.bf16.msra.mxu0 0
      %3626 = vmatprep.mubr.bf16.mxu0 0
      %3627 = vmatmul.mubr.bf16.gmra.mxu0 %v3589
      %v3628 = vpop.f32.mrf.mxu0
      %v3629 = vadd.f32 0.0, %v3628
      %v3630 = vpop.f32.mrf.mxu0
      %v3631 = vpop.f32.mrf.mxu0
      %v3632 = vadd.f32 0.0, %v3631
      %v3633 = vpop.f32.mrf.mxu0
      %3634 = vmatprep.mubr.bf16.mxu0 0
      %3635 = vmatmul.mubr.bf16.gmra.mxu0 %v3592
      %v3636 = vpop.f32.mrf.mxu0
      %v3637 = vadd.f32 0.0, %v3636
      %v3638 = vpop.f32.mrf.mxu0
      %v3639 = vpop.f32.mrf.mxu0
      %v3640 = vpop.f32.mrf.mxu0
      %3641 = vdwg.mxu0
      %v3642 = vadd.f32 %v2338, %v3629
      %v3643 = vadd.f32 %v2339, %v3632
      %v3644 = vadd.f32 %v2340, %v3637
      %s3645 = scalar_lea.vmem %s11, 1
      %v3646 = vld [vmem:[%s3645] sm:$0x1]
      %v3648 = vlaneseq
      %v3649 = vshrl.u32 %v3648, 7
      %v3650 = vsub.s32 0, %v3649
      %v3651 = vrot.slane %v3646, %v3650
      %v3653 = vadd.f32 %v3642, %v3651
      %v3654 = vadd.f32 %v3643, %v3651
      %v3655 = vadd.f32 %v3644, %v3651
      %v3656 = vsel %vm614, %v3653, 0.0
      %3657 = vadd.xlane.f32.xlu0 %v3656
      %v3658 = vpop.xlane.xlu0 %3657
      %v3659 = vsel %vm614, %v3654, 0.0
      %3660 = vadd.xlane.f32.xlu0 %v3659
      %v3661 = vpop.xlane.xlu0 %3660
      %v3662 = vsel %vm663, %v3655, 0.0
      %3663 = vadd.xlane.f32.xlu0 %v3662
      %v3664 = vpop.xlane.xlu0 %3663
      %v3665 = vmul.f32 %v3658, %v621
      %v3666 = vmul.f32 %v3661, %v621
      %v3667 = vmul.f32 %v3664, %v621
      %v3668 = vsub.f32 %v3653, %v3665
      %v3669 = vsub.f32 %v3654, %v3666
      %v3670 = vsub.f32 %v3655, %v3667
      %v3671 = vmul.f32 %v3668, %v3668
      %v3672 = vmul.f32 %v3669, %v3669
      %v3673 = vmul.f32 %v3670, %v3670
      %v3674 = vsel %vm614, %v3671, 0.0
      %3675 = vadd.xlane.f32.xlu0 %v3674
      %v3676 = vpop.xlane.xlu0 %3675
      %v3677 = vsel %vm614, %v3672, 0.0
      %3678 = vadd.xlane.f32.xlu0 %v3677
      %v3679 = vpop.xlane.xlu0 %3678
      %v3680 = vsel %vm663, %v3673, 0.0
      %3681 = vadd.xlane.f32.xlu0 %v3680
      %v3682 = vpop.xlane.xlu0 %3681
      %v3683 = vmul.f32 %v3676, %v621
      %v3684 = vmul.f32 %v3679, %v621
      %v3685 = vmul.f32 %v3682, %v621
      %v3686 = vadd.f32 %v3683, 1e-05
      %v3687 = vadd.f32 %v3684, 1e-05
      %v3688 = vadd.f32 %v3685, 1e-05
      %v3689 = vrsqrt.pop %v3686
      %v3690 = vrsqrt.pop %v3687
      %v3691 = vrsqrt.pop %v3688
      %v3692 = vmul.f32 %v3668, %v3689
      %v3693 = vmul.f32 %v3669, %v3690
      %v3694 = vmul.f32 %v3670, %v3691
      %v3695 = vlaneseq
      %v3696 = vshrl.u32 %v3695, 7
      %v3697 = vsub.s32 2, %v3696
      %v3698 = vrot.slane %v2342, %v3697
      %v3699 = vmul.f32 %v3692, %v3698
      %v3700 = vmul.f32 %v3693, %v3698
      %v3701 = vmul.f32 %v3694, %v3698
      %v3702 = vlaneseq
      %v3703 = vshrl.u32 %v3702, 7
      %v3704 = vsub.s32 3, %v3703
      %v3705 = vrot.slane %v2342, %v3704
      %v3706 = vadd.f32 %v3699, %v3705
      %v3707 = vadd.f32 %v3700, %v3705
      %v3708 = vadd.f32 %v3701, %v3705
      %v3709 = vpack.c.bf16 %v3707, %v3706
      %v3710 = vpack.c.bf16 %v3708, %v3708
      %s3711 = scalar_lea.vmem %s12, 16
      %v3712 = vld [vmem:[%s3711] sm:$0xf]
      %v3713 = vld [vmem:[%s3711 + $0x4] sm:$0xf]
      %v3714 = vld [vmem:[%s3711 + $0x8] sm:$0xf]
      %v3715 = vld [vmem:[%s3711 + $0xc] sm:$0xf]
      %s3716 = scalar_lea.vmem %s13, 1
      %v3717 = vld [vmem:[%s3716] sm:$0x1]
      %v3719 = vlaneseq
      %v3720 = vshrl.u32 %v3719, 7
      %v3721 = vsub.s32 0, %v3720
      %v3722 = vrot.slane %v3717, %v3721
      %v3728 = vunpack.c.l.b16 %v3712
      %v3729 = vunpack.c.l.b16 %v3713
      %v3730 = vunpack.c.l.b16 %v3714
      %v3731 = vunpack.c.l.b16 %v3715
      %v3732 = vpack.c.b16 %v3729, %v3728
      %v3733 = vpack.c.b16 %v3731, %v3730
      %v3737 = vsel %vm614, %v3709, 0
      %v3740 = vsel %vm614, %v3710, 0
      %3742 = vmatprep.subr.bf16.mxu0 0
      %3743 = vmatpush1.bf16.msra.mxu0 0
      %3744 = vmatprep.subr.bf16.mxu0 0
      %3745 = vmatpush1.bf16.msra.mxu0 0
      %3746 = vmatprep.subr.bf16.mxu0 0
      %3747 = vmatpush1.bf16.msra.mxu0 0
      %3748 = vmatprep.subr.bf16.mxu0 0
      %3749 = vmatpush1.bf16.msra.mxu0 0
      %3750 = vmatprep.subr.bf16.mxu0 0
      %3751 = vmatpush1.bf16.msra.mxu0 0
      %3752 = vmatprep.subr.bf16.mxu0 0
      %3753 = vmatpush1.bf16.msra.mxu0 0
      %3754 = vmatprep.subr.bf16.mxu0 0
      %3755 = vmatpush1.bf16.msra.mxu0 %v3733
      %3756 = vmatprep.subr.bf16.mxu0 0
      %3757 = vmatpush1.bf16.msra.mxu0 %v3732
      %3758 = vmatprep.subr.bf16.mxu0 0
      %3759 = vmatpush2.bf16.msra.mxu0 0
      %3760 = vmatprep.subr.bf16.mxu0 0
      %3761 = vmatpush2.bf16.msra.mxu0 0
      %3762 = vmatprep.subr.bf16.mxu0 0
      %3763 = vmatpush2.bf16.msra.mxu0 0
      %3764 = vmatprep.subr.bf16.mxu0 0
      %3765 = vmatpush2.bf16.msra.mxu0 0
      %3766 = vmatprep.subr.bf16.mxu0 0
      %3767 = vmatpush2.bf16.msra.mxu0 0
      %3768 = vmatprep.subr.bf16.mxu0 0
      %3769 = vmatpush2.bf16.msra.mxu0 0
      %3770 = vmatprep.subr.bf16.mxu0 0
      %3771 = vmatpush2.bf16.msra.mxu0 0
      %3772 = vmatprep.subr.bf16.mxu0 0
      %3773 = vmatpush2.bf16.msra.mxu0 0
      %3774 = vmatprep.mubr.bf16.mxu0 0
      %3775 = vmatmul.mubr.bf16.gmra.mxu0 %v3737
      %v3776 = vpop.f32.mrf.mxu0
      %v3777 = vadd.f32 %v3722, %v3776
      %v3778 = vpop.f32.mrf.mxu0
      %v3779 = vpop.f32.mrf.mxu0
      %v3780 = vadd.f32 %v3722, %v3779
      %v3781 = vpop.f32.mrf.mxu0
      %3782 = vmatprep.mubr.bf16.mxu0 0
      %3783 = vmatmul.mubr.bf16.gmra.mxu0 %v3740
      %v3784 = vpop.f32.mrf.mxu0
      %v3785 = vadd.f32 %v3722, %v3784
      %v3786 = vpop.f32.mrf.mxu0
      %v3787 = vpop.f32.mrf.mxu0
      %v3788 = vpop.f32.mrf.mxu0
      %3789 = vdwg.mxu0
      %v3790 = vmul.f32 %v3777, 0.5
      %v3791 = vmul.f32 %v3780, 0.5
      %v3792 = vmul.f32 %v3785, 0.5
      %v3793 = vmul.f32 %v3777, 0.044715
      %v3794 = vmul.f32 %v3780, 0.044715
      %v3795 = vmul.f32 %v3785, 0.044715
      %v3796 = vmul.f32 %v3793, %v3777
      %v3797 = vmul.f32 %v3794, %v3780
      %v3798 = vmul.f32 %v3795, %v3785
      %v3799 = vmul.f32 %v3796, %v3777
      %v3800 = vmul.f32 %v3797, %v3780
      %v3801 = vmul.f32 %v3798, %v3785
      %v3802 = vadd.f32 %v3777, %v3799
      %v3803 = vadd.f32 %v3780, %v3800
      %v3804 = vadd.f32 %v3785, %v3801
      %v3805 = vmul.f32 %v3802, 0.7978846
      %v3806 = vmul.f32 %v3803, 0.7978846
      %v3807 = vmul.f32 %v3804, 0.7978846
      %v3808 = vtanh.pop %v3805
      %v3809 = vtanh.pop %v3806
      %v3810 = vtanh.pop %v3807
      %v3811 = vadd.f32 %v3808, 1.0
      %v3812 = vadd.f32 %v3809, 1.0
      %v3813 = vadd.f32 %v3810, 1.0
      %v3814 = vmul.f32 %v3790, %v3811
      %v3815 = vmul.f32 %v3791, %v3812
      %v3816 = vmul.f32 %v3792, %v3813
      %v3817 = vpack.c.bf16 %v3815, %v3814
      %v3818 = vpack.c.bf16 %v3816, %v3816
      %s3819 = scalar_lea.vmem %s14, 64
      %v3820 = vld [vmem:[%s3819] sm:$0xf]
      %v3821 = vld [vmem:[%s3819 + $0x4] sm:$0xf]
      %v3822 = vld [vmem:[%s3819 + $0x8] sm:$0xf]
      %v3823 = vld [vmem:[%s3819 + $0xc] sm:$0xf]
      %v3824 = vld [vmem:[%s3819 + $0x10] sm:$0xf]
      %v3825 = vld [vmem:[%s3819 + $0x14] sm:$0xf]
      %v3826 = vld [vmem:[%s3819 + $0x18] sm:$0xf]
      %v3827 = vld [vmem:[%s3819 + $0x1c] sm:$0xf]
      %v3828 = vld [vmem:[%s3819 + $0x20] sm:$0xf]
      %v3829 = vld [vmem:[%s3819 + $0x24] sm:$0xf]
      %v3830 = vld [vmem:[%s3819 + $0x28] sm:$0xf]
      %v3831 = vld [vmem:[%s3819 + $0x2c] sm:$0xf]
      %v3832 = vld [vmem:[%s3819 + $0x30] sm:$0xf]
      %v3833 = vld [vmem:[%s3819 + $0x34] sm:$0xf]
      %v3834 = vld [vmem:[%s3819 + $0x38] sm:$0xf]
      %v3835 = vld [vmem:[%s3819 + $0x3c] sm:$0xf]
      %v3852 = vunpack.c.l.b16 %v3820
      %v3853 = vunpack.c.l.b16 %v3821
      %v3854 = vunpack.c.l.b16 %v3822
      %v3855 = vunpack.c.l.b16 %v3823
      %v3856 = vunpack.c.l.b16 %v3824
      %v3857 = vunpack.c.l.b16 %v3825
      %v3858 = vunpack.c.l.b16 %v3826
      %v3859 = vunpack.c.l.b16 %v3827
      %v3860 = vunpack.c.l.b16 %v3828
      %v3861 = vunpack.c.l.b16 %v3829
      %v3862 = vunpack.c.l.b16 %v3830
      %v3863 = vunpack.c.l.b16 %v3831
      %v3864 = vunpack.c.l.b16 %v3832
      %v3865 = vunpack.c.l.b16 %v3833
      %v3866 = vunpack.c.l.b16 %v3834
      %v3867 = vunpack.c.l.b16 %v3835
      %v3868 = vpack.c.b16 %v3853, %v3852
      %v3869 = vpack.c.b16 %v3855, %v3854
      %v3870 = vpack.c.b16 %v3857, %v3856
      %v3871 = vpack.c.b16 %v3859, %v3858
      %v3872 = vpack.c.b16 %v3861, %v3860
      %v3873 = vpack.c.b16 %v3863, %v3862
      %v3874 = vpack.c.b16 %v3865, %v3864
      %v3875 = vpack.c.b16 %v3867, %v3866
      %3884 = vmatprep.subr.bf16.mxu0 0
      %3885 = vmatpush1.bf16.msra.mxu0 %v3875
      %3886 = vmatprep.subr.bf16.mxu0 0
      %3887 = vmatpush1.bf16.msra.mxu0 %v3874
      %3888 = vmatprep.subr.bf16.mxu0 0
      %3889 = vmatpush1.bf16.msra.mxu0 %v3873
      %3890 = vmatprep.subr.bf16.mxu0 0
      %3891 = vmatpush1.bf16.msra.mxu0 %v3872
      %3892 = vmatprep.subr.bf16.mxu0 0
      %3893 = vmatpush1.bf16.msra.mxu0 %v3871
      %3894 = vmatprep.subr.bf16.mxu0 0
      %3895 = vmatpush1.bf16.msra.mxu0 %v3870
      %3896 = vmatprep.subr.bf16.mxu0 0
      %3897 = vmatpush1.bf16.msra.mxu0 %v3869
      %3898 = vmatprep.subr.bf16.mxu0 0
      %3899 = vmatpush1.bf16.msra.mxu0 %v3868
      %3900 = vmatprep.subr.bf16.mxu0 0
      %3901 = vmatpush2.bf16.msra.mxu0 0
      %3902 = vmatprep.subr.bf16.mxu0 0
      %3903 = vmatpush2.bf16.msra.mxu0 0
      %3904 = vmatprep.subr.bf16.mxu0 0
      %3905 = vmatpush2.bf16.msra.mxu0 0
      %3906 = vmatprep.subr.bf16.mxu0 0
      %3907 = vmatpush2.bf16.msra.mxu0 0
      %3908 = vmatprep.subr.bf16.mxu0 0
      %3909 = vmatpush2.bf16.msra.mxu0 0
      %3910 = vmatprep.subr.bf16.mxu0 0
      %3911 = vmatpush2.bf16.msra.mxu0 0
      %3912 = vmatprep.subr.bf16.mxu0 0
      %3913 = vmatpush2.bf16.msra.mxu0 0
      %3914 = vmatprep.subr.bf16.mxu0 0
      %3915 = vmatpush2.bf16.msra.mxu0 0
      %3916 = vmatprep.mubr.bf16.mxu0 0
      %3917 = vmatmul.mubr.bf16.gmra.mxu0 %v3817
      %v3918 = vpop.f32.mrf.mxu0
      %v3919 = vadd.f32 0.0, %v3918
      %v3920 = vpop.f32.mrf.mxu0
      %v3921 = vpop.f32.mrf.mxu0
      %v3922 = vadd.f32 0.0, %v3921
      %v3923 = vpop.f32.mrf.mxu0
      %3924 = vmatprep.mubr.bf16.mxu0 0
      %3925 = vmatmul.mubr.bf16.gmra.mxu0 %v3818
      %v3926 = vpop.f32.mrf.mxu0
      %v3927 = vadd.f32 0.0, %v3926
      %v3928 = vpop.f32.mrf.mxu0
      %v3929 = vpop.f32.mrf.mxu0
      %v3930 = vpop.f32.mrf.mxu0
      %3931 = vdwg.mxu0
      %v3932 = vadd.f32 %v3653, %v3919
      %v3933 = vadd.f32 %v3654, %v3922
      %v3934 = vadd.f32 %v3655, %v3927
      %s3935 = scalar_lea.vmem %s15, 1
      %v3936 = vld [vmem:[%s3935] sm:$0x1]
      %v3938 = vlaneseq
      %v3939 = vshrl.u32 %v3938, 7
      %v3940 = vsub.s32 0, %v3939
      %v3941 = vrot.slane %v3936, %v3940
      %v3943 = vadd.f32 %v3932, %v3941
      %v3944 = vadd.f32 %v3933, %v3941
      %v3945 = vadd.f32 %v3934, %v3941
      %3946 = vst.msk [vmem:[%s521] sm:$0xff] %vm614, %v3943
      %3947 = vst.msk [vmem:[%s521 + $0x8] sm:$0xff] %vm614, %v3944
      %3948 = vst.msk [vmem:[%s521 + $0x10] sm:$0x1] %vm663, %v3945
      %p3949 = scmp.lt.s32.totalorder %s27, 1
      %s3950 = scalar_select %p3949, %s27, 1
      %s3951 = smul.addr %s3950, 3
      %s3952 = smul.addr %s3951, 8
      %s3953 = scalar_lea.vmem %s16, %s3952
      // Predicated region
      $region85: #{vision_transformer_forward.1} parent=83 // pred_check
        %p3954 = pneg %p386
      $region86: #{vision_transformer_forward.1} parent=83 // pred_check_branch
        %3956 = sbr.rel (%p3954) target = $region88
      $region87: #{vision_transformer_forward.1} parent=83 // pred_region
        _
      $region88: #{vision_transformer_forward.1} parent=83 // pred_fallthru
        _
    $region84: #{vision_transformer_forward.1} parent=5 // pred_fallthru
      _
    %p3957 = scmp.le.s32.totalorder 2, %s22
    // Predicated region
    $region89: #{vision_transformer_forward.1} parent=5 // pred_check
      %p3958 = pneg %p3957
    $region90: #{vision_transformer_forward.1} parent=5 // pred_check_branch
      %3960 = sbr.rel (%p3958) target = $region92
    $region91: #{vision_transformer_forward.1} parent=5 // pred_region
      %s3961 = ssub.s32 %s22, 2
      // Predicated region
      $region93: #{vision_transformer_forward.1} parent=91 // pred_check
        %p3962 = pneg %p392
      $region94: #{vision_transformer_forward.1} parent=91 // pred_check_branch
        %3964 = sbr.rel (%p3962) target = $region96
      $region95: #{vision_transformer_forward.1} parent=91 // pred_region
        %p3965 = scmp.lt.s32.totalorder %s28, 1
        %s3966 = scalar_select %p3965, %s28, 1
        %s3967 = smul.addr %s3966, 3
        %s3968 = smul.addr %s3967, 8
        %s3969 = scalar_lea.vmem %s16, %s3968
      $region96: #{vision_transformer_forward.1} parent=91 // pred_fallthru
        _
    $region92: #{vision_transformer_forward.1} parent=5 // pred_fallthru
      _
  $region6: #{vision_transformer_forward.1} parent=0 // loop_footer
    %s26 = sadd.s32 1, %s22
  $region7: #{vision_transformer_forward.1} parent=0 // loop_footer_branch
    %21 = sbr.rel target = $region3
  $region8: #{vision_transformer_forward.1} parent=0 // loop_exit
    _

</llo_original>
